<compile_context>
chip_gen: v6e
topology: v6e:2x2x1
jax: 0.10.0
libtpu: 0.0.40
codegen_flags: <defaults>
</compile_context>

<pallas_src>
import functools

import jax
import jax.numpy as jnp
from jax.experimental import pallas as pl
from jax.experimental.pallas import tpu as pltpu


_SQRT_2_OVER_PI = 0.7978845608028654
_LANE = 128
_MAX_WIDTH = 8192              # lane-dense slab width target
_SMALL_BYPASS_BYTES = 256 * 1024


def _gelu_kernel(x_ref, o_ref):
    xf = x_ref[...].astype(jnp.float32)
    # z = sqrt(2/pi) * (x + 0.044715*x^3) = sqrt(2/pi) * x * (1 + 0.044715*x*x)
    two_z = jnp.float32(2.0 * _SQRT_2_OVER_PI) * xf * (
        jnp.float32(1.0) + jnp.float32(0.044715) * (xf * xf))
    # 0.5*x*(1 + tanh(z)) == x * sigmoid(2z) == x / (1 + exp(-2z))   (exact)
    o_ref[...] = (xf / (jnp.float32(1.0) + jnp.exp(-two_z))).astype(o_ref.dtype)


def _gelu_jnp(x):
    xf = x.astype(jnp.float32)
    y = 0.5 * xf * (1.0 + jnp.tanh(jnp.float32(_SQRT_2_OVER_PI)
                                   * (xf + 0.044715 * xf * xf * xf)))
    return y.astype(x.dtype)


def _cdiv(a, b):
    return -(-a // b)


@functools.lru_cache(maxsize=None)
def _vmem_budget():
    """(max_tile_bytes, vmem_limit_bytes) chosen per TPU generation."""
    cap = None
    try:
        info = pltpu.get_tpu_info()
        cap = getattr(info, "vmem_capacity_bytes", None)
    except Exception:
        cap = None
    if not cap:
        cap = 64 * 1024 * 1024                     # conservative (v7x per-TC)
    cap = int(cap)
    tile_bytes = min(16 << 20, cap // 8)           # 8 MiB on v7x, 16 MiB on v5e/v6e
    vmem_limit = min(cap * 3 // 4, 4 * tile_bytes + (8 << 20))
    return tile_bytes, vmem_limit


def _pick_width(n_main):
    """Widest lane-dense width (multiple of 128, <= _MAX_WIDTH) dividing n_main."""
    m = n_main // _LANE
    for k in range(min(_MAX_WIDTH // _LANE, m), 0, -1):
        if m % k == 0:
            return _LANE * k
    return _LANE


def _pick_block_rows(rows, width, itemsize, tile_bytes, sub):
    """Largest sublane-multiple row count fitting the tile budget (cdiv grid)."""
    max_br = max(sub, (tile_bytes // (width * itemsize)) // sub * sub)
    block_rows = min(max_br, rows)
    if block_rows < rows:
        # block_rows is a multiple of `sub` here; prefer >= 4 grid steps so
        # both v7x TensorCores get balanced, pipelined work.
        if _cdiv(rows, block_rows) < 4:
            block_rows = min(rows, max(sub, _cdiv(_cdiv(rows, 4), sub) * sub))
    return block_rows


def _gelu_2d(x2d, tile_bytes, vmem_limit):
    rows, width = x2d.shape
    itemsize = jnp.dtype(x2d.dtype).itemsize
    sub = max(8, 32 // itemsize)                   # sublane multiple for dtype
    block_rows = _pick_block_rows(rows, width, itemsize, tile_bytes, sub)
    grid_n = _cdiv(rows, block_rows)               # ragged last block is masked

    return pl.pallas_call(
        _gelu_kernel,
        out_shape=jax.ShapeDtypeStruct((rows, width), x2d.dtype),
        grid_spec=pltpu.PrefetchScalarGridSpec(
            num_scalar_prefetch=0,
            grid=(grid_n,),
            in_specs=[pl.BlockSpec((block_rows, width), lambda i: (i, 0))],
            out_specs=pl.BlockSpec((block_rows, width), lambda i: (i, 0)),
        ),
        compiler_params=pltpu.CompilerParams(
            dimension_semantics=("parallel",),
            vmem_limit_bytes=vmem_limit,
        ),
        cost_estimate=pl.CostEstimate(
            flops=8 * rows * width,
            transcendentals=rows * width,
            bytes_accessed=2 * rows * width * itemsize,
        ),
    )(x2d)


def gelu_pallas(x, *, max_tile_bytes=None):
    """Applies tanh-approx GELU elementwise. Accepts arbitrary-rank input."""
    orig_shape = x.shape
    n = x.size
    if n == 0:
        return x
    itemsize = jnp.dtype(x.dtype).itemsize

    # Tiny tensors: kernel launch overhead dominates -> fused XLA elementwise.
    if n * itemsize < _SMALL_BYPASS_BYTES or n < _LANE:
        return _gelu_jnp(x)

    tile_bytes, vmem_limit = _vmem_budget()
    if max_tile_bytes is not None:
        tile_bytes = min(tile_bytes, int(max_tile_bytes))

    flat = x.reshape(-1)
    n_main = (n // _LANE) * _LANE                  # lane-aligned prefix
    width = _pick_width(n_main)
    rows = n_main // width

    if n_main == n:
        x2d = flat.reshape(rows, width)            # no-copy fast path
    else:
        x2d = flat[:n_main].reshape(rows, width)   # aligned-prefix view

    out2d = _gelu_2d(x2d, tile_bytes, vmem_limit)

    if n_main == n:
        return out2d.reshape(orig_shape)
    # <128-element tail handled with plain jnp (GELU(0)=0 padding not needed).
    tail_out = _gelu_jnp(flat[n_main:])
    return jnp.concatenate([out2d.reshape(-1), tail_out]).reshape(orig_shape)


def gelu_ref(x):
    return _gelu_jnp(x)


if __name__ == "__main__":
    # Primary shape consistent with GELU usage in a transformer MLP.
    key = jax.random.PRNGKey(0)
    x = jax.random.normal(key, (2, 8, 32), dtype=jnp.float32)
    y = gelu_pallas(x)
    jax.block_until_ready(y)
    assert y.shape == x.shape and y.dtype == x.dtype
    assert jnp.allclose(y, gelu_ref(x), atol=1e-5, rtol=1e-5)

    # Exercise: (a) single-large-tile fast path, (b) forced multi-step grid with
    # a ragged last block, (c) non-multiple-of-128 size (prefix kernel + jnp tail).
    extra = [
        ((8, 64, 512), None),
        ((3, 1000, 1024), 512 * 1024),
        ((1000, 300), None),
    ]
    for shape, cap in extra:
        xi = jax.random.normal(jax.random.PRNGKey(0), shape, dtype=jnp.float32)
        yi = gelu_pallas(xi, max_tile_bytes=cap)
        jax.block_until_ready(yi)
        assert yi.shape == xi.shape and yi.dtype == xi.dtype
        assert jnp.allclose(yi, gelu_ref(xi), atol=1e-5, rtol=1e-5)

    print("KERNEL_OK")
</pallas_src>

<mosaic_0001>
module attributes {stable_mosaic.version = 11 : i64} {
  func.func @_gelu_kernel(%arg0: i32, %arg1: memref<32x8192xf32, #tpu.memory_space<vmem>>, %arg2: memref<32x8192xf32, #tpu.memory_space<vmem>>) attributes {dimension_semantics = [#tpu.dimension_semantics<parallel>], iteration_bounds = array<i64: 1>, scalar_prefetch = 0 : i64, scratch_operands = 0 : i64, tpu.core_type = #tpu.core_type<tc>, window_params = [{transform_indices = @transform_0, window_bounds = array<i64: 32, 8192>}, {transform_indices = @transform_1, window_bounds = array<i64: 32, 8192>}]} {
    %c0 = arith.constant 0 : index
    %c0_0 = arith.constant 0 : index
    %0 = vector.load %arg1[%c0, %c0_0] : memref<32x8192xf32, #tpu.memory_space<vmem>>, vector<32x8192xf32>
    %cst = arith.constant 1.59576917 : f32
    %1 = vector.broadcast %cst : f32 to vector<32x8192xf32>
    %2 = arith.mulf %1, %0 : vector<32x8192xf32>
    %3 = arith.mulf %0, %0 : vector<32x8192xf32>
    %cst_1 = arith.constant 4.471500e-02 : f32
    %4 = vector.broadcast %cst_1 : f32 to vector<32x8192xf32>
    %5 = arith.mulf %4, %3 : vector<32x8192xf32>
    %cst_2 = arith.constant 1.000000e+00 : f32
    %6 = vector.broadcast %cst_2 : f32 to vector<32x8192xf32>
    %7 = arith.addf %6, %5 : vector<32x8192xf32>
    %8 = arith.mulf %2, %7 : vector<32x8192xf32>
    %cst_3 = arith.constant 0.000000e+00 : f32
    %9 = vector.broadcast %cst_3 : f32 to vector<32x8192xf32>
    %10 = arith.subf %9, %8 : vector<32x8192xf32>
    %11 = math.exp %10 : vector<32x8192xf32>
    %cst_4 = arith.constant 1.000000e+00 : f32
    %12 = vector.broadcast %cst_4 : f32 to vector<32x8192xf32>
    %13 = arith.addf %12, %11 : vector<32x8192xf32>
    %14 = arith.divf %0, %13 : vector<32x8192xf32>
    %c0_5 = arith.constant 0 : index
    %c0_6 = arith.constant 0 : index
    %15 = vector.load %arg2[%c0_5, %c0_6] : memref<32x8192xf32, #tpu.memory_space<vmem>>, vector<32x8192xf32>
    tpu.vector_store %arg2[%c0_5, %c0_6], %14 {strides = array<i32>} : memref<32x8192xf32, #tpu.memory_space<vmem>>, vector<32x8192xf32>,
    return
  }
  func.func @transform_0(%arg0: i32) -> (i32, i32) {
    %c0_i32 = arith.constant 0 : i32
    %c0_i32_0 = arith.constant 0 : i32
    return %arg0, %c0_i32 : i32, i32
  }
  func.func @transform_1(%arg0: i32) -> (i32, i32) {
    %c0_i32 = arith.constant 0 : i32
    %c0_i32_0 = arith.constant 0 : i32
    return %arg0, %c0_i32 : i32, i32
  }
}

</mosaic_0001>

<llo_original>
// kernel: tpu_custom_call.1
$region0: #{tpu_custom_call.1}
  #allocation0 [shape = 'u32[]', space=smem, size = 0x4, offset = 0x4, fixed_abs, tag = 'smem constant byte address 0x4 - core index']
  #allocation1 [shape = 'u32[144,128]{1,0:T(1,128)}', space=vmem, size = 0x12000, scoped, tag = 'internal scratch']
  %s0 = inlined_call_operand.hbm [shape: f32[32,8192], index: 0, kind: input, shape index: {}]
  %s1 = inlined_call_operand.hbm [shape: f32[32,8192], index: 1, kind: output, shape index: {}]
  %s2 = sld [smem:[#allocation0]]
  $region18: #{tpu_custom_call.1} parent=0
    _
  %s4 = ssub.s32 1, %s2
  %s5 = scalar_select 0, %s4, %s2
  $region1: #{tpu_custom_call.1} parent=0
    #allocation2 [shape = 'u8[1048576]{0}', space=vmem, size = 0x100000, scoped, tag = 'input window, operand 0, single buffered']
    #allocation3 [shape = 's32[1]{0}', space=sflag, size = 0x4, scoped, tag = 'scoped memory for tpu_custom_call.1']
    #allocation4 [shape = 's32[1]{0}', space=sflag, size = 0x4, scoped, tag = 'scoped memory for tpu_custom_call.1']
    #allocation5 [shape = 'u8[1048576]{0}', space=vmem, size = 0x100000, scoped, tag = 'output window, operand 0, single buffered']
    %6 = vsyncpa [#allocation3], 0
    %7 = vsyncpa [#allocation4], 0
    // Predicated region
    $region2: #{tpu_custom_call.1} parent=1 // pred_check
      _
    $region3: #{tpu_custom_call.1} parent=1 // pred_check_branch
      %9 = sbr.rel (0) target = $region5
    $region4: #{tpu_custom_call.1} parent=1 // pred_region
      %s11 = ssub.s32 32768, 32768
      %12 = vsyncadd [#allocation3], %s11
      %s13 = sshll.u32 [#allocation2], 4
      %s14 = int_to_ptr.vmem [resolvable:$true] %s13
      %19 = dma.hbm_to_vmem [thread:$0]  %s0, 32768, %s14, [#allocation3], 8192, 8192, 512
    $region5: #{tpu_custom_call.1} parent=1 // pred_fallthru
      _
    // Predicated region
    $region6: #{tpu_custom_call.1} parent=1 // pred_check
      _
    $region7: #{tpu_custom_call.1} parent=1 // pred_check_branch
      %21 = sbr.rel (0) target = $region9
    $region8: #{tpu_custom_call.1} parent=1 // pred_region
      %22 = dma.done [#allocation3], 32768
    $region9: #{tpu_custom_call.1} parent=1 // pred_fallthru
      _
    %v23 = vld [vmem:[#allocation2] sm:$0xff]
    %v24 = vld [vmem:[#allocation2 + $0x8] sm:$0xff]
    %v25 = vld [vmem:[#allocation2 + $0x10] sm:$0xff]
    %v26 = vld [vmem:[#allocation2 + $0x18] sm:$0xff]
    %v27 = vld [vmem:[#allocation2 + $0x20] sm:$0xff]
    %v28 = vld [vmem:[#allocation2 + $0x28] sm:$0xff]
    %v29 = vld [vmem:[#allocation2 + $0x30] sm:$0xff]
    %v30 = vld [vmem:[#allocation2 + $0x38] sm:$0xff]
    %v31 = vld [vmem:[#allocation2 + $0x40] sm:$0xff]
    %v32 = vld [vmem:[#allocation2 + $0x48] sm:$0xff]
    %v33 = vld [vmem:[#allocation2 + $0x50] sm:$0xff]
    %v34 = vld [vmem:[#allocation2 + $0x58] sm:$0xff]
    %v35 = vld [vmem:[#allocation2 + $0x60] sm:$0xff]
    %v36 = vld [vmem:[#allocation2 + $0x68] sm:$0xff]
    %v37 = vld [vmem:[#allocation2 + $0x70] sm:$0xff]
    %v38 = vld [vmem:[#allocation2 + $0x78] sm:$0xff]
    %v39 = vld [vmem:[#allocation2 + $0x80] sm:$0xff]
    %v40 = vld [vmem:[#allocation2 + $0x88] sm:$0xff]
    %v41 = vld [vmem:[#allocation2 + $0x90] sm:$0xff]
    %v42 = vld [vmem:[#allocation2 + $0x98] sm:$0xff]
    %v43 = vld [vmem:[#allocation2 + $0xa0] sm:$0xff]
    %v44 = vld [vmem:[#allocation2 + $0xa8] sm:$0xff]
    %v45 = vld [vmem:[#allocation2 + $0xb0] sm:$0xff]
    %v46 = vld [vmem:[#allocation2 + $0xb8] sm:$0xff]
    %v47 = vld [vmem:[#allocation2 + $0xc0] sm:$0xff]
    %v48 = vld [vmem:[#allocation2 + $0xc8] sm:$0xff]
    %v49 = vld [vmem:[#allocation2 + $0xd0] sm:$0xff]
    %v50 = vld [vmem:[#allocation2 + $0xd8] sm:$0xff]
    %v51 = vld [vmem:[#allocation2 + $0xe0] sm:$0xff]
    %v52 = vld [vmem:[#allocation2 + $0xe8] sm:$0xff]
    %v53 = vld [vmem:[#allocation2 + $0xf0] sm:$0xff]
    %v54 = vld [vmem:[#allocation2 + $0xf8] sm:$0xff]
    %v55 = vld [vmem:[#allocation2 + $0x100] sm:$0xff]
    %v56 = vld [vmem:[#allocation2 + $0x108] sm:$0xff]
    %v57 = vld [vmem:[#allocation2 + $0x110] sm:$0xff]
    %v58 = vld [vmem:[#allocation2 + $0x118] sm:$0xff]
    %v59 = vld [vmem:[#allocation2 + $0x120] sm:$0xff]
    %v60 = vld [vmem:[#allocation2 + $0x128] sm:$0xff]
    %v61 = vld [vmem:[#allocation2 + $0x130] sm:$0xff]
    %v62 = vld [vmem:[#allocation2 + $0x138] sm:$0xff]
    %v63 = vld [vmem:[#allocation2 + $0x140] sm:$0xff]
    %v64 = vld [vmem:[#allocation2 + $0x148] sm:$0xff]
    %v65 = vld [vmem:[#allocation2 + $0x150] sm:$0xff]
    %v66 = vld [vmem:[#allocation2 + $0x158] sm:$0xff]
    %v67 = vld [vmem:[#allocation2 + $0x160] sm:$0xff]
    %v68 = vld [vmem:[#allocation2 + $0x168] sm:$0xff]
    %v69 = vld [vmem:[#allocation2 + $0x170] sm:$0xff]
    %v70 = vld [vmem:[#allocation2 + $0x178] sm:$0xff]
    %v71 = vld [vmem:[#allocation2 + $0x180] sm:$0xff]
    %v72 = vld [vmem:[#allocation2 + $0x188] sm:$0xff]
    %v73 = vld [vmem:[#allocation2 + $0x190] sm:$0xff]
    %v74 = vld [vmem:[#allocation2 + $0x198] sm:$0xff]
    %v75 = vld [vmem:[#allocation2 + $0x1a0] sm:$0xff]
    %v76 = vld [vmem:[#allocation2 + $0x1a8] sm:$0xff]
    %v77 = vld [vmem:[#allocation2 + $0x1b0] sm:$0xff]
    %v78 = vld [vmem:[#allocation2 + $0x1b8] sm:$0xff]
    %v79 = vld [vmem:[#allocation2 + $0x1c0] sm:$0xff]
    %v80 = vld [vmem:[#allocation2 + $0x1c8] sm:$0xff]
    %v81 = vld [vmem:[#allocation2 + $0x1d0] sm:$0xff]
    %v82 = vld [vmem:[#allocation2 + $0x1d8] sm:$0xff]
    %v83 = vld [vmem:[#allocation2 + $0x1e0] sm:$0xff]
    %v84 = vld [vmem:[#allocation2 + $0x1e8] sm:$0xff]
    %v85 = vld [vmem:[#allocation2 + $0x1f0] sm:$0xff]
    %v86 = vld [vmem:[#allocation2 + $0x1f8] sm:$0xff]
    %v87 = vld [vmem:[#allocation2 + $0x200] sm:$0xff]
    %v88 = vld [vmem:[#allocation2 + $0x208] sm:$0xff]
    %v89 = vld [vmem:[#allocation2 + $0x210] sm:$0xff]
    %v90 = vld [vmem:[#allocation2 + $0x218] sm:$0xff]
    %v91 = vld [vmem:[#allocation2 + $0x220] sm:$0xff]
    %v92 = vld [vmem:[#allocation2 + $0x228] sm:$0xff]
    %v93 = vld [vmem:[#allocation2 + $0x230] sm:$0xff]
    %v94 = vld [vmem:[#allocation2 + $0x238] sm:$0xff]
    %v95 = vld [vmem:[#allocation2 + $0x240] sm:$0xff]
    %v96 = vld [vmem:[#allocation2 + $0x248] sm:$0xff]
    %v97 = vld [vmem:[#allocation2 + $0x250] sm:$0xff]
    %v98 = vld [vmem:[#allocation2 + $0x258] sm:$0xff]
    %v99 = vld [vmem:[#allocation2 + $0x260] sm:$0xff]
    %v100 = vld [vmem:[#allocation2 + $0x268] sm:$0xff]
    %v101 = vld [vmem:[#allocation2 + $0x270] sm:$0xff]
    %v102 = vld [vmem:[#allocation2 + $0x278] sm:$0xff]
    %v103 = vld [vmem:[#allocation2 + $0x280] sm:$0xff]
    %v104 = vld [vmem:[#allocation2 + $0x288] sm:$0xff]
    %v105 = vld [vmem:[#allocation2 + $0x290] sm:$0xff]
    %v106 = vld [vmem:[#allocation2 + $0x298] sm:$0xff]
    %v107 = vld [vmem:[#allocation2 + $0x2a0] sm:$0xff]
    %v108 = vld [vmem:[#allocation2 + $0x2a8] sm:$0xff]
    %v109 = vld [vmem:[#allocation2 + $0x2b0] sm:$0xff]
    %v110 = vld [vmem:[#allocation2 + $0x2b8] sm:$0xff]
    %v111 = vld [vmem:[#allocation2 + $0x2c0] sm:$0xff]
    %v112 = vld [vmem:[#allocation2 + $0x2c8] sm:$0xff]
    %v113 = vld [vmem:[#allocation2 + $0x2d0] sm:$0xff]
    %v114 = vld [vmem:[#allocation2 + $0x2d8] sm:$0xff]
    %v115 = vld [vmem:[#allocation2 + $0x2e0] sm:$0xff]
    %v116 = vld [vmem:[#allocation2 + $0x2e8] sm:$0xff]
    %v117 = vld [vmem:[#allocation2 + $0x2f0] sm:$0xff]
    %v118 = vld [vmem:[#allocation2 + $0x2f8] sm:$0xff]
    %v119 = vld [vmem:[#allocation2 + $0x300] sm:$0xff]
    %v120 = vld [vmem:[#allocation2 + $0x308] sm:$0xff]
    %v121 = vld [vmem:[#allocation2 + $0x310] sm:$0xff]
    %v122 = vld [vmem:[#allocation2 + $0x318] sm:$0xff]
    %v123 = vld [vmem:[#allocation2 + $0x320] sm:$0xff]
    %v124 = vld [vmem:[#allocation2 + $0x328] sm:$0xff]
    %v125 = vld [vmem:[#allocation2 + $0x330] sm:$0xff]
    %v126 = vld [vmem:[#allocation2 + $0x338] sm:$0xff]
    %v127 = vld [vmem:[#allocation2 + $0x340] sm:$0xff]
    %v128 = vld [vmem:[#allocation2 + $0x348] sm:$0xff]
    %v129 = vld [vmem:[#allocation2 + $0x350] sm:$0xff]
    %v130 = vld [vmem:[#allocation2 + $0x358] sm:$0xff]
    %v131 = vld [vmem:[#allocation2 + $0x360] sm:$0xff]
    %v132 = vld [vmem:[#allocation2 + $0x368] sm:$0xff]
    %v133 = vld [vmem:[#allocation2 + $0x370] sm:$0xff]
    %v134 = vld [vmem:[#allocation2 + $0x378] sm:$0xff]
    %v135 = vld [vmem:[#allocation2 + $0x380] sm:$0xff]
    %v136 = vld [vmem:[#allocation2 + $0x388] sm:$0xff]
    %v137 = vld [vmem:[#allocation2 + $0x390] sm:$0xff]
    %v138 = vld [vmem:[#allocation2 + $0x398] sm:$0xff]
    %v139 = vld [vmem:[#allocation2 + $0x3a0] sm:$0xff]
    %v140 = vld [vmem:[#allocation2 + $0x3a8] sm:$0xff]
    %v141 = vld [vmem:[#allocation2 + $0x3b0] sm:$0xff]
    %v142 = vld [vmem:[#allocation2 + $0x3b8] sm:$0xff]
    %v143 = vld [vmem:[#allocation2 + $0x3c0] sm:$0xff]
    %v144 = vld [vmem:[#allocation2 + $0x3c8] sm:$0xff]
    %v145 = vld [vmem:[#allocation2 + $0x3d0] sm:$0xff]
    %v146 = vld [vmem:[#allocation2 + $0x3d8] sm:$0xff]
    %v147 = vld [vmem:[#allocation2 + $0x3e0] sm:$0xff]
    %v148 = vld [vmem:[#allocation2 + $0x3e8] sm:$0xff]
    %v149 = vld [vmem:[#allocation2 + $0x3f0] sm:$0xff]
    %v150 = vld [vmem:[#allocation2 + $0x3f8] sm:$0xff]
    %v151 = vld [vmem:[#allocation2 + $0x400] sm:$0xff]
    %v152 = vld [vmem:[#allocation2 + $0x408] sm:$0xff]
    %v153 = vld [vmem:[#allocation2 + $0x410] sm:$0xff]
    %v154 = vld [vmem:[#allocation2 + $0x418] sm:$0xff]
    %v155 = vld [vmem:[#allocation2 + $0x420] sm:$0xff]
    %v156 = vld [vmem:[#allocation2 + $0x428] sm:$0xff]
    %v157 = vld [vmem:[#allocation2 + $0x430] sm:$0xff]
    %v158 = vld [vmem:[#allocation2 + $0x438] sm:$0xff]
    %v159 = vld [vmem:[#allocation2 + $0x440] sm:$0xff]
    %v160 = vld [vmem:[#allocation2 + $0x448] sm:$0xff]
    %v161 = vld [vmem:[#allocation2 + $0x450] sm:$0xff]
    %v162 = vld [vmem:[#allocation2 + $0x458] sm:$0xff]
    %v163 = vld [vmem:[#allocation2 + $0x460] sm:$0xff]
    %v164 = vld [vmem:[#allocation2 + $0x468] sm:$0xff]
    %v165 = vld [vmem:[#allocation2 + $0x470] sm:$0xff]
    %v166 = vld [vmem:[#allocation2 + $0x478] sm:$0xff]
    %v167 = vld [vmem:[#allocation2 + $0x480] sm:$0xff]
    %v168 = vld [vmem:[#allocation2 + $0x488] sm:$0xff]
    %v169 = vld [vmem:[#allocation2 + $0x490] sm:$0xff]
    %v170 = vld [vmem:[#allocation2 + $0x498] sm:$0xff]
    %v171 = vld [vmem:[#allocation2 + $0x4a0] sm:$0xff]
    %v172 = vld [vmem:[#allocation2 + $0x4a8] sm:$0xff]
    %v173 = vld [vmem:[#allocation2 + $0x4b0] sm:$0xff]
    %v174 = vld [vmem:[#allocation2 + $0x4b8] sm:$0xff]
    %v175 = vld [vmem:[#allocation2 + $0x4c0] sm:$0xff]
    %v176 = vld [vmem:[#allocation2 + $0x4c8] sm:$0xff]
    %v177 = vld [vmem:[#allocation2 + $0x4d0] sm:$0xff]
    %v178 = vld [vmem:[#allocation2 + $0x4d8] sm:$0xff]
    %v179 = vld [vmem:[#allocation2 + $0x4e0] sm:$0xff]
    %v180 = vld [vmem:[#allocation2 + $0x4e8] sm:$0xff]
    %v181 = vld [vmem:[#allocation2 + $0x4f0] sm:$0xff]
    %v182 = vld [vmem:[#allocation2 + $0x4f8] sm:$0xff]
    %v183 = vld [vmem:[#allocation2 + $0x500] sm:$0xff]
    %v184 = vld [vmem:[#allocation2 + $0x508] sm:$0xff]
    %v185 = vld [vmem:[#allocation2 + $0x510] sm:$0xff]
    %v186 = vld [vmem:[#allocation2 + $0x518] sm:$0xff]
    %v187 = vld [vmem:[#allocation2 + $0x520] sm:$0xff]
    %v188 = vld [vmem:[#allocation2 + $0x528] sm:$0xff]
    %v189 = vld [vmem:[#allocation2 + $0x530] sm:$0xff]
    %v190 = vld [vmem:[#allocation2 + $0x538] sm:$0xff]
    %v191 = vld [vmem:[#allocation2 + $0x540] sm:$0xff]
    %v192 = vld [vmem:[#allocation2 + $0x548] sm:$0xff]
    %v193 = vld [vmem:[#allocation2 + $0x550] sm:$0xff]
    %v194 = vld [vmem:[#allocation2 + $0x558] sm:$0xff]
    %v195 = vld [vmem:[#allocation2 + $0x560] sm:$0xff]
    %v196 = vld [vmem:[#allocation2 + $0x568] sm:$0xff]
    %v197 = vld [vmem:[#allocation2 + $0x570] sm:$0xff]
    %v198 = vld [vmem:[#allocation2 + $0x578] sm:$0xff]
    %v199 = vld [vmem:[#allocation2 + $0x580] sm:$0xff]
    %v200 = vld [vmem:[#allocation2 + $0x588] sm:$0xff]
    %v201 = vld [vmem:[#allocation2 + $0x590] sm:$0xff]
    %v202 = vld [vmem:[#allocation2 + $0x598] sm:$0xff]
    %v203 = vld [vmem:[#allocation2 + $0x5a0] sm:$0xff]
    %v204 = vld [vmem:[#allocation2 + $0x5a8] sm:$0xff]
    %v205 = vld [vmem:[#allocation2 + $0x5b0] sm:$0xff]
    %v206 = vld [vmem:[#allocation2 + $0x5b8] sm:$0xff]
    %v207 = vld [vmem:[#allocation2 + $0x5c0] sm:$0xff]
    %v208 = vld [vmem:[#allocation2 + $0x5c8] sm:$0xff]
    %v209 = vld [vmem:[#allocation2 + $0x5d0] sm:$0xff]
    %v210 = vld [vmem:[#allocation2 + $0x5d8] sm:$0xff]
    %v211 = vld [vmem:[#allocation2 + $0x5e0] sm:$0xff]
    %v212 = vld [vmem:[#allocation2 + $0x5e8] sm:$0xff]
    %v213 = vld [vmem:[#allocation2 + $0x5f0] sm:$0xff]
    %v214 = vld [vmem:[#allocation2 + $0x5f8] sm:$0xff]
    %v215 = vld [vmem:[#allocation2 + $0x600] sm:$0xff]
    %v216 = vld [vmem:[#allocation2 + $0x608] sm:$0xff]
    %v217 = vld [vmem:[#allocation2 + $0x610] sm:$0xff]
    %v218 = vld [vmem:[#allocation2 + $0x618] sm:$0xff]
    %v219 = vld [vmem:[#allocation2 + $0x620] sm:$0xff]
    %v220 = vld [vmem:[#allocation2 + $0x628] sm:$0xff]
    %v221 = vld [vmem:[#allocation2 + $0x630] sm:$0xff]
    %v222 = vld [vmem:[#allocation2 + $0x638] sm:$0xff]
    %v223 = vld [vmem:[#allocation2 + $0x640] sm:$0xff]
    %v224 = vld [vmem:[#allocation2 + $0x648] sm:$0xff]
    %v225 = vld [vmem:[#allocation2 + $0x650] sm:$0xff]
    %v226 = vld [vmem:[#allocation2 + $0x658] sm:$0xff]
    %v227 = vld [vmem:[#allocation2 + $0x660] sm:$0xff]
    %v228 = vld [vmem:[#allocation2 + $0x668] sm:$0xff]
    %v229 = vld [vmem:[#allocation2 + $0x670] sm:$0xff]
    %v230 = vld [vmem:[#allocation2 + $0x678] sm:$0xff]
    %v231 = vld [vmem:[#allocation2 + $0x680] sm:$0xff]
    %v232 = vld [vmem:[#allocation2 + $0x688] sm:$0xff]
    %v233 = vld [vmem:[#allocation2 + $0x690] sm:$0xff]
    %v234 = vld [vmem:[#allocation2 + $0x698] sm:$0xff]
    %v235 = vld [vmem:[#allocation2 + $0x6a0] sm:$0xff]
    %v236 = vld [vmem:[#allocation2 + $0x6a8] sm:$0xff]
    %v237 = vld [vmem:[#allocation2 + $0x6b0] sm:$0xff]
    %v238 = vld [vmem:[#allocation2 + $0x6b8] sm:$0xff]
    %v239 = vld [vmem:[#allocation2 + $0x6c0] sm:$0xff]
    %v240 = vld [vmem:[#allocation2 + $0x6c8] sm:$0xff]
    %v241 = vld [vmem:[#allocation2 + $0x6d0] sm:$0xff]
    %v242 = vld [vmem:[#allocation2 + $0x6d8] sm:$0xff]
    %v243 = vld [vmem:[#allocation2 + $0x6e0] sm:$0xff]
    %v244 = vld [vmem:[#allocation2 + $0x6e8] sm:$0xff]
    %v245 = vld [vmem:[#allocation2 + $0x6f0] sm:$0xff]
    %v246 = vld [vmem:[#allocation2 + $0x6f8] sm:$0xff]
    %v247 = vld [vmem:[#allocation2 + $0x700] sm:$0xff]
    %v248 = vld [vmem:[#allocation2 + $0x708] sm:$0xff]
    %v249 = vld [vmem:[#allocation2 + $0x710] sm:$0xff]
    %v250 = vld [vmem:[#allocation2 + $0x718] sm:$0xff]
    %v251 = vld [vmem:[#allocation2 + $0x720] sm:$0xff]
    %v252 = vld [vmem:[#allocation2 + $0x728] sm:$0xff]
    %v253 = vld [vmem:[#allocation2 + $0x730] sm:$0xff]
    %v254 = vld [vmem:[#allocation2 + $0x738] sm:$0xff]
    %v255 = vld [vmem:[#allocation2 + $0x740] sm:$0xff]
    %v256 = vld [vmem:[#allocation2 + $0x748] sm:$0xff]
    %v257 = vld [vmem:[#allocation2 + $0x750] sm:$0xff]
    %v258 = vld [vmem:[#allocation2 + $0x758] sm:$0xff]
    %v259 = vld [vmem:[#allocation2 + $0x760] sm:$0xff]
    %v260 = vld [vmem:[#allocation2 + $0x768] sm:$0xff]
    %v261 = vld [vmem:[#allocation2 + $0x770] sm:$0xff]
    %v262 = vld [vmem:[#allocation2 + $0x778] sm:$0xff]
    %v263 = vld [vmem:[#allocation2 + $0x780] sm:$0xff]
    %v264 = vld [vmem:[#allocation2 + $0x788] sm:$0xff]
    %v265 = vld [vmem:[#allocation2 + $0x790] sm:$0xff]
    %v266 = vld [vmem:[#allocation2 + $0x798] sm:$0xff]
    %v267 = vld [vmem:[#allocation2 + $0x7a0] sm:$0xff]
    %v268 = vld [vmem:[#allocation2 + $0x7a8] sm:$0xff]
    %v269 = vld [vmem:[#allocation2 + $0x7b0] sm:$0xff]
    %v270 = vld [vmem:[#allocation2 + $0x7b8] sm:$0xff]
    %v271 = vld [vmem:[#allocation2 + $0x7c0] sm:$0xff]
    %v272 = vld [vmem:[#allocation2 + $0x7c8] sm:$0xff]
    %v273 = vld [vmem:[#allocation2 + $0x7d0] sm:$0xff]
    %v274 = vld [vmem:[#allocation2 + $0x7d8] sm:$0xff]
    %v275 = vld [vmem:[#allocation2 + $0x7e0] sm:$0xff]
    %v276 = vld [vmem:[#allocation2 + $0x7e8] sm:$0xff]
    %v277 = vld [vmem:[#allocation2 + $0x7f0] sm:$0xff]
    %v278 = vld [vmem:[#allocation2 + $0x7f8] sm:$0xff]
    %v279 = vmul.f32 %v23, 1.5957692
    %v280 = vmul.f32 %v24, 1.5957692
    %v281 = vmul.f32 %v25, 1.5957692
    %v282 = vmul.f32 %v26, 1.5957692
    %v283 = vmul.f32 %v27, 1.5957692
    %v284 = vmul.f32 %v28, 1.5957692
    %v285 = vmul.f32 %v29, 1.5957692
    %v286 = vmul.f32 %v30, 1.5957692
    %v287 = vmul.f32 %v31, 1.5957692
    %v288 = vmul.f32 %v32, 1.5957692
    %v289 = vmul.f32 %v33, 1.5957692
    %v290 = vmul.f32 %v34, 1.5957692
    %v291 = vmul.f32 %v35, 1.5957692
    %v292 = vmul.f32 %v36, 1.5957692
    %v293 = vmul.f32 %v37, 1.5957692
    %v294 = vmul.f32 %v38, 1.5957692
    %v295 = vmul.f32 %v39, 1.5957692
    %v296 = vmul.f32 %v40, 1.5957692
    %v297 = vmul.f32 %v41, 1.5957692
    %v298 = vmul.f32 %v42, 1.5957692
    %v299 = vmul.f32 %v43, 1.5957692
    %v300 = vmul.f32 %v44, 1.5957692
    %v301 = vmul.f32 %v45, 1.5957692
    %v302 = vmul.f32 %v46, 1.5957692
    %v303 = vmul.f32 %v47, 1.5957692
    %v304 = vmul.f32 %v48, 1.5957692
    %v305 = vmul.f32 %v49, 1.5957692
    %v306 = vmul.f32 %v50, 1.5957692
    %v307 = vmul.f32 %v51, 1.5957692
    %v308 = vmul.f32 %v52, 1.5957692
    %v309 = vmul.f32 %v53, 1.5957692
    %v310 = vmul.f32 %v54, 1.5957692
    %v311 = vmul.f32 %v55, 1.5957692
    %v312 = vmul.f32 %v56, 1.5957692
    %v313 = vmul.f32 %v57, 1.5957692
    %v314 = vmul.f32 %v58, 1.5957692
    %v315 = vmul.f32 %v59, 1.5957692
    %v316 = vmul.f32 %v60, 1.5957692
    %v317 = vmul.f32 %v61, 1.5957692
    %v318 = vmul.f32 %v62, 1.5957692
    %v319 = vmul.f32 %v63, 1.5957692
    %v320 = vmul.f32 %v64, 1.5957692
    %v321 = vmul.f32 %v65, 1.5957692
    %v322 = vmul.f32 %v66, 1.5957692
    %v323 = vmul.f32 %v67, 1.5957692
    %v324 = vmul.f32 %v68, 1.5957692
    %v325 = vmul.f32 %v69, 1.5957692
    %v326 = vmul.f32 %v70, 1.5957692
    %v327 = vmul.f32 %v71, 1.5957692
    %v328 = vmul.f32 %v72, 1.5957692
    %v329 = vmul.f32 %v73, 1.5957692
    %v330 = vmul.f32 %v74, 1.5957692
    %v331 = vmul.f32 %v75, 1.5957692
    %v332 = vmul.f32 %v76, 1.5957692
    %v333 = vmul.f32 %v77, 1.5957692
    %v334 = vmul.f32 %v78, 1.5957692
    %v335 = vmul.f32 %v79, 1.5957692
    %v336 = vmul.f32 %v80, 1.5957692
    %v337 = vmul.f32 %v81, 1.5957692
    %v338 = vmul.f32 %v82, 1.5957692
    %v339 = vmul.f32 %v83, 1.5957692
    %v340 = vmul.f32 %v84, 1.5957692
    %v341 = vmul.f32 %v85, 1.5957692
    %v342 = vmul.f32 %v86, 1.5957692
    %v343 = vmul.f32 %v87, 1.5957692
    %v344 = vmul.f32 %v88, 1.5957692
    %v345 = vmul.f32 %v89, 1.5957692
    %v346 = vmul.f32 %v90, 1.5957692
    %v347 = vmul.f32 %v91, 1.5957692
    %v348 = vmul.f32 %v92, 1.5957692
    %v349 = vmul.f32 %v93, 1.5957692
    %v350 = vmul.f32 %v94, 1.5957692
    %v351 = vmul.f32 %v95, 1.5957692
    %v352 = vmul.f32 %v96, 1.5957692
    %v353 = vmul.f32 %v97, 1.5957692
    %v354 = vmul.f32 %v98, 1.5957692
    %v355 = vmul.f32 %v99, 1.5957692
    %v356 = vmul.f32 %v100, 1.5957692
    %v357 = vmul.f32 %v101, 1.5957692
    %v358 = vmul.f32 %v102, 1.5957692
    %v359 = vmul.f32 %v103, 1.5957692
    %v360 = vmul.f32 %v104, 1.5957692
    %v361 = vmul.f32 %v105, 1.5957692
    %v362 = vmul.f32 %v106, 1.5957692
    %v363 = vmul.f32 %v107, 1.5957692
    %v364 = vmul.f32 %v108, 1.5957692
    %v365 = vmul.f32 %v109, 1.5957692
    %v366 = vmul.f32 %v110, 1.5957692
    %v367 = vmul.f32 %v111, 1.5957692
    %v368 = vmul.f32 %v112, 1.5957692
    %v369 = vmul.f32 %v113, 1.5957692
    %v370 = vmul.f32 %v114, 1.5957692
    %v371 = vmul.f32 %v115, 1.5957692
    %v372 = vmul.f32 %v116, 1.5957692
    %v373 = vmul.f32 %v117, 1.5957692
    %v374 = vmul.f32 %v118, 1.5957692
    %v375 = vmul.f32 %v119, 1.5957692
    %v376 = vmul.f32 %v120, 1.5957692
    %v377 = vmul.f32 %v121, 1.5957692
    %v378 = vmul.f32 %v122, 1.5957692
    %v379 = vmul.f32 %v123, 1.5957692
    %v380 = vmul.f32 %v124, 1.5957692
    %v381 = vmul.f32 %v125, 1.5957692
    %v382 = vmul.f32 %v126, 1.5957692
    %v383 = vmul.f32 %v127, 1.5957692
    %v384 = vmul.f32 %v128, 1.5957692
    %v385 = vmul.f32 %v129, 1.5957692
    %v386 = vmul.f32 %v130, 1.5957692
    %v387 = vmul.f32 %v131, 1.5957692
    %v388 = vmul.f32 %v132, 1.5957692
    %v389 = vmul.f32 %v133, 1.5957692
    %v390 = vmul.f32 %v134, 1.5957692
    %v391 = vmul.f32 %v135, 1.5957692
    %v392 = vmul.f32 %v136, 1.5957692
    %v393 = vmul.f32 %v137, 1.5957692
    %v394 = vmul.f32 %v138, 1.5957692
    %v395 = vmul.f32 %v139, 1.5957692
    %v396 = vmul.f32 %v140, 1.5957692
    %v397 = vmul.f32 %v141, 1.5957692
    %v398 = vmul.f32 %v142, 1.5957692
    %v399 = vmul.f32 %v143, 1.5957692
    %v400 = vmul.f32 %v144, 1.5957692
    %v401 = vmul.f32 %v145, 1.5957692
    %v402 = vmul.f32 %v146, 1.5957692
    %v403 = vmul.f32 %v147, 1.5957692
    %v404 = vmul.f32 %v148, 1.5957692
    %v405 = vmul.f32 %v149, 1.5957692
    %v406 = vmul.f32 %v150, 1.5957692
    %v407 = vmul.f32 %v151, 1.5957692
    %v408 = vmul.f32 %v152, 1.5957692
    %v409 = vmul.f32 %v153, 1.5957692
    %v410 = vmul.f32 %v154, 1.5957692
    %v411 = vmul.f32 %v155, 1.5957692
    %v412 = vmul.f32 %v156, 1.5957692
    %v413 = vmul.f32 %v157, 1.5957692
    %v414 = vmul.f32 %v158, 1.5957692
    %v415 = vmul.f32 %v159, 1.5957692
    %v416 = vmul.f32 %v160, 1.5957692
    %v417 = vmul.f32 %v161, 1.5957692
    %v418 = vmul.f32 %v162, 1.5957692
    %v419 = vmul.f32 %v163, 1.5957692
    %v420 = vmul.f32 %v164, 1.5957692
    %v421 = vmul.f32 %v165, 1.5957692
    %v422 = vmul.f32 %v166, 1.5957692
    %v423 = vmul.f32 %v167, 1.5957692
    %v424 = vmul.f32 %v168, 1.5957692
    %v425 = vmul.f32 %v169, 1.5957692
    %v426 = vmul.f32 %v170, 1.5957692
    %v427 = vmul.f32 %v171, 1.5957692
    %v428 = vmul.f32 %v172, 1.5957692
    %v429 = vmul.f32 %v173, 1.5957692
    %v430 = vmul.f32 %v174, 1.5957692
    %v431 = vmul.f32 %v175, 1.5957692
    %v432 = vmul.f32 %v176, 1.5957692
    %v433 = vmul.f32 %v177, 1.5957692
    %v434 = vmul.f32 %v178, 1.5957692
    %v435 = vmul.f32 %v179, 1.5957692
    %v436 = vmul.f32 %v180, 1.5957692
    %v437 = vmul.f32 %v181, 1.5957692
    %v438 = vmul.f32 %v182, 1.5957692
    %v439 = vmul.f32 %v183, 1.5957692
    %v440 = vmul.f32 %v184, 1.5957692
    %v441 = vmul.f32 %v185, 1.5957692
    %v442 = vmul.f32 %v186, 1.5957692
    %v443 = vmul.f32 %v187, 1.5957692
    %v444 = vmul.f32 %v188, 1.5957692
    %v445 = vmul.f32 %v189, 1.5957692
    %v446 = vmul.f32 %v190, 1.5957692
    %v447 = vmul.f32 %v191, 1.5957692
    %v448 = vmul.f32 %v192, 1.5957692
    %v449 = vmul.f32 %v193, 1.5957692
    %v450 = vmul.f32 %v194, 1.5957692
    %v451 = vmul.f32 %v195, 1.5957692
    %v452 = vmul.f32 %v196, 1.5957692
    %v453 = vmul.f32 %v197, 1.5957692
    %v454 = vmul.f32 %v198, 1.5957692
    %v455 = vmul.f32 %v199, 1.5957692
    %v456 = vmul.f32 %v200, 1.5957692
    %v457 = vmul.f32 %v201, 1.5957692
    %v458 = vmul.f32 %v202, 1.5957692
    %v459 = vmul.f32 %v203, 1.5957692
    %v460 = vmul.f32 %v204, 1.5957692
    %v461 = vmul.f32 %v205, 1.5957692
    %v462 = vmul.f32 %v206, 1.5957692
    %v463 = vmul.f32 %v207, 1.5957692
    %v464 = vmul.f32 %v208, 1.5957692
    %v465 = vmul.f32 %v209, 1.5957692
    %v466 = vmul.f32 %v210, 1.5957692
    %v467 = vmul.f32 %v211, 1.5957692
    %v468 = vmul.f32 %v212, 1.5957692
    %v469 = vmul.f32 %v213, 1.5957692
    %v470 = vmul.f32 %v214, 1.5957692
    %v471 = vmul.f32 %v215, 1.5957692
    %v472 = vmul.f32 %v216, 1.5957692
    %v473 = vmul.f32 %v217, 1.5957692
    %v474 = vmul.f32 %v218, 1.5957692
    %v475 = vmul.f32 %v219, 1.5957692
    %v476 = vmul.f32 %v220, 1.5957692
    %v477 = vmul.f32 %v221, 1.5957692
    %v478 = vmul.f32 %v222, 1.5957692
    %v479 = vmul.f32 %v223, 1.5957692
    %v480 = vmul.f32 %v224, 1.5957692
    %v481 = vmul.f32 %v225, 1.5957692
    %v482 = vmul.f32 %v226, 1.5957692
    %v483 = vmul.f32 %v227, 1.5957692
    %v484 = vmul.f32 %v228, 1.5957692
    %v485 = vmul.f32 %v229, 1.5957692
    %v486 = vmul.f32 %v230, 1.5957692
    %v487 = vmul.f32 %v231, 1.5957692
    %v488 = vmul.f32 %v232, 1.5957692
    %v489 = vmul.f32 %v233, 1.5957692
    %v490 = vmul.f32 %v234, 1.5957692
    %v491 = vmul.f32 %v235, 1.5957692
    %v492 = vmul.f32 %v236, 1.5957692
    %v493 = vmul.f32 %v237, 1.5957692
    %v494 = vmul.f32 %v238, 1.5957692
    %v495 = vmul.f32 %v239, 1.5957692
    %v496 = vmul.f32 %v240, 1.5957692
    %v497 = vmul.f32 %v241, 1.5957692
    %v498 = vmul.f32 %v242, 1.5957692
    %v499 = vmul.f32 %v243, 1.5957692
    %v500 = vmul.f32 %v244, 1.5957692
    %v501 = vmul.f32 %v245, 1.5957692
    %v502 = vmul.f32 %v246, 1.5957692
    %v503 = vmul.f32 %v247, 1.5957692
    %v504 = vmul.f32 %v248, 1.5957692
    %v505 = vmul.f32 %v249, 1.5957692
    %v506 = vmul.f32 %v250, 1.5957692
    %v507 = vmul.f32 %v251, 1.5957692
    %v508 = vmul.f32 %v252, 1.5957692
    %v509 = vmul.f32 %v253, 1.5957692
    %v510 = vmul.f32 %v254, 1.5957692
    %v511 = vmul.f32 %v255, 1.5957692
    %v512 = vmul.f32 %v256, 1.5957692
    %v513 = vmul.f32 %v257, 1.5957692
    %v514 = vmul.f32 %v258, 1.5957692
    %v515 = vmul.f32 %v259, 1.5957692
    %v516 = vmul.f32 %v260, 1.5957692
    %v517 = vmul.f32 %v261, 1.5957692
    %v518 = vmul.f32 %v262, 1.5957692
    %v519 = vmul.f32 %v263, 1.5957692
    %v520 = vmul.f32 %v264, 1.5957692
    %v521 = vmul.f32 %v265, 1.5957692
    %v522 = vmul.f32 %v266, 1.5957692
    %v523 = vmul.f32 %v267, 1.5957692
    %v524 = vmul.f32 %v268, 1.5957692
    %v525 = vmul.f32 %v269, 1.5957692
    %v526 = vmul.f32 %v270, 1.5957692
    %v527 = vmul.f32 %v271, 1.5957692
    %v528 = vmul.f32 %v272, 1.5957692
    %v529 = vmul.f32 %v273, 1.5957692
    %v530 = vmul.f32 %v274, 1.5957692
    %v531 = vmul.f32 %v275, 1.5957692
    %v532 = vmul.f32 %v276, 1.5957692
    %v533 = vmul.f32 %v277, 1.5957692
    %v534 = vmul.f32 %v278, 1.5957692
    %v535 = vmul.f32 %v23, %v23
    %v536 = vmul.f32 %v24, %v24
    %v537 = vmul.f32 %v25, %v25
    %v538 = vmul.f32 %v26, %v26
    %v539 = vmul.f32 %v27, %v27
    %v540 = vmul.f32 %v28, %v28
    %v541 = vmul.f32 %v29, %v29
    %v542 = vmul.f32 %v30, %v30
    %v543 = vmul.f32 %v31, %v31
    %v544 = vmul.f32 %v32, %v32
    %v545 = vmul.f32 %v33, %v33
    %v546 = vmul.f32 %v34, %v34
    %v547 = vmul.f32 %v35, %v35
    %v548 = vmul.f32 %v36, %v36
    %v549 = vmul.f32 %v37, %v37
    %v550 = vmul.f32 %v38, %v38
    %v551 = vmul.f32 %v39, %v39
    %v552 = vmul.f32 %v40, %v40
    %v553 = vmul.f32 %v41, %v41
    %v554 = vmul.f32 %v42, %v42
    %v555 = vmul.f32 %v43, %v43
    %v556 = vmul.f32 %v44, %v44
    %v557 = vmul.f32 %v45, %v45
    %v558 = vmul.f32 %v46, %v46
    %v559 = vmul.f32 %v47, %v47
    %v560 = vmul.f32 %v48, %v48
    %v561 = vmul.f32 %v49, %v49
    %v562 = vmul.f32 %v50, %v50
    %v563 = vmul.f32 %v51, %v51
    %v564 = vmul.f32 %v52, %v52
    %v565 = vmul.f32 %v53, %v53
    %v566 = vmul.f32 %v54, %v54
    %v567 = vmul.f32 %v55, %v55
    %v568 = vmul.f32 %v56, %v56
    %v569 = vmul.f32 %v57, %v57
    %v570 = vmul.f32 %v58, %v58
    %v571 = vmul.f32 %v59, %v59
    %v572 = vmul.f32 %v60, %v60
    %v573 = vmul.f32 %v61, %v61
    %v574 = vmul.f32 %v62, %v62
    %v575 = vmul.f32 %v63, %v63
    %v576 = vmul.f32 %v64, %v64
    %v577 = vmul.f32 %v65, %v65
    %v578 = vmul.f32 %v66, %v66
    %v579 = vmul.f32 %v67, %v67
    %v580 = vmul.f32 %v68, %v68
    %v581 = vmul.f32 %v69, %v69
    %v582 = vmul.f32 %v70, %v70
    %v583 = vmul.f32 %v71, %v71
    %v584 = vmul.f32 %v72, %v72
    %v585 = vmul.f32 %v73, %v73
    %v586 = vmul.f32 %v74, %v74
    %v587 = vmul.f32 %v75, %v75
    %v588 = vmul.f32 %v76, %v76
    %v589 = vmul.f32 %v77, %v77
    %v590 = vmul.f32 %v78, %v78
    %v591 = vmul.f32 %v79, %v79
    %v592 = vmul.f32 %v80, %v80
    %v593 = vmul.f32 %v81, %v81
    %v594 = vmul.f32 %v82, %v82
    %v595 = vmul.f32 %v83, %v83
    %v596 = vmul.f32 %v84, %v84
    %v597 = vmul.f32 %v85, %v85
    %v598 = vmul.f32 %v86, %v86
    %v599 = vmul.f32 %v87, %v87
    %v600 = vmul.f32 %v88, %v88
    %v601 = vmul.f32 %v89, %v89
    %v602 = vmul.f32 %v90, %v90
    %v603 = vmul.f32 %v91, %v91
    %v604 = vmul.f32 %v92, %v92
    %v605 = vmul.f32 %v93, %v93
    %v606 = vmul.f32 %v94, %v94
    %v607 = vmul.f32 %v95, %v95
    %v608 = vmul.f32 %v96, %v96
    %v609 = vmul.f32 %v97, %v97
    %v610 = vmul.f32 %v98, %v98
    %v611 = vmul.f32 %v99, %v99
    %v612 = vmul.f32 %v100, %v100
    %v613 = vmul.f32 %v101, %v101
    %v614 = vmul.f32 %v102, %v102
    %v615 = vmul.f32 %v103, %v103
    %v616 = vmul.f32 %v104, %v104
    %v617 = vmul.f32 %v105, %v105
    %v618 = vmul.f32 %v106, %v106
    %v619 = vmul.f32 %v107, %v107
    %v620 = vmul.f32 %v108, %v108
    %v621 = vmul.f32 %v109, %v109
    %v622 = vmul.f32 %v110, %v110
    %v623 = vmul.f32 %v111, %v111
    %v624 = vmul.f32 %v112, %v112
    %v625 = vmul.f32 %v113, %v113
    %v626 = vmul.f32 %v114, %v114
    %v627 = vmul.f32 %v115, %v115
    %v628 = vmul.f32 %v116, %v116
    %v629 = vmul.f32 %v117, %v117
    %v630 = vmul.f32 %v118, %v118
    %v631 = vmul.f32 %v119, %v119
    %v632 = vmul.f32 %v120, %v120
    %v633 = vmul.f32 %v121, %v121
    %v634 = vmul.f32 %v122, %v122
    %v635 = vmul.f32 %v123, %v123
    %v636 = vmul.f32 %v124, %v124
    %v637 = vmul.f32 %v125, %v125
    %v638 = vmul.f32 %v126, %v126
    %v639 = vmul.f32 %v127, %v127
    %v640 = vmul.f32 %v128, %v128
    %v641 = vmul.f32 %v129, %v129
    %v642 = vmul.f32 %v130, %v130
    %v643 = vmul.f32 %v131, %v131
    %v644 = vmul.f32 %v132, %v132
    %v645 = vmul.f32 %v133, %v133
    %v646 = vmul.f32 %v134, %v134
    %v647 = vmul.f32 %v135, %v135
    %v648 = vmul.f32 %v136, %v136
    %v649 = vmul.f32 %v137, %v137
    %v650 = vmul.f32 %v138, %v138
    %v651 = vmul.f32 %v139, %v139
    %v652 = vmul.f32 %v140, %v140
    %v653 = vmul.f32 %v141, %v141
    %v654 = vmul.f32 %v142, %v142
    %v655 = vmul.f32 %v143, %v143
    %v656 = vmul.f32 %v144, %v144
    %v657 = vmul.f32 %v145, %v145
    %v658 = vmul.f32 %v146, %v146
    %v659 = vmul.f32 %v147, %v147
    %v660 = vmul.f32 %v148, %v148
    %v661 = vmul.f32 %v149, %v149
    %v662 = vmul.f32 %v150, %v150
    %v663 = vmul.f32 %v151, %v151
    %v664 = vmul.f32 %v152, %v152
    %v665 = vmul.f32 %v153, %v153
    %v666 = vmul.f32 %v154, %v154
    %v667 = vmul.f32 %v155, %v155
    %v668 = vmul.f32 %v156, %v156
    %v669 = vmul.f32 %v157, %v157
    %v670 = vmul.f32 %v158, %v158
    %v671 = vmul.f32 %v159, %v159
    %v672 = vmul.f32 %v160, %v160
    %v673 = vmul.f32 %v161, %v161
    %v674 = vmul.f32 %v162, %v162
    %v675 = vmul.f32 %v163, %v163
    %v676 = vmul.f32 %v164, %v164
    %v677 = vmul.f32 %v165, %v165
    %v678 = vmul.f32 %v166, %v166
    %v679 = vmul.f32 %v167, %v167
    %v680 = vmul.f32 %v168, %v168
    %v681 = vmul.f32 %v169, %v169
    %v682 = vmul.f32 %v170, %v170
    %v683 = vmul.f32 %v171, %v171
    %v684 = vmul.f32 %v172, %v172
    %v685 = vmul.f32 %v173, %v173
    %v686 = vmul.f32 %v174, %v174
    %v687 = vmul.f32 %v175, %v175
    %v688 = vmul.f32 %v176, %v176
    %v689 = vmul.f32 %v177, %v177
    %v690 = vmul.f32 %v178, %v178
    %v691 = vmul.f32 %v179, %v179
    %v692 = vmul.f32 %v180, %v180
    %v693 = vmul.f32 %v181, %v181
    %v694 = vmul.f32 %v182, %v182
    %v695 = vmul.f32 %v183, %v183
    %v696 = vmul.f32 %v184, %v184
    %v697 = vmul.f32 %v185, %v185
    %v698 = vmul.f32 %v186, %v186
    %v699 = vmul.f32 %v187, %v187
    %v700 = vmul.f32 %v188, %v188
    %v701 = vmul.f32 %v189, %v189
    %v702 = vmul.f32 %v190, %v190
    %v703 = vmul.f32 %v191, %v191
    %v704 = vmul.f32 %v192, %v192
    %v705 = vmul.f32 %v193, %v193
    %v706 = vmul.f32 %v194, %v194
    %v707 = vmul.f32 %v195, %v195
    %v708 = vmul.f32 %v196, %v196
    %v709 = vmul.f32 %v197, %v197
    %v710 = vmul.f32 %v198, %v198
    %v711 = vmul.f32 %v199, %v199
    %v712 = vmul.f32 %v200, %v200
    %v713 = vmul.f32 %v201, %v201
    %v714 = vmul.f32 %v202, %v202
    %v715 = vmul.f32 %v203, %v203
    %v716 = vmul.f32 %v204, %v204
    %v717 = vmul.f32 %v205, %v205
    %v718 = vmul.f32 %v206, %v206
    %v719 = vmul.f32 %v207, %v207
    %v720 = vmul.f32 %v208, %v208
    %v721 = vmul.f32 %v209, %v209
    %v722 = vmul.f32 %v210, %v210
    %v723 = vmul.f32 %v211, %v211
    %v724 = vmul.f32 %v212, %v212
    %v725 = vmul.f32 %v213, %v213
    %v726 = vmul.f32 %v214, %v214
    %v727 = vmul.f32 %v215, %v215
    %v728 = vmul.f32 %v216, %v216
    %v729 = vmul.f32 %v217, %v217
    %v730 = vmul.f32 %v218, %v218
    %v731 = vmul.f32 %v219, %v219
    %v732 = vmul.f32 %v220, %v220
    %v733 = vmul.f32 %v221, %v221
    %v734 = vmul.f32 %v222, %v222
    %v735 = vmul.f32 %v223, %v223
    %v736 = vmul.f32 %v224, %v224
    %v737 = vmul.f32 %v225, %v225
    %v738 = vmul.f32 %v226, %v226
    %v739 = vmul.f32 %v227, %v227
    %v740 = vmul.f32 %v228, %v228
    %v741 = vmul.f32 %v229, %v229
    %v742 = vmul.f32 %v230, %v230
    %v743 = vmul.f32 %v231, %v231
    %v744 = vmul.f32 %v232, %v232
    %v745 = vmul.f32 %v233, %v233
    %v746 = vmul.f32 %v234, %v234
    %v747 = vmul.f32 %v235, %v235
    %v748 = vmul.f32 %v236, %v236
    %v749 = vmul.f32 %v237, %v237
    %v750 = vmul.f32 %v238, %v238
    %v751 = vmul.f32 %v239, %v239
    %v752 = vmul.f32 %v240, %v240
    %v753 = vmul.f32 %v241, %v241
    %v754 = vmul.f32 %v242, %v242
    %v755 = vmul.f32 %v243, %v243
    %v756 = vmul.f32 %v244, %v244
    %v757 = vmul.f32 %v245, %v245
    %v758 = vmul.f32 %v246, %v246
    %v759 = vmul.f32 %v247, %v247
    %v760 = vmul.f32 %v248, %v248
    %v761 = vmul.f32 %v249, %v249
    %v762 = vmul.f32 %v250, %v250
    %v763 = vmul.f32 %v251, %v251
    %v764 = vmul.f32 %v252, %v252
    %v765 = vmul.f32 %v253, %v253
    %v766 = vmul.f32 %v254, %v254
    %v767 = vmul.f32 %v255, %v255
    %v768 = vmul.f32 %v256, %v256
    %v769 = vmul.f32 %v257, %v257
    %v770 = vmul.f32 %v258, %v258
    %v771 = vmul.f32 %v259, %v259
    %v772 = vmul.f32 %v260, %v260
    %v773 = vmul.f32 %v261, %v261
    %v774 = vmul.f32 %v262, %v262
    %v775 = vmul.f32 %v263, %v263
    %v776 = vmul.f32 %v264, %v264
    %v777 = vmul.f32 %v265, %v265
    %v778 = vmul.f32 %v266, %v266
    %v779 = vmul.f32 %v267, %v267
    %v780 = vmul.f32 %v268, %v268
    %v781 = vmul.f32 %v269, %v269
    %v782 = vmul.f32 %v270, %v270
    %v783 = vmul.f32 %v271, %v271
    %v784 = vmul.f32 %v272, %v272
    %v785 = vmul.f32 %v273, %v273
    %v786 = vmul.f32 %v274, %v274
    %v787 = vmul.f32 %v275, %v275
    %v788 = vmul.f32 %v276, %v276
    %v789 = vmul.f32 %v277, %v277
    %v790 = vmul.f32 %v278, %v278
    %v791 = vmul.f32 %v535, 0.044715
    %v792 = vmul.f32 %v536, 0.044715
    %v793 = vmul.f32 %v537, 0.044715
    %v794 = vmul.f32 %v538, 0.044715
    %v795 = vmul.f32 %v539, 0.044715
    %v796 = vmul.f32 %v540, 0.044715
    %v797 = vmul.f32 %v541, 0.044715
    %v798 = vmul.f32 %v542, 0.044715
    %v799 = vmul.f32 %v543, 0.044715
    %v800 = vmul.f32 %v544, 0.044715
    %v801 = vmul.f32 %v545, 0.044715
    %v802 = vmul.f32 %v546, 0.044715
    %v803 = vmul.f32 %v547, 0.044715
    %v804 = vmul.f32 %v548, 0.044715
    %v805 = vmul.f32 %v549, 0.044715
    %v806 = vmul.f32 %v550, 0.044715
    %v807 = vmul.f32 %v551, 0.044715
    %v808 = vmul.f32 %v552, 0.044715
    %v809 = vmul.f32 %v553, 0.044715
    %v810 = vmul.f32 %v554, 0.044715
    %v811 = vmul.f32 %v555, 0.044715
    %v812 = vmul.f32 %v556, 0.044715
    %v813 = vmul.f32 %v557, 0.044715
    %v814 = vmul.f32 %v558, 0.044715
    %v815 = vmul.f32 %v559, 0.044715
    %v816 = vmul.f32 %v560, 0.044715
    %v817 = vmul.f32 %v561, 0.044715
    %v818 = vmul.f32 %v562, 0.044715
    %v819 = vmul.f32 %v563, 0.044715
    %v820 = vmul.f32 %v564, 0.044715
    %v821 = vmul.f32 %v565, 0.044715
    %v822 = vmul.f32 %v566, 0.044715
    %v823 = vmul.f32 %v567, 0.044715
    %v824 = vmul.f32 %v568, 0.044715
    %v825 = vmul.f32 %v569, 0.044715
    %v826 = vmul.f32 %v570, 0.044715
    %v827 = vmul.f32 %v571, 0.044715
    %v828 = vmul.f32 %v572, 0.044715
    %v829 = vmul.f32 %v573, 0.044715
    %v830 = vmul.f32 %v574, 0.044715
    %v831 = vmul.f32 %v575, 0.044715
    %v832 = vmul.f32 %v576, 0.044715
    %v833 = vmul.f32 %v577, 0.044715
    %v834 = vmul.f32 %v578, 0.044715
    %v835 = vmul.f32 %v579, 0.044715
    %v836 = vmul.f32 %v580, 0.044715
    %v837 = vmul.f32 %v581, 0.044715
    %v838 = vmul.f32 %v582, 0.044715
    %v839 = vmul.f32 %v583, 0.044715
    %v840 = vmul.f32 %v584, 0.044715
    %v841 = vmul.f32 %v585, 0.044715
    %v842 = vmul.f32 %v586, 0.044715
    %v843 = vmul.f32 %v587, 0.044715
    %v844 = vmul.f32 %v588, 0.044715
    %v845 = vmul.f32 %v589, 0.044715
    %v846 = vmul.f32 %v590, 0.044715
    %v847 = vmul.f32 %v591, 0.044715
    %v848 = vmul.f32 %v592, 0.044715
    %v849 = vmul.f32 %v593, 0.044715
    %v850 = vmul.f32 %v594, 0.044715
    %v851 = vmul.f32 %v595, 0.044715
    %v852 = vmul.f32 %v596, 0.044715
    %v853 = vmul.f32 %v597, 0.044715
    %v854 = vmul.f32 %v598, 0.044715
    %v855 = vmul.f32 %v599, 0.044715
    %v856 = vmul.f32 %v600, 0.044715
    %v857 = vmul.f32 %v601, 0.044715
    %v858 = vmul.f32 %v602, 0.044715
    %v859 = vmul.f32 %v603, 0.044715
    %v860 = vmul.f32 %v604, 0.044715
    %v861 = vmul.f32 %v605, 0.044715
    %v862 = vmul.f32 %v606, 0.044715
    %v863 = vmul.f32 %v607, 0.044715
    %v864 = vmul.f32 %v608, 0.044715
    %v865 = vmul.f32 %v609, 0.044715
    %v866 = vmul.f32 %v610, 0.044715
    %v867 = vmul.f32 %v611, 0.044715
    %v868 = vmul.f32 %v612, 0.044715
    %v869 = vmul.f32 %v613, 0.044715
    %v870 = vmul.f32 %v614, 0.044715
    %v871 = vmul.f32 %v615, 0.044715
    %v872 = vmul.f32 %v616, 0.044715
    %v873 = vmul.f32 %v617, 0.044715
    %v874 = vmul.f32 %v618, 0.044715
    %v875 = vmul.f32 %v619, 0.044715
    %v876 = vmul.f32 %v620, 0.044715
    %v877 = vmul.f32 %v621, 0.044715
    %v878 = vmul.f32 %v622, 0.044715
    %v879 = vmul.f32 %v623, 0.044715
    %v880 = vmul.f32 %v624, 0.044715
    %v881 = vmul.f32 %v625, 0.044715
    %v882 = vmul.f32 %v626, 0.044715
    %v883 = vmul.f32 %v627, 0.044715
    %v884 = vmul.f32 %v628, 0.044715
    %v885 = vmul.f32 %v629, 0.044715
    %v886 = vmul.f32 %v630, 0.044715
    %v887 = vmul.f32 %v631, 0.044715
    %v888 = vmul.f32 %v632, 0.044715
    %v889 = vmul.f32 %v633, 0.044715
    %v890 = vmul.f32 %v634, 0.044715
    %v891 = vmul.f32 %v635, 0.044715
    %v892 = vmul.f32 %v636, 0.044715
    %v893 = vmul.f32 %v637, 0.044715
    %v894 = vmul.f32 %v638, 0.044715
    %v895 = vmul.f32 %v639, 0.044715
    %v896 = vmul.f32 %v640, 0.044715
    %v897 = vmul.f32 %v641, 0.044715
    %v898 = vmul.f32 %v642, 0.044715
    %v899 = vmul.f32 %v643, 0.044715
    %v900 = vmul.f32 %v644, 0.044715
    %v901 = vmul.f32 %v645, 0.044715
    %v902 = vmul.f32 %v646, 0.044715
    %v903 = vmul.f32 %v647, 0.044715
    %v904 = vmul.f32 %v648, 0.044715
    %v905 = vmul.f32 %v649, 0.044715
    %v906 = vmul.f32 %v650, 0.044715
    %v907 = vmul.f32 %v651, 0.044715
    %v908 = vmul.f32 %v652, 0.044715
    %v909 = vmul.f32 %v653, 0.044715
    %v910 = vmul.f32 %v654, 0.044715
    %v911 = vmul.f32 %v655, 0.044715
    %v912 = vmul.f32 %v656, 0.044715
    %v913 = vmul.f32 %v657, 0.044715
    %v914 = vmul.f32 %v658, 0.044715
    %v915 = vmul.f32 %v659, 0.044715
    %v916 = vmul.f32 %v660, 0.044715
    %v917 = vmul.f32 %v661, 0.044715
    %v918 = vmul.f32 %v662, 0.044715
    %v919 = vmul.f32 %v663, 0.044715
    %v920 = vmul.f32 %v664, 0.044715
    %v921 = vmul.f32 %v665, 0.044715
    %v922 = vmul.f32 %v666, 0.044715
    %v923 = vmul.f32 %v667, 0.044715
    %v924 = vmul.f32 %v668, 0.044715
    %v925 = vmul.f32 %v669, 0.044715
    %v926 = vmul.f32 %v670, 0.044715
    %v927 = vmul.f32 %v671, 0.044715
    %v928 = vmul.f32 %v672, 0.044715
    %v929 = vmul.f32 %v673, 0.044715
    %v930 = vmul.f32 %v674, 0.044715
    %v931 = vmul.f32 %v675, 0.044715
    %v932 = vmul.f32 %v676, 0.044715
    %v933 = vmul.f32 %v677, 0.044715
    %v934 = vmul.f32 %v678, 0.044715
    %v935 = vmul.f32 %v679, 0.044715
    %v936 = vmul.f32 %v680, 0.044715
    %v937 = vmul.f32 %v681, 0.044715
    %v938 = vmul.f32 %v682, 0.044715
    %v939 = vmul.f32 %v683, 0.044715
    %v940 = vmul.f32 %v684, 0.044715
    %v941 = vmul.f32 %v685, 0.044715
    %v942 = vmul.f32 %v686, 0.044715
    %v943 = vmul.f32 %v687, 0.044715
    %v944 = vmul.f32 %v688, 0.044715
    %v945 = vmul.f32 %v689, 0.044715
    %v946 = vmul.f32 %v690, 0.044715
    %v947 = vmul.f32 %v691, 0.044715
    %v948 = vmul.f32 %v692, 0.044715
    %v949 = vmul.f32 %v693, 0.044715
    %v950 = vmul.f32 %v694, 0.044715
    %v951 = vmul.f32 %v695, 0.044715
    %v952 = vmul.f32 %v696, 0.044715
    %v953 = vmul.f32 %v697, 0.044715
    %v954 = vmul.f32 %v698, 0.044715
    %v955 = vmul.f32 %v699, 0.044715
    %v956 = vmul.f32 %v700, 0.044715
    %v957 = vmul.f32 %v701, 0.044715
    %v958 = vmul.f32 %v702, 0.044715
    %v959 = vmul.f32 %v703, 0.044715
    %v960 = vmul.f32 %v704, 0.044715
    %v961 = vmul.f32 %v705, 0.044715
    %v962 = vmul.f32 %v706, 0.044715
    %v963 = vmul.f32 %v707, 0.044715
    %v964 = vmul.f32 %v708, 0.044715
    %v965 = vmul.f32 %v709, 0.044715
    %v966 = vmul.f32 %v710, 0.044715
    %v967 = vmul.f32 %v711, 0.044715
    %v968 = vmul.f32 %v712, 0.044715
    %v969 = vmul.f32 %v713, 0.044715
    %v970 = vmul.f32 %v714, 0.044715
    %v971 = vmul.f32 %v715, 0.044715
    %v972 = vmul.f32 %v716, 0.044715
    %v973 = vmul.f32 %v717, 0.044715
    %v974 = vmul.f32 %v718, 0.044715
    %v975 = vmul.f32 %v719, 0.044715
    %v976 = vmul.f32 %v720, 0.044715
    %v977 = vmul.f32 %v721, 0.044715
    %v978 = vmul.f32 %v722, 0.044715
    %v979 = vmul.f32 %v723, 0.044715
    %v980 = vmul.f32 %v724, 0.044715
    %v981 = vmul.f32 %v725, 0.044715
    %v982 = vmul.f32 %v726, 0.044715
    %v983 = vmul.f32 %v727, 0.044715
    %v984 = vmul.f32 %v728, 0.044715
    %v985 = vmul.f32 %v729, 0.044715
    %v986 = vmul.f32 %v730, 0.044715
    %v987 = vmul.f32 %v731, 0.044715
    %v988 = vmul.f32 %v732, 0.044715
    %v989 = vmul.f32 %v733, 0.044715
    %v990 = vmul.f32 %v734, 0.044715
    %v991 = vmul.f32 %v735, 0.044715
    %v992 = vmul.f32 %v736, 0.044715
    %v993 = vmul.f32 %v737, 0.044715
    %v994 = vmul.f32 %v738, 0.044715
    %v995 = vmul.f32 %v739, 0.044715
    %v996 = vmul.f32 %v740, 0.044715
    %v997 = vmul.f32 %v741, 0.044715
    %v998 = vmul.f32 %v742, 0.044715
    %v999 = vmul.f32 %v743, 0.044715
    %v1000 = vmul.f32 %v744, 0.044715
    %v1001 = vmul.f32 %v745, 0.044715
    %v1002 = vmul.f32 %v746, 0.044715
    %v1003 = vmul.f32 %v747, 0.044715
    %v1004 = vmul.f32 %v748, 0.044715
    %v1005 = vmul.f32 %v749, 0.044715
    %v1006 = vmul.f32 %v750, 0.044715
    %v1007 = vmul.f32 %v751, 0.044715
    %v1008 = vmul.f32 %v752, 0.044715
    %v1009 = vmul.f32 %v753, 0.044715
    %v1010 = vmul.f32 %v754, 0.044715
    %v1011 = vmul.f32 %v755, 0.044715
    %v1012 = vmul.f32 %v756, 0.044715
    %v1013 = vmul.f32 %v757, 0.044715
    %v1014 = vmul.f32 %v758, 0.044715
    %v1015 = vmul.f32 %v759, 0.044715
    %v1016 = vmul.f32 %v760, 0.044715
    %v1017 = vmul.f32 %v761, 0.044715
    %v1018 = vmul.f32 %v762, 0.044715
    %v1019 = vmul.f32 %v763, 0.044715
    %v1020 = vmul.f32 %v764, 0.044715
    %v1021 = vmul.f32 %v765, 0.044715
    %v1022 = vmul.f32 %v766, 0.044715
    %v1023 = vmul.f32 %v767, 0.044715
    %v1024 = vmul.f32 %v768, 0.044715
    %v1025 = vmul.f32 %v769, 0.044715
    %v1026 = vmul.f32 %v770, 0.044715
    %v1027 = vmul.f32 %v771, 0.044715
    %v1028 = vmul.f32 %v772, 0.044715
    %v1029 = vmul.f32 %v773, 0.044715
    %v1030 = vmul.f32 %v774, 0.044715
    %v1031 = vmul.f32 %v775, 0.044715
    %v1032 = vmul.f32 %v776, 0.044715
    %v1033 = vmul.f32 %v777, 0.044715
    %v1034 = vmul.f32 %v778, 0.044715
    %v1035 = vmul.f32 %v779, 0.044715
    %v1036 = vmul.f32 %v780, 0.044715
    %v1037 = vmul.f32 %v781, 0.044715
    %v1038 = vmul.f32 %v782, 0.044715
    %v1039 = vmul.f32 %v783, 0.044715
    %v1040 = vmul.f32 %v784, 0.044715
    %v1041 = vmul.f32 %v785, 0.044715
    %v1042 = vmul.f32 %v786, 0.044715
    %v1043 = vmul.f32 %v787, 0.044715
    %v1044 = vmul.f32 %v788, 0.044715
    %v1045 = vmul.f32 %v789, 0.044715
    %v1046 = vmul.f32 %v790, 0.044715
    %v1047 = vadd.f32 %v791, 1.0
    %v1048 = vadd.f32 %v792, 1.0
    %v1049 = vadd.f32 %v793, 1.0
    %v1050 = vadd.f32 %v794, 1.0
    %v1051 = vadd.f32 %v795, 1.0
    %v1052 = vadd.f32 %v796, 1.0
    %v1053 = vadd.f32 %v797, 1.0
    %v1054 = vadd.f32 %v798, 1.0
    %v1055 = vadd.f32 %v799, 1.0
    %v1056 = vadd.f32 %v800, 1.0
    %v1057 = vadd.f32 %v801, 1.0
    %v1058 = vadd.f32 %v802, 1.0
    %v1059 = vadd.f32 %v803, 1.0
    %v1060 = vadd.f32 %v804, 1.0
    %v1061 = vadd.f32 %v805, 1.0
    %v1062 = vadd.f32 %v806, 1.0
    %v1063 = vadd.f32 %v807, 1.0
    %v1064 = vadd.f32 %v808, 1.0
    %v1065 = vadd.f32 %v809, 1.0
    %v1066 = vadd.f32 %v810, 1.0
    %v1067 = vadd.f32 %v811, 1.0
    %v1068 = vadd.f32 %v812, 1.0
    %v1069 = vadd.f32 %v813, 1.0
    %v1070 = vadd.f32 %v814, 1.0
    %v1071 = vadd.f32 %v815, 1.0
    %v1072 = vadd.f32 %v816, 1.0
    %v1073 = vadd.f32 %v817, 1.0
    %v1074 = vadd.f32 %v818, 1.0
    %v1075 = vadd.f32 %v819, 1.0
    %v1076 = vadd.f32 %v820, 1.0
    %v1077 = vadd.f32 %v821, 1.0
    %v1078 = vadd.f32 %v822, 1.0
    %v1079 = vadd.f32 %v823, 1.0
    %v1080 = vadd.f32 %v824, 1.0
    %v1081 = vadd.f32 %v825, 1.0
    %v1082 = vadd.f32 %v826, 1.0
    %v1083 = vadd.f32 %v827, 1.0
    %v1084 = vadd.f32 %v828, 1.0
    %v1085 = vadd.f32 %v829, 1.0
    %v1086 = vadd.f32 %v830, 1.0
    %v1087 = vadd.f32 %v831, 1.0
    %v1088 = vadd.f32 %v832, 1.0
    %v1089 = vadd.f32 %v833, 1.0
    %v1090 = vadd.f32 %v834, 1.0
    %v1091 = vadd.f32 %v835, 1.0
    %v1092 = vadd.f32 %v836, 1.0
    %v1093 = vadd.f32 %v837, 1.0
    %v1094 = vadd.f32 %v838, 1.0
    %v1095 = vadd.f32 %v839, 1.0
    %v1096 = vadd.f32 %v840, 1.0
    %v1097 = vadd.f32 %v841, 1.0
    %v1098 = vadd.f32 %v842, 1.0
    %v1099 = vadd.f32 %v843, 1.0
    %v1100 = vadd.f32 %v844, 1.0
    %v1101 = vadd.f32 %v845, 1.0
    %v1102 = vadd.f32 %v846, 1.0
    %v1103 = vadd.f32 %v847, 1.0
    %v1104 = vadd.f32 %v848, 1.0
    %v1105 = vadd.f32 %v849, 1.0
    %v1106 = vadd.f32 %v850, 1.0
    %v1107 = vadd.f32 %v851, 1.0
    %v1108 = vadd.f32 %v852, 1.0
    %v1109 = vadd.f32 %v853, 1.0
    %v1110 = vadd.f32 %v854, 1.0
    %v1111 = vadd.f32 %v855, 1.0
    %v1112 = vadd.f32 %v856, 1.0
    %v1113 = vadd.f32 %v857, 1.0
    %v1114 = vadd.f32 %v858, 1.0
    %v1115 = vadd.f32 %v859, 1.0
    %v1116 = vadd.f32 %v860, 1.0
    %v1117 = vadd.f32 %v861, 1.0
    %v1118 = vadd.f32 %v862, 1.0
    %v1119 = vadd.f32 %v863, 1.0
    %v1120 = vadd.f32 %v864, 1.0
    %v1121 = vadd.f32 %v865, 1.0
    %v1122 = vadd.f32 %v866, 1.0
    %v1123 = vadd.f32 %v867, 1.0
    %v1124 = vadd.f32 %v868, 1.0
    %v1125 = vadd.f32 %v869, 1.0
    %v1126 = vadd.f32 %v870, 1.0
    %v1127 = vadd.f32 %v871, 1.0
    %v1128 = vadd.f32 %v872, 1.0
    %v1129 = vadd.f32 %v873, 1.0
    %v1130 = vadd.f32 %v874, 1.0
    %v1131 = vadd.f32 %v875, 1.0
    %v1132 = vadd.f32 %v876, 1.0
    %v1133 = vadd.f32 %v877, 1.0
    %v1134 = vadd.f32 %v878, 1.0
    %v1135 = vadd.f32 %v879, 1.0
    %v1136 = vadd.f32 %v880, 1.0
    %v1137 = vadd.f32 %v881, 1.0
    %v1138 = vadd.f32 %v882, 1.0
    %v1139 = vadd.f32 %v883, 1.0
    %v1140 = vadd.f32 %v884, 1.0
    %v1141 = vadd.f32 %v885, 1.0
    %v1142 = vadd.f32 %v886, 1.0
    %v1143 = vadd.f32 %v887, 1.0
    %v1144 = vadd.f32 %v888, 1.0
    %v1145 = vadd.f32 %v889, 1.0
    %v1146 = vadd.f32 %v890, 1.0
    %v1147 = vadd.f32 %v891, 1.0
    %v1148 = vadd.f32 %v892, 1.0
    %v1149 = vadd.f32 %v893, 1.0
    %v1150 = vadd.f32 %v894, 1.0
    %v1151 = vadd.f32 %v895, 1.0
    %v1152 = vadd.f32 %v896, 1.0
    %v1153 = vadd.f32 %v897, 1.0
    %v1154 = vadd.f32 %v898, 1.0
    %v1155 = vadd.f32 %v899, 1.0
    %v1156 = vadd.f32 %v900, 1.0
    %v1157 = vadd.f32 %v901, 1.0
    %v1158 = vadd.f32 %v902, 1.0
    %v1159 = vadd.f32 %v903, 1.0
    %v1160 = vadd.f32 %v904, 1.0
    %v1161 = vadd.f32 %v905, 1.0
    %v1162 = vadd.f32 %v906, 1.0
    %v1163 = vadd.f32 %v907, 1.0
    %v1164 = vadd.f32 %v908, 1.0
    %v1165 = vadd.f32 %v909, 1.0
    %v1166 = vadd.f32 %v910, 1.0
    %v1167 = vadd.f32 %v911, 1.0
    %v1168 = vadd.f32 %v912, 1.0
    %v1169 = vadd.f32 %v913, 1.0
    %v1170 = vadd.f32 %v914, 1.0
    %v1171 = vadd.f32 %v915, 1.0
    %v1172 = vadd.f32 %v916, 1.0
    %v1173 = vadd.f32 %v917, 1.0
    %v1174 = vadd.f32 %v918, 1.0
    %v1175 = vadd.f32 %v919, 1.0
    %v1176 = vadd.f32 %v920, 1.0
    %v1177 = vadd.f32 %v921, 1.0
    %v1178 = vadd.f32 %v922, 1.0
    %v1179 = vadd.f32 %v923, 1.0
    %v1180 = vadd.f32 %v924, 1.0
    %v1181 = vadd.f32 %v925, 1.0
    %v1182 = vadd.f32 %v926, 1.0
    %v1183 = vadd.f32 %v927, 1.0
    %v1184 = vadd.f32 %v928, 1.0
    %v1185 = vadd.f32 %v929, 1.0
    %v1186 = vadd.f32 %v930, 1.0
    %v1187 = vadd.f32 %v931, 1.0
    %v1188 = vadd.f32 %v932, 1.0
    %v1189 = vadd.f32 %v933, 1.0
    %v1190 = vadd.f32 %v934, 1.0
    %v1191 = vadd.f32 %v935, 1.0
    %v1192 = vadd.f32 %v936, 1.0
    %v1193 = vadd.f32 %v937, 1.0
    %v1194 = vadd.f32 %v938, 1.0
    %v1195 = vadd.f32 %v939, 1.0
    %v1196 = vadd.f32 %v940, 1.0
    %v1197 = vadd.f32 %v941, 1.0
    %v1198 = vadd.f32 %v942, 1.0
    %v1199 = vadd.f32 %v943, 1.0
    %v1200 = vadd.f32 %v944, 1.0
    %v1201 = vadd.f32 %v945, 1.0
    %v1202 = vadd.f32 %v946, 1.0
    %v1203 = vadd.f32 %v947, 1.0
    %v1204 = vadd.f32 %v948, 1.0
    %v1205 = vadd.f32 %v949, 1.0
    %v1206 = vadd.f32 %v950, 1.0
    %v1207 = vadd.f32 %v951, 1.0
    %v1208 = vadd.f32 %v952, 1.0
    %v1209 = vadd.f32 %v953, 1.0
    %v1210 = vadd.f32 %v954, 1.0
    %v1211 = vadd.f32 %v955, 1.0
    %v1212 = vadd.f32 %v956, 1.0
    %v1213 = vadd.f32 %v957, 1.0
    %v1214 = vadd.f32 %v958, 1.0
    %v1215 = vadd.f32 %v959, 1.0
    %v1216 = vadd.f32 %v960, 1.0
    %v1217 = vadd.f32 %v961, 1.0
    %v1218 = vadd.f32 %v962, 1.0
    %v1219 = vadd.f32 %v963, 1.0
    %v1220 = vadd.f32 %v964, 1.0
    %v1221 = vadd.f32 %v965, 1.0
    %v1222 = vadd.f32 %v966, 1.0
    %v1223 = vadd.f32 %v967, 1.0
    %v1224 = vadd.f32 %v968, 1.0
    %v1225 = vadd.f32 %v969, 1.0
    %v1226 = vadd.f32 %v970, 1.0
    %v1227 = vadd.f32 %v971, 1.0
    %v1228 = vadd.f32 %v972, 1.0
    %v1229 = vadd.f32 %v973, 1.0
    %v1230 = vadd.f32 %v974, 1.0
    %v1231 = vadd.f32 %v975, 1.0
    %v1232 = vadd.f32 %v976, 1.0
    %v1233 = vadd.f32 %v977, 1.0
    %v1234 = vadd.f32 %v978, 1.0
    %v1235 = vadd.f32 %v979, 1.0
    %v1236 = vadd.f32 %v980, 1.0
    %v1237 = vadd.f32 %v981, 1.0
    %v1238 = vadd.f32 %v982, 1.0
    %v1239 = vadd.f32 %v983, 1.0
    %v1240 = vadd.f32 %v984, 1.0
    %v1241 = vadd.f32 %v985, 1.0
    %v1242 = vadd.f32 %v986, 1.0
    %v1243 = vadd.f32 %v987, 1.0
    %v1244 = vadd.f32 %v988, 1.0
    %v1245 = vadd.f32 %v989, 1.0
    %v1246 = vadd.f32 %v990, 1.0
    %v1247 = vadd.f32 %v991, 1.0
    %v1248 = vadd.f32 %v992, 1.0
    %v1249 = vadd.f32 %v993, 1.0
    %v1250 = vadd.f32 %v994, 1.0
    %v1251 = vadd.f32 %v995, 1.0
    %v1252 = vadd.f32 %v996, 1.0
    %v1253 = vadd.f32 %v997, 1.0
    %v1254 = vadd.f32 %v998, 1.0
    %v1255 = vadd.f32 %v999, 1.0
    %v1256 = vadd.f32 %v1000, 1.0
    %v1257 = vadd.f32 %v1001, 1.0
    %v1258 = vadd.f32 %v1002, 1.0
    %v1259 = vadd.f32 %v1003, 1.0
    %v1260 = vadd.f32 %v1004, 1.0
    %v1261 = vadd.f32 %v1005, 1.0
    %v1262 = vadd.f32 %v1006, 1.0
    %v1263 = vadd.f32 %v1007, 1.0
    %v1264 = vadd.f32 %v1008, 1.0
    %v1265 = vadd.f32 %v1009, 1.0
    %v1266 = vadd.f32 %v1010, 1.0
    %v1267 = vadd.f32 %v1011, 1.0
    %v1268 = vadd.f32 %v1012, 1.0
    %v1269 = vadd.f32 %v1013, 1.0
    %v1270 = vadd.f32 %v1014, 1.0
    %v1271 = vadd.f32 %v1015, 1.0
    %v1272 = vadd.f32 %v1016, 1.0
    %v1273 = vadd.f32 %v1017, 1.0
    %v1274 = vadd.f32 %v1018, 1.0
    %v1275 = vadd.f32 %v1019, 1.0
    %v1276 = vadd.f32 %v1020, 1.0
    %v1277 = vadd.f32 %v1021, 1.0
    %v1278 = vadd.f32 %v1022, 1.0
    %v1279 = vadd.f32 %v1023, 1.0
    %v1280 = vadd.f32 %v1024, 1.0
    %v1281 = vadd.f32 %v1025, 1.0
    %v1282 = vadd.f32 %v1026, 1.0
    %v1283 = vadd.f32 %v1027, 1.0
    %v1284 = vadd.f32 %v1028, 1.0
    %v1285 = vadd.f32 %v1029, 1.0
    %v1286 = vadd.f32 %v1030, 1.0
    %v1287 = vadd.f32 %v1031, 1.0
    %v1288 = vadd.f32 %v1032, 1.0
    %v1289 = vadd.f32 %v1033, 1.0
    %v1290 = vadd.f32 %v1034, 1.0
    %v1291 = vadd.f32 %v1035, 1.0
    %v1292 = vadd.f32 %v1036, 1.0
    %v1293 = vadd.f32 %v1037, 1.0
    %v1294 = vadd.f32 %v1038, 1.0
    %v1295 = vadd.f32 %v1039, 1.0
    %v1296 = vadd.f32 %v1040, 1.0
    %v1297 = vadd.f32 %v1041, 1.0
    %v1298 = vadd.f32 %v1042, 1.0
    %v1299 = vadd.f32 %v1043, 1.0
    %v1300 = vadd.f32 %v1044, 1.0
    %v1301 = vadd.f32 %v1045, 1.0
    %v1302 = vadd.f32 %v1046, 1.0
    %v1303 = vmul.f32 %v279, %v1047
    %v1304 = vmul.f32 %v280, %v1048
    %v1305 = vmul.f32 %v281, %v1049
    %v1306 = vmul.f32 %v282, %v1050
    %v1307 = vmul.f32 %v283, %v1051
    %v1308 = vmul.f32 %v284, %v1052
    %v1309 = vmul.f32 %v285, %v1053
    %v1310 = vmul.f32 %v286, %v1054
    %v1311 = vmul.f32 %v287, %v1055
    %v1312 = vmul.f32 %v288, %v1056
    %v1313 = vmul.f32 %v289, %v1057
    %v1314 = vmul.f32 %v290, %v1058
    %v1315 = vmul.f32 %v291, %v1059
    %v1316 = vmul.f32 %v292, %v1060
    %v1317 = vmul.f32 %v293, %v1061
    %v1318 = vmul.f32 %v294, %v1062
    %v1319 = vmul.f32 %v295, %v1063
    %v1320 = vmul.f32 %v296, %v1064
    %v1321 = vmul.f32 %v297, %v1065
    %v1322 = vmul.f32 %v298, %v1066
    %v1323 = vmul.f32 %v299, %v1067
    %v1324 = vmul.f32 %v300, %v1068
    %v1325 = vmul.f32 %v301, %v1069
    %v1326 = vmul.f32 %v302, %v1070
    %v1327 = vmul.f32 %v303, %v1071
    %v1328 = vmul.f32 %v304, %v1072
    %v1329 = vmul.f32 %v305, %v1073
    %v1330 = vmul.f32 %v306, %v1074
    %v1331 = vmul.f32 %v307, %v1075
    %v1332 = vmul.f32 %v308, %v1076
    %v1333 = vmul.f32 %v309, %v1077
    %v1334 = vmul.f32 %v310, %v1078
    %v1335 = vmul.f32 %v311, %v1079
    %v1336 = vmul.f32 %v312, %v1080
    %v1337 = vmul.f32 %v313, %v1081
    %v1338 = vmul.f32 %v314, %v1082
    %v1339 = vmul.f32 %v315, %v1083
    %v1340 = vmul.f32 %v316, %v1084
    %v1341 = vmul.f32 %v317, %v1085
    %v1342 = vmul.f32 %v318, %v1086
    %v1343 = vmul.f32 %v319, %v1087
    %v1344 = vmul.f32 %v320, %v1088
    %v1345 = vmul.f32 %v321, %v1089
    %v1346 = vmul.f32 %v322, %v1090
    %v1347 = vmul.f32 %v323, %v1091
    %v1348 = vmul.f32 %v324, %v1092
    %v1349 = vmul.f32 %v325, %v1093
    %v1350 = vmul.f32 %v326, %v1094
    %v1351 = vmul.f32 %v327, %v1095
    %v1352 = vmul.f32 %v328, %v1096
    %v1353 = vmul.f32 %v329, %v1097
    %v1354 = vmul.f32 %v330, %v1098
    %v1355 = vmul.f32 %v331, %v1099
    %v1356 = vmul.f32 %v332, %v1100
    %v1357 = vmul.f32 %v333, %v1101
    %v1358 = vmul.f32 %v334, %v1102
    %v1359 = vmul.f32 %v335, %v1103
    %v1360 = vmul.f32 %v336, %v1104
    %v1361 = vmul.f32 %v337, %v1105
    %v1362 = vmul.f32 %v338, %v1106
    %v1363 = vmul.f32 %v339, %v1107
    %v1364 = vmul.f32 %v340, %v1108
    %v1365 = vmul.f32 %v341, %v1109
    %v1366 = vmul.f32 %v342, %v1110
    %v1367 = vmul.f32 %v343, %v1111
    %v1368 = vmul.f32 %v344, %v1112
    %v1369 = vmul.f32 %v345, %v1113
    %v1370 = vmul.f32 %v346, %v1114
    %v1371 = vmul.f32 %v347, %v1115
    %v1372 = vmul.f32 %v348, %v1116
    %v1373 = vmul.f32 %v349, %v1117
    %v1374 = vmul.f32 %v350, %v1118
    %v1375 = vmul.f32 %v351, %v1119
    %v1376 = vmul.f32 %v352, %v1120
    %v1377 = vmul.f32 %v353, %v1121
    %v1378 = vmul.f32 %v354, %v1122
    %v1379 = vmul.f32 %v355, %v1123
    %v1380 = vmul.f32 %v356, %v1124
    %v1381 = vmul.f32 %v357, %v1125
    %v1382 = vmul.f32 %v358, %v1126
    %v1383 = vmul.f32 %v359, %v1127
    %v1384 = vmul.f32 %v360, %v1128
    %v1385 = vmul.f32 %v361, %v1129
    %v1386 = vmul.f32 %v362, %v1130
    %v1387 = vmul.f32 %v363, %v1131
    %v1388 = vmul.f32 %v364, %v1132
    %v1389 = vmul.f32 %v365, %v1133
    %v1390 = vmul.f32 %v366, %v1134
    %v1391 = vmul.f32 %v367, %v1135
    %v1392 = vmul.f32 %v368, %v1136
    %v1393 = vmul.f32 %v369, %v1137
    %v1394 = vmul.f32 %v370, %v1138
    %v1395 = vmul.f32 %v371, %v1139
    %v1396 = vmul.f32 %v372, %v1140
    %v1397 = vmul.f32 %v373, %v1141
    %v1398 = vmul.f32 %v374, %v1142
    %v1399 = vmul.f32 %v375, %v1143
    %v1400 = vmul.f32 %v376, %v1144
    %v1401 = vmul.f32 %v377, %v1145
    %v1402 = vmul.f32 %v378, %v1146
    %v1403 = vmul.f32 %v379, %v1147
    %v1404 = vmul.f32 %v380, %v1148
    %v1405 = vmul.f32 %v381, %v1149
    %v1406 = vmul.f32 %v382, %v1150
    %v1407 = vmul.f32 %v383, %v1151
    %v1408 = vmul.f32 %v384, %v1152
    %v1409 = vmul.f32 %v385, %v1153
    %v1410 = vmul.f32 %v386, %v1154
    %v1411 = vmul.f32 %v387, %v1155
    %v1412 = vmul.f32 %v388, %v1156
    %v1413 = vmul.f32 %v389, %v1157
    %v1414 = vmul.f32 %v390, %v1158
    %v1415 = vmul.f32 %v391, %v1159
    %v1416 = vmul.f32 %v392, %v1160
    %v1417 = vmul.f32 %v393, %v1161
    %v1418 = vmul.f32 %v394, %v1162
    %v1419 = vmul.f32 %v395, %v1163
    %v1420 = vmul.f32 %v396, %v1164
    %v1421 = vmul.f32 %v397, %v1165
    %v1422 = vmul.f32 %v398, %v1166
    %v1423 = vmul.f32 %v399, %v1167
    %v1424 = vmul.f32 %v400, %v1168
    %v1425 = vmul.f32 %v401, %v1169
    %v1426 = vmul.f32 %v402, %v1170
    %v1427 = vmul.f32 %v403, %v1171
    %v1428 = vmul.f32 %v404, %v1172
    %v1429 = vmul.f32 %v405, %v1173
    %v1430 = vmul.f32 %v406, %v1174
    %v1431 = vmul.f32 %v407, %v1175
    %v1432 = vmul.f32 %v408, %v1176
    %v1433 = vmul.f32 %v409, %v1177
    %v1434 = vmul.f32 %v410, %v1178
    %v1435 = vmul.f32 %v411, %v1179
    %v1436 = vmul.f32 %v412, %v1180
    %v1437 = vmul.f32 %v413, %v1181
    %v1438 = vmul.f32 %v414, %v1182
    %v1439 = vmul.f32 %v415, %v1183
    %v1440 = vmul.f32 %v416, %v1184
    %v1441 = vmul.f32 %v417, %v1185
    %v1442 = vmul.f32 %v418, %v1186
    %v1443 = vmul.f32 %v419, %v1187
    %v1444 = vmul.f32 %v420, %v1188
    %v1445 = vmul.f32 %v421, %v1189
    %v1446 = vmul.f32 %v422, %v1190
    %v1447 = vmul.f32 %v423, %v1191
    %v1448 = vmul.f32 %v424, %v1192
    %v1449 = vmul.f32 %v425, %v1193
    %v1450 = vmul.f32 %v426, %v1194
    %v1451 = vmul.f32 %v427, %v1195
    %v1452 = vmul.f32 %v428, %v1196
    %v1453 = vmul.f32 %v429, %v1197
    %v1454 = vmul.f32 %v430, %v1198
    %v1455 = vmul.f32 %v431, %v1199
    %v1456 = vmul.f32 %v432, %v1200
    %v1457 = vmul.f32 %v433, %v1201
    %v1458 = vmul.f32 %v434, %v1202
    %v1459 = vmul.f32 %v435, %v1203
    %v1460 = vmul.f32 %v436, %v1204
    %v1461 = vmul.f32 %v437, %v1205
    %v1462 = vmul.f32 %v438, %v1206
    %v1463 = vmul.f32 %v439, %v1207
    %v1464 = vmul.f32 %v440, %v1208
    %v1465 = vmul.f32 %v441, %v1209
    %v1466 = vmul.f32 %v442, %v1210
    %v1467 = vmul.f32 %v443, %v1211
    %v1468 = vmul.f32 %v444, %v1212
    %v1469 = vmul.f32 %v445, %v1213
    %v1470 = vmul.f32 %v446, %v1214
    %v1471 = vmul.f32 %v447, %v1215
    %v1472 = vmul.f32 %v448, %v1216
    %v1473 = vmul.f32 %v449, %v1217
    %v1474 = vmul.f32 %v450, %v1218
    %v1475 = vmul.f32 %v451, %v1219
    %v1476 = vmul.f32 %v452, %v1220
    %v1477 = vmul.f32 %v453, %v1221
    %v1478 = vmul.f32 %v454, %v1222
    %v1479 = vmul.f32 %v455, %v1223
    %v1480 = vmul.f32 %v456, %v1224
    %v1481 = vmul.f32 %v457, %v1225
    %v1482 = vmul.f32 %v458, %v1226
    %v1483 = vmul.f32 %v459, %v1227
    %v1484 = vmul.f32 %v460, %v1228
    %v1485 = vmul.f32 %v461, %v1229
    %v1486 = vmul.f32 %v462, %v1230
    %v1487 = vmul.f32 %v463, %v1231
    %v1488 = vmul.f32 %v464, %v1232
    %v1489 = vmul.f32 %v465, %v1233
    %v1490 = vmul.f32 %v466, %v1234
    %v1491 = vmul.f32 %v467, %v1235
    %v1492 = vmul.f32 %v468, %v1236
    %v1493 = vmul.f32 %v469, %v1237
    %v1494 = vmul.f32 %v470, %v1238
    %v1495 = vmul.f32 %v471, %v1239
    %v1496 = vmul.f32 %v472, %v1240
    %v1497 = vmul.f32 %v473, %v1241
    %v1498 = vmul.f32 %v474, %v1242
    %v1499 = vmul.f32 %v475, %v1243
    %v1500 = vmul.f32 %v476, %v1244
    %v1501 = vmul.f32 %v477, %v1245
    %v1502 = vmul.f32 %v478, %v1246
    %v1503 = vmul.f32 %v479, %v1247
    %v1504 = vmul.f32 %v480, %v1248
    %v1505 = vmul.f32 %v481, %v1249
    %v1506 = vmul.f32 %v482, %v1250
    %v1507 = vmul.f32 %v483, %v1251
    %v1508 = vmul.f32 %v484, %v1252
    %v1509 = vmul.f32 %v485, %v1253
    %v1510 = vmul.f32 %v486, %v1254
    %v1511 = vmul.f32 %v487, %v1255
    %v1512 = vmul.f32 %v488, %v1256
    %v1513 = vmul.f32 %v489, %v1257
    %v1514 = vmul.f32 %v490, %v1258
    %v1515 = vmul.f32 %v491, %v1259
    %v1516 = vmul.f32 %v492, %v1260
    %v1517 = vmul.f32 %v493, %v1261
    %v1518 = vmul.f32 %v494, %v1262
    %v1519 = vmul.f32 %v495, %v1263
    %v1520 = vmul.f32 %v496, %v1264
    %v1521 = vmul.f32 %v497, %v1265
    %v1522 = vmul.f32 %v498, %v1266
    %v1523 = vmul.f32 %v499, %v1267
    %v1524 = vmul.f32 %v500, %v1268
    %v1525 = vmul.f32 %v501, %v1269
    %v1526 = vmul.f32 %v502, %v1270
    %v1527 = vmul.f32 %v503, %v1271
    %v1528 = vmul.f32 %v504, %v1272
    %v1529 = vmul.f32 %v505, %v1273
    %v1530 = vmul.f32 %v506, %v1274
    %v1531 = vmul.f32 %v507, %v1275
    %v1532 = vmul.f32 %v508, %v1276
    %v1533 = vmul.f32 %v509, %v1277
    %v1534 = vmul.f32 %v510, %v1278
    %v1535 = vmul.f32 %v511, %v1279
    %v1536 = vmul.f32 %v512, %v1280
    %v1537 = vmul.f32 %v513, %v1281
    %v1538 = vmul.f32 %v514, %v1282
    %v1539 = vmul.f32 %v515, %v1283
    %v1540 = vmul.f32 %v516, %v1284
    %v1541 = vmul.f32 %v517, %v1285
    %v1542 = vmul.f32 %v518, %v1286
    %v1543 = vmul.f32 %v519, %v1287
    %v1544 = vmul.f32 %v520, %v1288
    %v1545 = vmul.f32 %v521, %v1289
    %v1546 = vmul.f32 %v522, %v1290
    %v1547 = vmul.f32 %v523, %v1291
    %v1548 = vmul.f32 %v524, %v1292
    %v1549 = vmul.f32 %v525, %v1293
    %v1550 = vmul.f32 %v526, %v1294
    %v1551 = vmul.f32 %v527, %v1295
    %v1552 = vmul.f32 %v528, %v1296
    %v1553 = vmul.f32 %v529, %v1297
    %v1554 = vmul.f32 %v530, %v1298
    %v1555 = vmul.f32 %v531, %v1299
    %v1556 = vmul.f32 %v532, %v1300
    %v1557 = vmul.f32 %v533, %v1301
    %v1558 = vmul.f32 %v534, %v1302
    %v1559 = vsub.f32 0.0, %v1303
    %v1560 = vsub.f32 0.0, %v1304
    %v1561 = vsub.f32 0.0, %v1305
    %v1562 = vsub.f32 0.0, %v1306
    %v1563 = vsub.f32 0.0, %v1307
    %v1564 = vsub.f32 0.0, %v1308
    %v1565 = vsub.f32 0.0, %v1309
    %v1566 = vsub.f32 0.0, %v1310
    %v1567 = vsub.f32 0.0, %v1311
    %v1568 = vsub.f32 0.0, %v1312
    %v1569 = vsub.f32 0.0, %v1313
    %v1570 = vsub.f32 0.0, %v1314
    %v1571 = vsub.f32 0.0, %v1315
    %v1572 = vsub.f32 0.0, %v1316
    %v1573 = vsub.f32 0.0, %v1317
    %v1574 = vsub.f32 0.0, %v1318
    %v1575 = vsub.f32 0.0, %v1319
    %v1576 = vsub.f32 0.0, %v1320
    %v1577 = vsub.f32 0.0, %v1321
    %v1578 = vsub.f32 0.0, %v1322
    %v1579 = vsub.f32 0.0, %v1323
    %v1580 = vsub.f32 0.0, %v1324
    %v1581 = vsub.f32 0.0, %v1325
    %v1582 = vsub.f32 0.0, %v1326
    %v1583 = vsub.f32 0.0, %v1327
    %v1584 = vsub.f32 0.0, %v1328
    %v1585 = vsub.f32 0.0, %v1329
    %v1586 = vsub.f32 0.0, %v1330
    %v1587 = vsub.f32 0.0, %v1331
    %v1588 = vsub.f32 0.0, %v1332
    %v1589 = vsub.f32 0.0, %v1333
    %v1590 = vsub.f32 0.0, %v1334
    %v1591 = vsub.f32 0.0, %v1335
    %v1592 = vsub.f32 0.0, %v1336
    %v1593 = vsub.f32 0.0, %v1337
    %v1594 = vsub.f32 0.0, %v1338
    %v1595 = vsub.f32 0.0, %v1339
    %v1596 = vsub.f32 0.0, %v1340
    %v1597 = vsub.f32 0.0, %v1341
    %v1598 = vsub.f32 0.0, %v1342
    %v1599 = vsub.f32 0.0, %v1343
    %v1600 = vsub.f32 0.0, %v1344
    %v1601 = vsub.f32 0.0, %v1345
    %v1602 = vsub.f32 0.0, %v1346
    %v1603 = vsub.f32 0.0, %v1347
    %v1604 = vsub.f32 0.0, %v1348
    %v1605 = vsub.f32 0.0, %v1349
    %v1606 = vsub.f32 0.0, %v1350
    %v1607 = vsub.f32 0.0, %v1351
    %v1608 = vsub.f32 0.0, %v1352
    %v1609 = vsub.f32 0.0, %v1353
    %v1610 = vsub.f32 0.0, %v1354
    %v1611 = vsub.f32 0.0, %v1355
    %v1612 = vsub.f32 0.0, %v1356
    %v1613 = vsub.f32 0.0, %v1357
    %v1614 = vsub.f32 0.0, %v1358
    %v1615 = vsub.f32 0.0, %v1359
    %v1616 = vsub.f32 0.0, %v1360
    %v1617 = vsub.f32 0.0, %v1361
    %v1618 = vsub.f32 0.0, %v1362
    %v1619 = vsub.f32 0.0, %v1363
    %v1620 = vsub.f32 0.0, %v1364
    %v1621 = vsub.f32 0.0, %v1365
    %v1622 = vsub.f32 0.0, %v1366
    %v1623 = vsub.f32 0.0, %v1367
    %v1624 = vsub.f32 0.0, %v1368
    %v1625 = vsub.f32 0.0, %v1369
    %v1626 = vsub.f32 0.0, %v1370
    %v1627 = vsub.f32 0.0, %v1371
    %v1628 = vsub.f32 0.0, %v1372
    %v1629 = vsub.f32 0.0, %v1373
    %v1630 = vsub.f32 0.0, %v1374
    %v1631 = vsub.f32 0.0, %v1375
    %v1632 = vsub.f32 0.0, %v1376
    %v1633 = vsub.f32 0.0, %v1377
    %v1634 = vsub.f32 0.0, %v1378
    %v1635 = vsub.f32 0.0, %v1379
    %v1636 = vsub.f32 0.0, %v1380
    %v1637 = vsub.f32 0.0, %v1381
    %v1638 = vsub.f32 0.0, %v1382
    %v1639 = vsub.f32 0.0, %v1383
    %v1640 = vsub.f32 0.0, %v1384
    %v1641 = vsub.f32 0.0, %v1385
    %v1642 = vsub.f32 0.0, %v1386
    %v1643 = vsub.f32 0.0, %v1387
    %v1644 = vsub.f32 0.0, %v1388
    %v1645 = vsub.f32 0.0, %v1389
    %v1646 = vsub.f32 0.0, %v1390
    %v1647 = vsub.f32 0.0, %v1391
    %v1648 = vsub.f32 0.0, %v1392
    %v1649 = vsub.f32 0.0, %v1393
    %v1650 = vsub.f32 0.0, %v1394
    %v1651 = vsub.f32 0.0, %v1395
    %v1652 = vsub.f32 0.0, %v1396
    %v1653 = vsub.f32 0.0, %v1397
    %v1654 = vsub.f32 0.0, %v1398
    %v1655 = vsub.f32 0.0, %v1399
    %v1656 = vsub.f32 0.0, %v1400
    %v1657 = vsub.f32 0.0, %v1401
    %v1658 = vsub.f32 0.0, %v1402
    %v1659 = vsub.f32 0.0, %v1403
    %v1660 = vsub.f32 0.0, %v1404
    %v1661 = vsub.f32 0.0, %v1405
    %v1662 = vsub.f32 0.0, %v1406
    %v1663 = vsub.f32 0.0, %v1407
    %v1664 = vsub.f32 0.0, %v1408
    %v1665 = vsub.f32 0.0, %v1409
    %v1666 = vsub.f32 0.0, %v1410
    %v1667 = vsub.f32 0.0, %v1411
    %v1668 = vsub.f32 0.0, %v1412
    %v1669 = vsub.f32 0.0, %v1413
    %v1670 = vsub.f32 0.0, %v1414
    %v1671 = vsub.f32 0.0, %v1415
    %v1672 = vsub.f32 0.0, %v1416
    %v1673 = vsub.f32 0.0, %v1417
    %v1674 = vsub.f32 0.0, %v1418
    %v1675 = vsub.f32 0.0, %v1419
    %v1676 = vsub.f32 0.0, %v1420
    %v1677 = vsub.f32 0.0, %v1421
    %v1678 = vsub.f32 0.0, %v1422
    %v1679 = vsub.f32 0.0, %v1423
    %v1680 = vsub.f32 0.0, %v1424
    %v1681 = vsub.f32 0.0, %v1425
    %v1682 = vsub.f32 0.0, %v1426
    %v1683 = vsub.f32 0.0, %v1427
    %v1684 = vsub.f32 0.0, %v1428
    %v1685 = vsub.f32 0.0, %v1429
    %v1686 = vsub.f32 0.0, %v1430
    %v1687 = vsub.f32 0.0, %v1431
    %v1688 = vsub.f32 0.0, %v1432
    %v1689 = vsub.f32 0.0, %v1433
    %v1690 = vsub.f32 0.0, %v1434
    %v1691 = vsub.f32 0.0, %v1435
    %v1692 = vsub.f32 0.0, %v1436
    %v1693 = vsub.f32 0.0, %v1437
    %v1694 = vsub.f32 0.0, %v1438
    %v1695 = vsub.f32 0.0, %v1439
    %v1696 = vsub.f32 0.0, %v1440
    %v1697 = vsub.f32 0.0, %v1441
    %v1698 = vsub.f32 0.0, %v1442
    %v1699 = vsub.f32 0.0, %v1443
    %v1700 = vsub.f32 0.0, %v1444
    %v1701 = vsub.f32 0.0, %v1445
    %v1702 = vsub.f32 0.0, %v1446
    %v1703 = vsub.f32 0.0, %v1447
    %v1704 = vsub.f32 0.0, %v1448
    %v1705 = vsub.f32 0.0, %v1449
    %v1706 = vsub.f32 0.0, %v1450
    %v1707 = vsub.f32 0.0, %v1451
    %v1708 = vsub.f32 0.0, %v1452
    %v1709 = vsub.f32 0.0, %v1453
    %v1710 = vsub.f32 0.0, %v1454
    %v1711 = vsub.f32 0.0, %v1455
    %v1712 = vsub.f32 0.0, %v1456
    %v1713 = vsub.f32 0.0, %v1457
    %v1714 = vsub.f32 0.0, %v1458
    %v1715 = vsub.f32 0.0, %v1459
    %v1716 = vsub.f32 0.0, %v1460
    %v1717 = vsub.f32 0.0, %v1461
    %v1718 = vsub.f32 0.0, %v1462
    %v1719 = vsub.f32 0.0, %v1463
    %v1720 = vsub.f32 0.0, %v1464
    %v1721 = vsub.f32 0.0, %v1465
    %v1722 = vsub.f32 0.0, %v1466
    %v1723 = vsub.f32 0.0, %v1467
    %v1724 = vsub.f32 0.0, %v1468
    %v1725 = vsub.f32 0.0, %v1469
    %v1726 = vsub.f32 0.0, %v1470
    %v1727 = vsub.f32 0.0, %v1471
    %v1728 = vsub.f32 0.0, %v1472
    %v1729 = vsub.f32 0.0, %v1473
    %v1730 = vsub.f32 0.0, %v1474
    %v1731 = vsub.f32 0.0, %v1475
    %v1732 = vsub.f32 0.0, %v1476
    %v1733 = vsub.f32 0.0, %v1477
    %v1734 = vsub.f32 0.0, %v1478
    %v1735 = vsub.f32 0.0, %v1479
    %v1736 = vsub.f32 0.0, %v1480
    %v1737 = vsub.f32 0.0, %v1481
    %v1738 = vsub.f32 0.0, %v1482
    %v1739 = vsub.f32 0.0, %v1483
    %v1740 = vsub.f32 0.0, %v1484
    %v1741 = vsub.f32 0.0, %v1485
    %v1742 = vsub.f32 0.0, %v1486
    %v1743 = vsub.f32 0.0, %v1487
    %v1744 = vsub.f32 0.0, %v1488
    %v1745 = vsub.f32 0.0, %v1489
    %v1746 = vsub.f32 0.0, %v1490
    %v1747 = vsub.f32 0.0, %v1491
    %v1748 = vsub.f32 0.0, %v1492
    %v1749 = vsub.f32 0.0, %v1493
    %v1750 = vsub.f32 0.0, %v1494
    %v1751 = vsub.f32 0.0, %v1495
    %v1752 = vsub.f32 0.0, %v1496
    %v1753 = vsub.f32 0.0, %v1497
    %v1754 = vsub.f32 0.0, %v1498
    %v1755 = vsub.f32 0.0, %v1499
    %v1756 = vsub.f32 0.0, %v1500
    %v1757 = vsub.f32 0.0, %v1501
    %v1758 = vsub.f32 0.0, %v1502
    %v1759 = vsub.f32 0.0, %v1503
    %v1760 = vsub.f32 0.0, %v1504
    %v1761 = vsub.f32 0.0, %v1505
    %v1762 = vsub.f32 0.0, %v1506
    %v1763 = vsub.f32 0.0, %v1507
    %v1764 = vsub.f32 0.0, %v1508
    %v1765 = vsub.f32 0.0, %v1509
    %v1766 = vsub.f32 0.0, %v1510
    %v1767 = vsub.f32 0.0, %v1511
    %v1768 = vsub.f32 0.0, %v1512
    %v1769 = vsub.f32 0.0, %v1513
    %v1770 = vsub.f32 0.0, %v1514
    %v1771 = vsub.f32 0.0, %v1515
    %v1772 = vsub.f32 0.0, %v1516
    %v1773 = vsub.f32 0.0, %v1517
    %v1774 = vsub.f32 0.0, %v1518
    %v1775 = vsub.f32 0.0, %v1519
    %v1776 = vsub.f32 0.0, %v1520
    %v1777 = vsub.f32 0.0, %v1521
    %v1778 = vsub.f32 0.0, %v1522
    %v1779 = vsub.f32 0.0, %v1523
    %v1780 = vsub.f32 0.0, %v1524
    %v1781 = vsub.f32 0.0, %v1525
    %v1782 = vsub.f32 0.0, %v1526
    %v1783 = vsub.f32 0.0, %v1527
    %v1784 = vsub.f32 0.0, %v1528
    %v1785 = vsub.f32 0.0, %v1529
    %v1786 = vsub.f32 0.0, %v1530
    %v1787 = vsub.f32 0.0, %v1531
    %v1788 = vsub.f32 0.0, %v1532
    %v1789 = vsub.f32 0.0, %v1533
    %v1790 = vsub.f32 0.0, %v1534
    %v1791 = vsub.f32 0.0, %v1535
    %v1792 = vsub.f32 0.0, %v1536
    %v1793 = vsub.f32 0.0, %v1537
    %v1794 = vsub.f32 0.0, %v1538
    %v1795 = vsub.f32 0.0, %v1539
    %v1796 = vsub.f32 0.0, %v1540
    %v1797 = vsub.f32 0.0, %v1541
    %v1798 = vsub.f32 0.0, %v1542
    %v1799 = vsub.f32 0.0, %v1543
    %v1800 = vsub.f32 0.0, %v1544
    %v1801 = vsub.f32 0.0, %v1545
    %v1802 = vsub.f32 0.0, %v1546
    %v1803 = vsub.f32 0.0, %v1547
    %v1804 = vsub.f32 0.0, %v1548
    %v1805 = vsub.f32 0.0, %v1549
    %v1806 = vsub.f32 0.0, %v1550
    %v1807 = vsub.f32 0.0, %v1551
    %v1808 = vsub.f32 0.0, %v1552
    %v1809 = vsub.f32 0.0, %v1553
    %v1810 = vsub.f32 0.0, %v1554
    %v1811 = vsub.f32 0.0, %v1555
    %v1812 = vsub.f32 0.0, %v1556
    %v1813 = vsub.f32 0.0, %v1557
    %v1814 = vsub.f32 0.0, %v1558
    %v1815 = vmul.f32 %v1559, 1.442695
    %v1816 = vpow.pop %v1815
    %v1817 = vmul.f32 %v1560, 1.442695
    %v1818 = vpow.pop %v1817
    %v1819 = vmul.f32 %v1561, 1.442695
    %v1820 = vpow.pop %v1819
    %v1821 = vmul.f32 %v1562, 1.442695
    %v1822 = vpow.pop %v1821
    %v1823 = vmul.f32 %v1563, 1.442695
    %v1824 = vpow.pop %v1823
    %v1825 = vmul.f32 %v1564, 1.442695
    %v1826 = vpow.pop %v1825
    %v1827 = vmul.f32 %v1565, 1.442695
    %v1828 = vpow.pop %v1827
    %v1829 = vmul.f32 %v1566, 1.442695
    %v1830 = vpow.pop %v1829
    %v1831 = vmul.f32 %v1567, 1.442695
    %v1832 = vpow.pop %v1831
    %v1833 = vmul.f32 %v1568, 1.442695
    %v1834 = vpow.pop %v1833
    %v1835 = vmul.f32 %v1569, 1.442695
    %v1836 = vpow.pop %v1835
    %v1837 = vmul.f32 %v1570, 1.442695
    %v1838 = vpow.pop %v1837
    %v1839 = vmul.f32 %v1571, 1.442695
    %v1840 = vpow.pop %v1839
    %v1841 = vmul.f32 %v1572, 1.442695
    %v1842 = vpow.pop %v1841
    %v1843 = vmul.f32 %v1573, 1.442695
    %v1844 = vpow.pop %v1843
    %v1845 = vmul.f32 %v1574, 1.442695
    %v1846 = vpow.pop %v1845
    %v1847 = vmul.f32 %v1575, 1.442695
    %v1848 = vpow.pop %v1847
    %v1849 = vmul.f32 %v1576, 1.442695
    %v1850 = vpow.pop %v1849
    %v1851 = vmul.f32 %v1577, 1.442695
    %v1852 = vpow.pop %v1851
    %v1853 = vmul.f32 %v1578, 1.442695
    %v1854 = vpow.pop %v1853
    %v1855 = vmul.f32 %v1579, 1.442695
    %v1856 = vpow.pop %v1855
    %v1857 = vmul.f32 %v1580, 1.442695
    %v1858 = vpow.pop %v1857
    %v1859 = vmul.f32 %v1581, 1.442695
    %v1860 = vpow.pop %v1859
    %v1861 = vmul.f32 %v1582, 1.442695
    %v1862 = vpow.pop %v1861
    %v1863 = vmul.f32 %v1583, 1.442695
    %v1864 = vpow.pop %v1863
    %v1865 = vmul.f32 %v1584, 1.442695
    %v1866 = vpow.pop %v1865
    %v1867 = vmul.f32 %v1585, 1.442695
    %v1868 = vpow.pop %v1867
    %v1869 = vmul.f32 %v1586, 1.442695
    %v1870 = vpow.pop %v1869
    %v1871 = vmul.f32 %v1587, 1.442695
    %v1872 = vpow.pop %v1871
    %v1873 = vmul.f32 %v1588, 1.442695
    %v1874 = vpow.pop %v1873
    %v1875 = vmul.f32 %v1589, 1.442695
    %v1876 = vpow.pop %v1875
    %v1877 = vmul.f32 %v1590, 1.442695
    %v1878 = vpow.pop %v1877
    %v1879 = vmul.f32 %v1591, 1.442695
    %v1880 = vpow.pop %v1879
    %v1881 = vmul.f32 %v1592, 1.442695
    %v1882 = vpow.pop %v1881
    %v1883 = vmul.f32 %v1593, 1.442695
    %v1884 = vpow.pop %v1883
    %v1885 = vmul.f32 %v1594, 1.442695
    %v1886 = vpow.pop %v1885
    %v1887 = vmul.f32 %v1595, 1.442695
    %v1888 = vpow.pop %v1887
    %v1889 = vmul.f32 %v1596, 1.442695
    %v1890 = vpow.pop %v1889
    %v1891 = vmul.f32 %v1597, 1.442695
    %v1892 = vpow.pop %v1891
    %v1893 = vmul.f32 %v1598, 1.442695
    %v1894 = vpow.pop %v1893
    %v1895 = vmul.f32 %v1599, 1.442695
    %v1896 = vpow.pop %v1895
    %v1897 = vmul.f32 %v1600, 1.442695
    %v1898 = vpow.pop %v1897
    %v1899 = vmul.f32 %v1601, 1.442695
    %v1900 = vpow.pop %v1899
    %v1901 = vmul.f32 %v1602, 1.442695
    %v1902 = vpow.pop %v1901
    %v1903 = vmul.f32 %v1603, 1.442695
    %v1904 = vpow.pop %v1903
    %v1905 = vmul.f32 %v1604, 1.442695
    %v1906 = vpow.pop %v1905
    %v1907 = vmul.f32 %v1605, 1.442695
    %v1908 = vpow.pop %v1907
    %v1909 = vmul.f32 %v1606, 1.442695
    %v1910 = vpow.pop %v1909
    %v1911 = vmul.f32 %v1607, 1.442695
    %v1912 = vpow.pop %v1911
    %v1913 = vmul.f32 %v1608, 1.442695
    %v1914 = vpow.pop %v1913
    %v1915 = vmul.f32 %v1609, 1.442695
    %v1916 = vpow.pop %v1915
    %v1917 = vmul.f32 %v1610, 1.442695
    %v1918 = vpow.pop %v1917
    %v1919 = vmul.f32 %v1611, 1.442695
    %v1920 = vpow.pop %v1919
    %v1921 = vmul.f32 %v1612, 1.442695
    %v1922 = vpow.pop %v1921
    %v1923 = vmul.f32 %v1613, 1.442695
    %v1924 = vpow.pop %v1923
    %v1925 = vmul.f32 %v1614, 1.442695
    %v1926 = vpow.pop %v1925
    %v1927 = vmul.f32 %v1615, 1.442695
    %v1928 = vpow.pop %v1927
    %v1929 = vmul.f32 %v1616, 1.442695
    %v1930 = vpow.pop %v1929
    %v1931 = vmul.f32 %v1617, 1.442695
    %v1932 = vpow.pop %v1931
    %v1933 = vmul.f32 %v1618, 1.442695
    %v1934 = vpow.pop %v1933
    %v1935 = vmul.f32 %v1619, 1.442695
    %v1936 = vpow.pop %v1935
    %v1937 = vmul.f32 %v1620, 1.442695
    %v1938 = vpow.pop %v1937
    %v1939 = vmul.f32 %v1621, 1.442695
    %v1940 = vpow.pop %v1939
    %v1941 = vmul.f32 %v1622, 1.442695
    %v1942 = vpow.pop %v1941
    %v1943 = vmul.f32 %v1623, 1.442695
    %v1944 = vpow.pop %v1943
    %v1945 = vmul.f32 %v1624, 1.442695
    %v1946 = vpow.pop %v1945
    %v1947 = vmul.f32 %v1625, 1.442695
    %v1948 = vpow.pop %v1947
    %v1949 = vmul.f32 %v1626, 1.442695
    %v1950 = vpow.pop %v1949
    %v1951 = vmul.f32 %v1627, 1.442695
    %v1952 = vpow.pop %v1951
    %v1953 = vmul.f32 %v1628, 1.442695
    %v1954 = vpow.pop %v1953
    %v1955 = vmul.f32 %v1629, 1.442695
    %v1956 = vpow.pop %v1955
    %v1957 = vmul.f32 %v1630, 1.442695
    %v1958 = vpow.pop %v1957
    %v1959 = vmul.f32 %v1631, 1.442695
    %v1960 = vpow.pop %v1959
    %v1961 = vmul.f32 %v1632, 1.442695
    %v1962 = vpow.pop %v1961
    %v1963 = vmul.f32 %v1633, 1.442695
    %v1964 = vpow.pop %v1963
    %v1965 = vmul.f32 %v1634, 1.442695
    %v1966 = vpow.pop %v1965
    %v1967 = vmul.f32 %v1635, 1.442695
    %v1968 = vpow.pop %v1967
    %v1969 = vmul.f32 %v1636, 1.442695
    %v1970 = vpow.pop %v1969
    %v1971 = vmul.f32 %v1637, 1.442695
    %v1972 = vpow.pop %v1971
    %v1973 = vmul.f32 %v1638, 1.442695
    %v1974 = vpow.pop %v1973
    %v1975 = vmul.f32 %v1639, 1.442695
    %v1976 = vpow.pop %v1975
    %v1977 = vmul.f32 %v1640, 1.442695
    %v1978 = vpow.pop %v1977
    %v1979 = vmul.f32 %v1641, 1.442695
    %v1980 = vpow.pop %v1979
    %v1981 = vmul.f32 %v1642, 1.442695
    %v1982 = vpow.pop %v1981
    %v1983 = vmul.f32 %v1643, 1.442695
    %v1984 = vpow.pop %v1983
    %v1985 = vmul.f32 %v1644, 1.442695
    %v1986 = vpow.pop %v1985
    %v1987 = vmul.f32 %v1645, 1.442695
    %v1988 = vpow.pop %v1987
    %v1989 = vmul.f32 %v1646, 1.442695
    %v1990 = vpow.pop %v1989
    %v1991 = vmul.f32 %v1647, 1.442695
    %v1992 = vpow.pop %v1991
    %v1993 = vmul.f32 %v1648, 1.442695
    %v1994 = vpow.pop %v1993
    %v1995 = vmul.f32 %v1649, 1.442695
    %v1996 = vpow.pop %v1995
    %v1997 = vmul.f32 %v1650, 1.442695
    %v1998 = vpow.pop %v1997
    %v1999 = vmul.f32 %v1651, 1.442695
    %v2000 = vpow.pop %v1999
    %v2001 = vmul.f32 %v1652, 1.442695
    %v2002 = vpow.pop %v2001
    %v2003 = vmul.f32 %v1653, 1.442695
    %v2004 = vpow.pop %v2003
    %v2005 = vmul.f32 %v1654, 1.442695
    %v2006 = vpow.pop %v2005
    %v2007 = vmul.f32 %v1655, 1.442695
    %v2008 = vpow.pop %v2007
    %v2009 = vmul.f32 %v1656, 1.442695
    %v2010 = vpow.pop %v2009
    %v2011 = vmul.f32 %v1657, 1.442695
    %v2012 = vpow.pop %v2011
    %v2013 = vmul.f32 %v1658, 1.442695
    %v2014 = vpow.pop %v2013
    %v2015 = vmul.f32 %v1659, 1.442695
    %v2016 = vpow.pop %v2015
    %v2017 = vmul.f32 %v1660, 1.442695
    %v2018 = vpow.pop %v2017
    %v2019 = vmul.f32 %v1661, 1.442695
    %v2020 = vpow.pop %v2019
    %v2021 = vmul.f32 %v1662, 1.442695
    %v2022 = vpow.pop %v2021
    %v2023 = vmul.f32 %v1663, 1.442695
    %v2024 = vpow.pop %v2023
    %v2025 = vmul.f32 %v1664, 1.442695
    %v2026 = vpow.pop %v2025
    %v2027 = vmul.f32 %v1665, 1.442695
    %v2028 = vpow.pop %v2027
    %v2029 = vmul.f32 %v1666, 1.442695
    %v2030 = vpow.pop %v2029
    %v2031 = vmul.f32 %v1667, 1.442695
    %v2032 = vpow.pop %v2031
    %v2033 = vmul.f32 %v1668, 1.442695
    %v2034 = vpow.pop %v2033
    %v2035 = vmul.f32 %v1669, 1.442695
    %v2036 = vpow.pop %v2035
    %v2037 = vmul.f32 %v1670, 1.442695
    %v2038 = vpow.pop %v2037
    %v2039 = vmul.f32 %v1671, 1.442695
    %v2040 = vpow.pop %v2039
    %v2041 = vmul.f32 %v1672, 1.442695
    %v2042 = vpow.pop %v2041
    %v2043 = vmul.f32 %v1673, 1.442695
    %v2044 = vpow.pop %v2043
    %v2045 = vmul.f32 %v1674, 1.442695
    %v2046 = vpow.pop %v2045
    %v2047 = vmul.f32 %v1675, 1.442695
    %v2048 = vpow.pop %v2047
    %v2049 = vmul.f32 %v1676, 1.442695
    %v2050 = vpow.pop %v2049
    %v2051 = vmul.f32 %v1677, 1.442695
    %v2052 = vpow.pop %v2051
    %v2053 = vmul.f32 %v1678, 1.442695
    %v2054 = vpow.pop %v2053
    %v2055 = vmul.f32 %v1679, 1.442695
    %v2056 = vpow.pop %v2055
    %v2057 = vmul.f32 %v1680, 1.442695
    %v2058 = vpow.pop %v2057
    %v2059 = vmul.f32 %v1681, 1.442695
    %v2060 = vpow.pop %v2059
    %v2061 = vmul.f32 %v1682, 1.442695
    %v2062 = vpow.pop %v2061
    %v2063 = vmul.f32 %v1683, 1.442695
    %v2064 = vpow.pop %v2063
    %v2065 = vmul.f32 %v1684, 1.442695
    %v2066 = vpow.pop %v2065
    %v2067 = vmul.f32 %v1685, 1.442695
    %v2068 = vpow.pop %v2067
    %v2069 = vmul.f32 %v1686, 1.442695
    %v2070 = vpow.pop %v2069
    %v2071 = vmul.f32 %v1687, 1.442695
    %v2072 = vpow.pop %v2071
    %v2073 = vmul.f32 %v1688, 1.442695
    %v2074 = vpow.pop %v2073
    %v2075 = vmul.f32 %v1689, 1.442695
    %v2076 = vpow.pop %v2075
    %v2077 = vmul.f32 %v1690, 1.442695
    %v2078 = vpow.pop %v2077
    %v2079 = vmul.f32 %v1691, 1.442695
    %v2080 = vpow.pop %v2079
    %v2081 = vmul.f32 %v1692, 1.442695
    %v2082 = vpow.pop %v2081
    %v2083 = vmul.f32 %v1693, 1.442695
    %v2084 = vpow.pop %v2083
    %v2085 = vmul.f32 %v1694, 1.442695
    %v2086 = vpow.pop %v2085
    %v2087 = vmul.f32 %v1695, 1.442695
    %v2088 = vpow.pop %v2087
    %v2089 = vmul.f32 %v1696, 1.442695
    %v2090 = vpow.pop %v2089
    %v2091 = vmul.f32 %v1697, 1.442695
    %v2092 = vpow.pop %v2091
    %v2093 = vmul.f32 %v1698, 1.442695
    %v2094 = vpow.pop %v2093
    %v2095 = vmul.f32 %v1699, 1.442695
    %v2096 = vpow.pop %v2095
    %v2097 = vmul.f32 %v1700, 1.442695
    %v2098 = vpow.pop %v2097
    %v2099 = vmul.f32 %v1701, 1.442695
    %v2100 = vpow.pop %v2099
    %v2101 = vmul.f32 %v1702, 1.442695
    %v2102 = vpow.pop %v2101
    %v2103 = vmul.f32 %v1703, 1.442695
    %v2104 = vpow.pop %v2103
    %v2105 = vmul.f32 %v1704, 1.442695
    %v2106 = vpow.pop %v2105
    %v2107 = vmul.f32 %v1705, 1.442695
    %v2108 = vpow.pop %v2107
    %v2109 = vmul.f32 %v1706, 1.442695
    %v2110 = vpow.pop %v2109
    %v2111 = vmul.f32 %v1707, 1.442695
    %v2112 = vpow.pop %v2111
    %v2113 = vmul.f32 %v1708, 1.442695
    %v2114 = vpow.pop %v2113
    %v2115 = vmul.f32 %v1709, 1.442695
    %v2116 = vpow.pop %v2115
    %v2117 = vmul.f32 %v1710, 1.442695
    %v2118 = vpow.pop %v2117
    %v2119 = vmul.f32 %v1711, 1.442695
    %v2120 = vpow.pop %v2119
    %v2121 = vmul.f32 %v1712, 1.442695
    %v2122 = vpow.pop %v2121
    %v2123 = vmul.f32 %v1713, 1.442695
    %v2124 = vpow.pop %v2123
    %v2125 = vmul.f32 %v1714, 1.442695
    %v2126 = vpow.pop %v2125
    %v2127 = vmul.f32 %v1715, 1.442695
    %v2128 = vpow.pop %v2127
    %v2129 = vmul.f32 %v1716, 1.442695
    %v2130 = vpow.pop %v2129
    %v2131 = vmul.f32 %v1717, 1.442695
    %v2132 = vpow.pop %v2131
    %v2133 = vmul.f32 %v1718, 1.442695
    %v2134 = vpow.pop %v2133
    %v2135 = vmul.f32 %v1719, 1.442695
    %v2136 = vpow.pop %v2135
    %v2137 = vmul.f32 %v1720, 1.442695
    %v2138 = vpow.pop %v2137
    %v2139 = vmul.f32 %v1721, 1.442695
    %v2140 = vpow.pop %v2139
    %v2141 = vmul.f32 %v1722, 1.442695
    %v2142 = vpow.pop %v2141
    %v2143 = vmul.f32 %v1723, 1.442695
    %v2144 = vpow.pop %v2143
    %v2145 = vmul.f32 %v1724, 1.442695
    %v2146 = vpow.pop %v2145
    %v2147 = vmul.f32 %v1725, 1.442695
    %v2148 = vpow.pop %v2147
    %v2149 = vmul.f32 %v1726, 1.442695
    %v2150 = vpow.pop %v2149
    %v2151 = vmul.f32 %v1727, 1.442695
    %v2152 = vpow.pop %v2151
    %v2153 = vmul.f32 %v1728, 1.442695
    %v2154 = vpow.pop %v2153
    %v2155 = vmul.f32 %v1729, 1.442695
    %v2156 = vpow.pop %v2155
    %v2157 = vmul.f32 %v1730, 1.442695
    %v2158 = vpow.pop %v2157
    %v2159 = vmul.f32 %v1731, 1.442695
    %v2160 = vpow.pop %v2159
    %v2161 = vmul.f32 %v1732, 1.442695
    %v2162 = vpow.pop %v2161
    %v2163 = vmul.f32 %v1733, 1.442695
    %v2164 = vpow.pop %v2163
    %v2165 = vmul.f32 %v1734, 1.442695
    %v2166 = vpow.pop %v2165
    %v2167 = vmul.f32 %v1735, 1.442695
    %v2168 = vpow.pop %v2167
    %v2169 = vmul.f32 %v1736, 1.442695
    %v2170 = vpow.pop %v2169
    %v2171 = vmul.f32 %v1737, 1.442695
    %v2172 = vpow.pop %v2171
    %v2173 = vmul.f32 %v1738, 1.442695
    %v2174 = vpow.pop %v2173
    %v2175 = vmul.f32 %v1739, 1.442695
    %v2176 = vpow.pop %v2175
    %v2177 = vmul.f32 %v1740, 1.442695
    %v2178 = vpow.pop %v2177
    %v2179 = vmul.f32 %v1741, 1.442695
    %v2180 = vpow.pop %v2179
    %v2181 = vmul.f32 %v1742, 1.442695
    %v2182 = vpow.pop %v2181
    %v2183 = vmul.f32 %v1743, 1.442695
    %v2184 = vpow.pop %v2183
    %v2185 = vmul.f32 %v1744, 1.442695
    %v2186 = vpow.pop %v2185
    %v2187 = vmul.f32 %v1745, 1.442695
    %v2188 = vpow.pop %v2187
    %v2189 = vmul.f32 %v1746, 1.442695
    %v2190 = vpow.pop %v2189
    %v2191 = vmul.f32 %v1747, 1.442695
    %v2192 = vpow.pop %v2191
    %v2193 = vmul.f32 %v1748, 1.442695
    %v2194 = vpow.pop %v2193
    %v2195 = vmul.f32 %v1749, 1.442695
    %v2196 = vpow.pop %v2195
    %v2197 = vmul.f32 %v1750, 1.442695
    %v2198 = vpow.pop %v2197
    %v2199 = vmul.f32 %v1751, 1.442695
    %v2200 = vpow.pop %v2199
    %v2201 = vmul.f32 %v1752, 1.442695
    %v2202 = vpow.pop %v2201
    %v2203 = vmul.f32 %v1753, 1.442695
    %v2204 = vpow.pop %v2203
    %v2205 = vmul.f32 %v1754, 1.442695
    %v2206 = vpow.pop %v2205
    %v2207 = vmul.f32 %v1755, 1.442695
    %v2208 = vpow.pop %v2207
    %v2209 = vmul.f32 %v1756, 1.442695
    %v2210 = vpow.pop %v2209
    %v2211 = vmul.f32 %v1757, 1.442695
    %v2212 = vpow.pop %v2211
    %v2213 = vmul.f32 %v1758, 1.442695
    %v2214 = vpow.pop %v2213
    %v2215 = vmul.f32 %v1759, 1.442695
    %v2216 = vpow.pop %v2215
    %v2217 = vmul.f32 %v1760, 1.442695
    %v2218 = vpow.pop %v2217
    %v2219 = vmul.f32 %v1761, 1.442695
    %v2220 = vpow.pop %v2219
    %v2221 = vmul.f32 %v1762, 1.442695
    %v2222 = vpow.pop %v2221
    %v2223 = vmul.f32 %v1763, 1.442695
    %v2224 = vpow.pop %v2223
    %v2225 = vmul.f32 %v1764, 1.442695
    %v2226 = vpow.pop %v2225
    %v2227 = vmul.f32 %v1765, 1.442695
    %v2228 = vpow.pop %v2227
    %v2229 = vmul.f32 %v1766, 1.442695
    %v2230 = vpow.pop %v2229
    %v2231 = vmul.f32 %v1767, 1.442695
    %v2232 = vpow.pop %v2231
    %v2233 = vmul.f32 %v1768, 1.442695
    %v2234 = vpow.pop %v2233
    %v2235 = vmul.f32 %v1769, 1.442695
    %v2236 = vpow.pop %v2235
    %v2237 = vmul.f32 %v1770, 1.442695
    %v2238 = vpow.pop %v2237
    %v2239 = vmul.f32 %v1771, 1.442695
    %v2240 = vpow.pop %v2239
    %v2241 = vmul.f32 %v1772, 1.442695
    %v2242 = vpow.pop %v2241
    %v2243 = vmul.f32 %v1773, 1.442695
    %v2244 = vpow.pop %v2243
    %v2245 = vmul.f32 %v1774, 1.442695
    %v2246 = vpow.pop %v2245
    %v2247 = vmul.f32 %v1775, 1.442695
    %v2248 = vpow.pop %v2247
    %v2249 = vmul.f32 %v1776, 1.442695
    %v2250 = vpow.pop %v2249
    %v2251 = vmul.f32 %v1777, 1.442695
    %v2252 = vpow.pop %v2251
    %v2253 = vmul.f32 %v1778, 1.442695
    %v2254 = vpow.pop %v2253
    %v2255 = vmul.f32 %v1779, 1.442695
    %v2256 = vpow.pop %v2255
    %v2257 = vmul.f32 %v1780, 1.442695
    %v2258 = vpow.pop %v2257
    %v2259 = vmul.f32 %v1781, 1.442695
    %v2260 = vpow.pop %v2259
    %v2261 = vmul.f32 %v1782, 1.442695
    %v2262 = vpow.pop %v2261
    %v2263 = vmul.f32 %v1783, 1.442695
    %v2264 = vpow.pop %v2263
    %v2265 = vmul.f32 %v1784, 1.442695
    %v2266 = vpow.pop %v2265
    %v2267 = vmul.f32 %v1785, 1.442695
    %v2268 = vpow.pop %v2267
    %v2269 = vmul.f32 %v1786, 1.442695
    %v2270 = vpow.pop %v2269
    %v2271 = vmul.f32 %v1787, 1.442695
    %v2272 = vpow.pop %v2271
    %v2273 = vmul.f32 %v1788, 1.442695
    %v2274 = vpow.pop %v2273
    %v2275 = vmul.f32 %v1789, 1.442695
    %v2276 = vpow.pop %v2275
    %v2277 = vmul.f32 %v1790, 1.442695
    %v2278 = vpow.pop %v2277
    %v2279 = vmul.f32 %v1791, 1.442695
    %v2280 = vpow.pop %v2279
    %v2281 = vmul.f32 %v1792, 1.442695
    %v2282 = vpow.pop %v2281
    %v2283 = vmul.f32 %v1793, 1.442695
    %v2284 = vpow.pop %v2283
    %v2285 = vmul.f32 %v1794, 1.442695
    %v2286 = vpow.pop %v2285
    %v2287 = vmul.f32 %v1795, 1.442695
    %v2288 = vpow.pop %v2287
    %v2289 = vmul.f32 %v1796, 1.442695
    %v2290 = vpow.pop %v2289
    %v2291 = vmul.f32 %v1797, 1.442695
    %v2292 = vpow.pop %v2291
    %v2293 = vmul.f32 %v1798, 1.442695
    %v2294 = vpow.pop %v2293
    %v2295 = vmul.f32 %v1799, 1.442695
    %v2296 = vpow.pop %v2295
    %v2297 = vmul.f32 %v1800, 1.442695
    %v2298 = vpow.pop %v2297
    %v2299 = vmul.f32 %v1801, 1.442695
    %v2300 = vpow.pop %v2299
    %v2301 = vmul.f32 %v1802, 1.442695
    %v2302 = vpow.pop %v2301
    %v2303 = vmul.f32 %v1803, 1.442695
    %v2304 = vpow.pop %v2303
    %v2305 = vmul.f32 %v1804, 1.442695
    %v2306 = vpow.pop %v2305
    %v2307 = vmul.f32 %v1805, 1.442695
    %v2308 = vpow.pop %v2307
    %v2309 = vmul.f32 %v1806, 1.442695
    %v2310 = vpow.pop %v2309
    %v2311 = vmul.f32 %v1807, 1.442695
    %v2312 = vpow.pop %v2311
    %v2313 = vmul.f32 %v1808, 1.442695
    %v2314 = vpow.pop %v2313
    %v2315 = vmul.f32 %v1809, 1.442695
    %v2316 = vpow.pop %v2315
    %v2317 = vmul.f32 %v1810, 1.442695
    %v2318 = vpow.pop %v2317
    %v2319 = vmul.f32 %v1811, 1.442695
    %v2320 = vpow.pop %v2319
    %v2321 = vmul.f32 %v1812, 1.442695
    %v2322 = vpow.pop %v2321
    %v2323 = vmul.f32 %v1813, 1.442695
    %v2324 = vpow.pop %v2323
    %v2325 = vmul.f32 %v1814, 1.442695
    %v2326 = vpow.pop %v2325
    %v2327 = vadd.f32 %v1816, 1.0
    %v2328 = vadd.f32 %v1818, 1.0
    %v2329 = vadd.f32 %v1820, 1.0
    %v2330 = vadd.f32 %v1822, 1.0
    %v2331 = vadd.f32 %v1824, 1.0
    %v2332 = vadd.f32 %v1826, 1.0
    %v2333 = vadd.f32 %v1828, 1.0
    %v2334 = vadd.f32 %v1830, 1.0
    %v2335 = vadd.f32 %v1832, 1.0
    %v2336 = vadd.f32 %v1834, 1.0
    %v2337 = vadd.f32 %v1836, 1.0
    %v2338 = vadd.f32 %v1838, 1.0
    %v2339 = vadd.f32 %v1840, 1.0
    %v2340 = vadd.f32 %v1842, 1.0
    %v2341 = vadd.f32 %v1844, 1.0
    %v2342 = vadd.f32 %v1846, 1.0
    %v2343 = vadd.f32 %v1848, 1.0
    %v2344 = vadd.f32 %v1850, 1.0
    %v2345 = vadd.f32 %v1852, 1.0
    %v2346 = vadd.f32 %v1854, 1.0
    %v2347 = vadd.f32 %v1856, 1.0
    %v2348 = vadd.f32 %v1858, 1.0
    %v2349 = vadd.f32 %v1860, 1.0
    %v2350 = vadd.f32 %v1862, 1.0
    %v2351 = vadd.f32 %v1864, 1.0
    %v2352 = vadd.f32 %v1866, 1.0
    %v2353 = vadd.f32 %v1868, 1.0
    %v2354 = vadd.f32 %v1870, 1.0
    %v2355 = vadd.f32 %v1872, 1.0
    %v2356 = vadd.f32 %v1874, 1.0
    %v2357 = vadd.f32 %v1876, 1.0
    %v2358 = vadd.f32 %v1878, 1.0
    %v2359 = vadd.f32 %v1880, 1.0
    %v2360 = vadd.f32 %v1882, 1.0
    %v2361 = vadd.f32 %v1884, 1.0
    %v2362 = vadd.f32 %v1886, 1.0
    %v2363 = vadd.f32 %v1888, 1.0
    %v2364 = vadd.f32 %v1890, 1.0
    %v2365 = vadd.f32 %v1892, 1.0
    %v2366 = vadd.f32 %v1894, 1.0
    %v2367 = vadd.f32 %v1896, 1.0
    %v2368 = vadd.f32 %v1898, 1.0
    %v2369 = vadd.f32 %v1900, 1.0
    %v2370 = vadd.f32 %v1902, 1.0
    %v2371 = vadd.f32 %v1904, 1.0
    %v2372 = vadd.f32 %v1906, 1.0
    %v2373 = vadd.f32 %v1908, 1.0
    %v2374 = vadd.f32 %v1910, 1.0
    %v2375 = vadd.f32 %v1912, 1.0
    %v2376 = vadd.f32 %v1914, 1.0
    %v2377 = vadd.f32 %v1916, 1.0
    %v2378 = vadd.f32 %v1918, 1.0
    %v2379 = vadd.f32 %v1920, 1.0
    %v2380 = vadd.f32 %v1922, 1.0
    %v2381 = vadd.f32 %v1924, 1.0
    %v2382 = vadd.f32 %v1926, 1.0
    %v2383 = vadd.f32 %v1928, 1.0
    %v2384 = vadd.f32 %v1930, 1.0
    %v2385 = vadd.f32 %v1932, 1.0
    %v2386 = vadd.f32 %v1934, 1.0
    %v2387 = vadd.f32 %v1936, 1.0
    %v2388 = vadd.f32 %v1938, 1.0
    %v2389 = vadd.f32 %v1940, 1.0
    %v2390 = vadd.f32 %v1942, 1.0
    %v2391 = vadd.f32 %v1944, 1.0
    %v2392 = vadd.f32 %v1946, 1.0
    %v2393 = vadd.f32 %v1948, 1.0
    %v2394 = vadd.f32 %v1950, 1.0
    %v2395 = vadd.f32 %v1952, 1.0
    %v2396 = vadd.f32 %v1954, 1.0
    %v2397 = vadd.f32 %v1956, 1.0
    %v2398 = vadd.f32 %v1958, 1.0
    %v2399 = vadd.f32 %v1960, 1.0
    %v2400 = vadd.f32 %v1962, 1.0
    %v2401 = vadd.f32 %v1964, 1.0
    %v2402 = vadd.f32 %v1966, 1.0
    %v2403 = vadd.f32 %v1968, 1.0
    %v2404 = vadd.f32 %v1970, 1.0
    %v2405 = vadd.f32 %v1972, 1.0
    %v2406 = vadd.f32 %v1974, 1.0
    %v2407 = vadd.f32 %v1976, 1.0
    %v2408 = vadd.f32 %v1978, 1.0
    %v2409 = vadd.f32 %v1980, 1.0
    %v2410 = vadd.f32 %v1982, 1.0
    %v2411 = vadd.f32 %v1984, 1.0
    %v2412 = vadd.f32 %v1986, 1.0
    %v2413 = vadd.f32 %v1988, 1.0
    %v2414 = vadd.f32 %v1990, 1.0
    %v2415 = vadd.f32 %v1992, 1.0
    %v2416 = vadd.f32 %v1994, 1.0
    %v2417 = vadd.f32 %v1996, 1.0
    %v2418 = vadd.f32 %v1998, 1.0
    %v2419 = vadd.f32 %v2000, 1.0
    %v2420 = vadd.f32 %v2002, 1.0
    %v2421 = vadd.f32 %v2004, 1.0
    %v2422 = vadd.f32 %v2006, 1.0
    %v2423 = vadd.f32 %v2008, 1.0
    %v2424 = vadd.f32 %v2010, 1.0
    %v2425 = vadd.f32 %v2012, 1.0
    %v2426 = vadd.f32 %v2014, 1.0
    %v2427 = vadd.f32 %v2016, 1.0
    %v2428 = vadd.f32 %v2018, 1.0
    %v2429 = vadd.f32 %v2020, 1.0
    %v2430 = vadd.f32 %v2022, 1.0
    %v2431 = vadd.f32 %v2024, 1.0
    %v2432 = vadd.f32 %v2026, 1.0
    %v2433 = vadd.f32 %v2028, 1.0
    %v2434 = vadd.f32 %v2030, 1.0
    %v2435 = vadd.f32 %v2032, 1.0
    %v2436 = vadd.f32 %v2034, 1.0
    %v2437 = vadd.f32 %v2036, 1.0
    %v2438 = vadd.f32 %v2038, 1.0
    %v2439 = vadd.f32 %v2040, 1.0
    %v2440 = vadd.f32 %v2042, 1.0
    %v2441 = vadd.f32 %v2044, 1.0
    %v2442 = vadd.f32 %v2046, 1.0
    %v2443 = vadd.f32 %v2048, 1.0
    %v2444 = vadd.f32 %v2050, 1.0
    %v2445 = vadd.f32 %v2052, 1.0
    %v2446 = vadd.f32 %v2054, 1.0
    %v2447 = vadd.f32 %v2056, 1.0
    %v2448 = vadd.f32 %v2058, 1.0
    %v2449 = vadd.f32 %v2060, 1.0
    %v2450 = vadd.f32 %v2062, 1.0
    %v2451 = vadd.f32 %v2064, 1.0
    %v2452 = vadd.f32 %v2066, 1.0
    %v2453 = vadd.f32 %v2068, 1.0
    %v2454 = vadd.f32 %v2070, 1.0
    %v2455 = vadd.f32 %v2072, 1.0
    %v2456 = vadd.f32 %v2074, 1.0
    %v2457 = vadd.f32 %v2076, 1.0
    %v2458 = vadd.f32 %v2078, 1.0
    %v2459 = vadd.f32 %v2080, 1.0
    %v2460 = vadd.f32 %v2082, 1.0
    %v2461 = vadd.f32 %v2084, 1.0
    %v2462 = vadd.f32 %v2086, 1.0
    %v2463 = vadd.f32 %v2088, 1.0
    %v2464 = vadd.f32 %v2090, 1.0
    %v2465 = vadd.f32 %v2092, 1.0
    %v2466 = vadd.f32 %v2094, 1.0
    %v2467 = vadd.f32 %v2096, 1.0
    %v2468 = vadd.f32 %v2098, 1.0
    %v2469 = vadd.f32 %v2100, 1.0
    %v2470 = vadd.f32 %v2102, 1.0
    %v2471 = vadd.f32 %v2104, 1.0
    %v2472 = vadd.f32 %v2106, 1.0
    %v2473 = vadd.f32 %v2108, 1.0
    %v2474 = vadd.f32 %v2110, 1.0
    %v2475 = vadd.f32 %v2112, 1.0
    %v2476 = vadd.f32 %v2114, 1.0
    %v2477 = vadd.f32 %v2116, 1.0
    %v2478 = vadd.f32 %v2118, 1.0
    %v2479 = vadd.f32 %v2120, 1.0
    %v2480 = vadd.f32 %v2122, 1.0
    %v2481 = vadd.f32 %v2124, 1.0
    %v2482 = vadd.f32 %v2126, 1.0
    %v2483 = vadd.f32 %v2128, 1.0
    %v2484 = vadd.f32 %v2130, 1.0
    %v2485 = vadd.f32 %v2132, 1.0
    %v2486 = vadd.f32 %v2134, 1.0
    %v2487 = vadd.f32 %v2136, 1.0
    %v2488 = vadd.f32 %v2138, 1.0
    %v2489 = vadd.f32 %v2140, 1.0
    %v2490 = vadd.f32 %v2142, 1.0
    %v2491 = vadd.f32 %v2144, 1.0
    %v2492 = vadd.f32 %v2146, 1.0
    %v2493 = vadd.f32 %v2148, 1.0
    %v2494 = vadd.f32 %v2150, 1.0
    %v2495 = vadd.f32 %v2152, 1.0
    %v2496 = vadd.f32 %v2154, 1.0
    %v2497 = vadd.f32 %v2156, 1.0
    %v2498 = vadd.f32 %v2158, 1.0
    %v2499 = vadd.f32 %v2160, 1.0
    %v2500 = vadd.f32 %v2162, 1.0
    %v2501 = vadd.f32 %v2164, 1.0
    %v2502 = vadd.f32 %v2166, 1.0
    %v2503 = vadd.f32 %v2168, 1.0
    %v2504 = vadd.f32 %v2170, 1.0
    %v2505 = vadd.f32 %v2172, 1.0
    %v2506 = vadd.f32 %v2174, 1.0
    %v2507 = vadd.f32 %v2176, 1.0
    %v2508 = vadd.f32 %v2178, 1.0
    %v2509 = vadd.f32 %v2180, 1.0
    %v2510 = vadd.f32 %v2182, 1.0
    %v2511 = vadd.f32 %v2184, 1.0
    %v2512 = vadd.f32 %v2186, 1.0
    %v2513 = vadd.f32 %v2188, 1.0
    %v2514 = vadd.f32 %v2190, 1.0
    %v2515 = vadd.f32 %v2192, 1.0
    %v2516 = vadd.f32 %v2194, 1.0
    %v2517 = vadd.f32 %v2196, 1.0
    %v2518 = vadd.f32 %v2198, 1.0
    %v2519 = vadd.f32 %v2200, 1.0
    %v2520 = vadd.f32 %v2202, 1.0
    %v2521 = vadd.f32 %v2204, 1.0
    %v2522 = vadd.f32 %v2206, 1.0
    %v2523 = vadd.f32 %v2208, 1.0
    %v2524 = vadd.f32 %v2210, 1.0
    %v2525 = vadd.f32 %v2212, 1.0
    %v2526 = vadd.f32 %v2214, 1.0
    %v2527 = vadd.f32 %v2216, 1.0
    %v2528 = vadd.f32 %v2218, 1.0
    %v2529 = vadd.f32 %v2220, 1.0
    %v2530 = vadd.f32 %v2222, 1.0
    %v2531 = vadd.f32 %v2224, 1.0
    %v2532 = vadd.f32 %v2226, 1.0
    %v2533 = vadd.f32 %v2228, 1.0
    %v2534 = vadd.f32 %v2230, 1.0
    %v2535 = vadd.f32 %v2232, 1.0
    %v2536 = vadd.f32 %v2234, 1.0
    %v2537 = vadd.f32 %v2236, 1.0
    %v2538 = vadd.f32 %v2238, 1.0
    %v2539 = vadd.f32 %v2240, 1.0
    %v2540 = vadd.f32 %v2242, 1.0
    %v2541 = vadd.f32 %v2244, 1.0
    %v2542 = vadd.f32 %v2246, 1.0
    %v2543 = vadd.f32 %v2248, 1.0
    %v2544 = vadd.f32 %v2250, 1.0
    %v2545 = vadd.f32 %v2252, 1.0
    %v2546 = vadd.f32 %v2254, 1.0
    %v2547 = vadd.f32 %v2256, 1.0
    %v2548 = vadd.f32 %v2258, 1.0
    %v2549 = vadd.f32 %v2260, 1.0
    %v2550 = vadd.f32 %v2262, 1.0
    %v2551 = vadd.f32 %v2264, 1.0
    %v2552 = vadd.f32 %v2266, 1.0
    %v2553 = vadd.f32 %v2268, 1.0
    %v2554 = vadd.f32 %v2270, 1.0
    %v2555 = vadd.f32 %v2272, 1.0
    %v2556 = vadd.f32 %v2274, 1.0
    %v2557 = vadd.f32 %v2276, 1.0
    %v2558 = vadd.f32 %v2278, 1.0
    %v2559 = vadd.f32 %v2280, 1.0
    %v2560 = vadd.f32 %v2282, 1.0
    %v2561 = vadd.f32 %v2284, 1.0
    %v2562 = vadd.f32 %v2286, 1.0
    %v2563 = vadd.f32 %v2288, 1.0
    %v2564 = vadd.f32 %v2290, 1.0
    %v2565 = vadd.f32 %v2292, 1.0
    %v2566 = vadd.f32 %v2294, 1.0
    %v2567 = vadd.f32 %v2296, 1.0
    %v2568 = vadd.f32 %v2298, 1.0
    %v2569 = vadd.f32 %v2300, 1.0
    %v2570 = vadd.f32 %v2302, 1.0
    %v2571 = vadd.f32 %v2304, 1.0
    %v2572 = vadd.f32 %v2306, 1.0
    %v2573 = vadd.f32 %v2308, 1.0
    %v2574 = vadd.f32 %v2310, 1.0
    %v2575 = vadd.f32 %v2312, 1.0
    %v2576 = vadd.f32 %v2314, 1.0
    %v2577 = vadd.f32 %v2316, 1.0
    %v2578 = vadd.f32 %v2318, 1.0
    %v2579 = vadd.f32 %v2320, 1.0
    %v2580 = vadd.f32 %v2322, 1.0
    %v2581 = vadd.f32 %v2324, 1.0
    %v2582 = vadd.f32 %v2326, 1.0
    %v2583 = vrcp.pop %v2327
    %v2584 = vmul.f32 %v23, %v2583
    %v2585 = vrcp.pop %v2328
    %v2586 = vmul.f32 %v24, %v2585
    %v2587 = vrcp.pop %v2329
    %v2588 = vmul.f32 %v25, %v2587
    %v2589 = vrcp.pop %v2330
    %v2590 = vmul.f32 %v26, %v2589
    %v2591 = vrcp.pop %v2331
    %v2592 = vmul.f32 %v27, %v2591
    %v2593 = vrcp.pop %v2332
    %v2594 = vmul.f32 %v28, %v2593
    %v2595 = vrcp.pop %v2333
    %v2596 = vmul.f32 %v29, %v2595
    %v2597 = vrcp.pop %v2334
    %v2598 = vmul.f32 %v30, %v2597
    %v2599 = vrcp.pop %v2335
    %v2600 = vmul.f32 %v31, %v2599
    %v2601 = vrcp.pop %v2336
    %v2602 = vmul.f32 %v32, %v2601
    %v2603 = vrcp.pop %v2337
    %v2604 = vmul.f32 %v33, %v2603
    %v2605 = vrcp.pop %v2338
    %v2606 = vmul.f32 %v34, %v2605
    %v2607 = vrcp.pop %v2339
    %v2608 = vmul.f32 %v35, %v2607
    %v2609 = vrcp.pop %v2340
    %v2610 = vmul.f32 %v36, %v2609
    %v2611 = vrcp.pop %v2341
    %v2612 = vmul.f32 %v37, %v2611
    %v2613 = vrcp.pop %v2342
    %v2614 = vmul.f32 %v38, %v2613
    %v2615 = vrcp.pop %v2343
    %v2616 = vmul.f32 %v39, %v2615
    %v2617 = vrcp.pop %v2344
    %v2618 = vmul.f32 %v40, %v2617
    %v2619 = vrcp.pop %v2345
    %v2620 = vmul.f32 %v41, %v2619
    %v2621 = vrcp.pop %v2346
    %v2622 = vmul.f32 %v42, %v2621
    %v2623 = vrcp.pop %v2347
    %v2624 = vmul.f32 %v43, %v2623
    %v2625 = vrcp.pop %v2348
    %v2626 = vmul.f32 %v44, %v2625
    %v2627 = vrcp.pop %v2349
    %v2628 = vmul.f32 %v45, %v2627
    %v2629 = vrcp.pop %v2350
    %v2630 = vmul.f32 %v46, %v2629
    %v2631 = vrcp.pop %v2351
    %v2632 = vmul.f32 %v47, %v2631
    %v2633 = vrcp.pop %v2352
    %v2634 = vmul.f32 %v48, %v2633
    %v2635 = vrcp.pop %v2353
    %v2636 = vmul.f32 %v49, %v2635
    %v2637 = vrcp.pop %v2354
    %v2638 = vmul.f32 %v50, %v2637
    %v2639 = vrcp.pop %v2355
    %v2640 = vmul.f32 %v51, %v2639
    %v2641 = vrcp.pop %v2356
    %v2642 = vmul.f32 %v52, %v2641
    %v2643 = vrcp.pop %v2357
    %v2644 = vmul.f32 %v53, %v2643
    %v2645 = vrcp.pop %v2358
    %v2646 = vmul.f32 %v54, %v2645
    %v2647 = vrcp.pop %v2359
    %v2648 = vmul.f32 %v55, %v2647
    %v2649 = vrcp.pop %v2360
    %v2650 = vmul.f32 %v56, %v2649
    %v2651 = vrcp.pop %v2361
    %v2652 = vmul.f32 %v57, %v2651
    %v2653 = vrcp.pop %v2362
    %v2654 = vmul.f32 %v58, %v2653
    %v2655 = vrcp.pop %v2363
    %v2656 = vmul.f32 %v59, %v2655
    %v2657 = vrcp.pop %v2364
    %v2658 = vmul.f32 %v60, %v2657
    %v2659 = vrcp.pop %v2365
    %v2660 = vmul.f32 %v61, %v2659
    %v2661 = vrcp.pop %v2366
    %v2662 = vmul.f32 %v62, %v2661
    %v2663 = vrcp.pop %v2367
    %v2664 = vmul.f32 %v63, %v2663
    %v2665 = vrcp.pop %v2368
    %v2666 = vmul.f32 %v64, %v2665
    %v2667 = vrcp.pop %v2369
    %v2668 = vmul.f32 %v65, %v2667
    %v2669 = vrcp.pop %v2370
    %v2670 = vmul.f32 %v66, %v2669
    %v2671 = vrcp.pop %v2371
    %v2672 = vmul.f32 %v67, %v2671
    %v2673 = vrcp.pop %v2372
    %v2674 = vmul.f32 %v68, %v2673
    %v2675 = vrcp.pop %v2373
    %v2676 = vmul.f32 %v69, %v2675
    %v2677 = vrcp.pop %v2374
    %v2678 = vmul.f32 %v70, %v2677
    %v2679 = vrcp.pop %v2375
    %v2680 = vmul.f32 %v71, %v2679
    %v2681 = vrcp.pop %v2376
    %v2682 = vmul.f32 %v72, %v2681
    %v2683 = vrcp.pop %v2377
    %v2684 = vmul.f32 %v73, %v2683
    %v2685 = vrcp.pop %v2378
    %v2686 = vmul.f32 %v74, %v2685
    %v2687 = vrcp.pop %v2379
    %v2688 = vmul.f32 %v75, %v2687
    %v2689 = vrcp.pop %v2380
    %v2690 = vmul.f32 %v76, %v2689
    %v2691 = vrcp.pop %v2381
    %v2692 = vmul.f32 %v77, %v2691
    %v2693 = vrcp.pop %v2382
    %v2694 = vmul.f32 %v78, %v2693
    %v2695 = vrcp.pop %v2383
    %v2696 = vmul.f32 %v79, %v2695
    %v2697 = vrcp.pop %v2384
    %v2698 = vmul.f32 %v80, %v2697
    %v2699 = vrcp.pop %v2385
    %v2700 = vmul.f32 %v81, %v2699
    %v2701 = vrcp.pop %v2386
    %v2702 = vmul.f32 %v82, %v2701
    %v2703 = vrcp.pop %v2387
    %v2704 = vmul.f32 %v83, %v2703
    %v2705 = vrcp.pop %v2388
    %v2706 = vmul.f32 %v84, %v2705
    %v2707 = vrcp.pop %v2389
    %v2708 = vmul.f32 %v85, %v2707
    %v2709 = vrcp.pop %v2390
    %v2710 = vmul.f32 %v86, %v2709
    %v2711 = vrcp.pop %v2391
    %v2712 = vmul.f32 %v87, %v2711
    %v2713 = vrcp.pop %v2392
    %v2714 = vmul.f32 %v88, %v2713
    %v2715 = vrcp.pop %v2393
    %v2716 = vmul.f32 %v89, %v2715
    %v2717 = vrcp.pop %v2394
    %v2718 = vmul.f32 %v90, %v2717
    %v2719 = vrcp.pop %v2395
    %v2720 = vmul.f32 %v91, %v2719
    %v2721 = vrcp.pop %v2396
    %v2722 = vmul.f32 %v92, %v2721
    %v2723 = vrcp.pop %v2397
    %v2724 = vmul.f32 %v93, %v2723
    %v2725 = vrcp.pop %v2398
    %v2726 = vmul.f32 %v94, %v2725
    %v2727 = vrcp.pop %v2399
    %v2728 = vmul.f32 %v95, %v2727
    %v2729 = vrcp.pop %v2400
    %v2730 = vmul.f32 %v96, %v2729
    %v2731 = vrcp.pop %v2401
    %v2732 = vmul.f32 %v97, %v2731
    %v2733 = vrcp.pop %v2402
    %v2734 = vmul.f32 %v98, %v2733
    %v2735 = vrcp.pop %v2403
    %v2736 = vmul.f32 %v99, %v2735
    %v2737 = vrcp.pop %v2404
    %v2738 = vmul.f32 %v100, %v2737
    %v2739 = vrcp.pop %v2405
    %v2740 = vmul.f32 %v101, %v2739
    %v2741 = vrcp.pop %v2406
    %v2742 = vmul.f32 %v102, %v2741
    %v2743 = vrcp.pop %v2407
    %v2744 = vmul.f32 %v103, %v2743
    %v2745 = vrcp.pop %v2408
    %v2746 = vmul.f32 %v104, %v2745
    %v2747 = vrcp.pop %v2409
    %v2748 = vmul.f32 %v105, %v2747
    %v2749 = vrcp.pop %v2410
    %v2750 = vmul.f32 %v106, %v2749
    %v2751 = vrcp.pop %v2411
    %v2752 = vmul.f32 %v107, %v2751
    %v2753 = vrcp.pop %v2412
    %v2754 = vmul.f32 %v108, %v2753
    %v2755 = vrcp.pop %v2413
    %v2756 = vmul.f32 %v109, %v2755
    %v2757 = vrcp.pop %v2414
    %v2758 = vmul.f32 %v110, %v2757
    %v2759 = vrcp.pop %v2415
    %v2760 = vmul.f32 %v111, %v2759
    %v2761 = vrcp.pop %v2416
    %v2762 = vmul.f32 %v112, %v2761
    %v2763 = vrcp.pop %v2417
    %v2764 = vmul.f32 %v113, %v2763
    %v2765 = vrcp.pop %v2418
    %v2766 = vmul.f32 %v114, %v2765
    %v2767 = vrcp.pop %v2419
    %v2768 = vmul.f32 %v115, %v2767
    %v2769 = vrcp.pop %v2420
    %v2770 = vmul.f32 %v116, %v2769
    %v2771 = vrcp.pop %v2421
    %v2772 = vmul.f32 %v117, %v2771
    %v2773 = vrcp.pop %v2422
    %v2774 = vmul.f32 %v118, %v2773
    %v2775 = vrcp.pop %v2423
    %v2776 = vmul.f32 %v119, %v2775
    %v2777 = vrcp.pop %v2424
    %v2778 = vmul.f32 %v120, %v2777
    %v2779 = vrcp.pop %v2425
    %v2780 = vmul.f32 %v121, %v2779
    %v2781 = vrcp.pop %v2426
    %v2782 = vmul.f32 %v122, %v2781
    %v2783 = vrcp.pop %v2427
    %v2784 = vmul.f32 %v123, %v2783
    %v2785 = vrcp.pop %v2428
    %v2786 = vmul.f32 %v124, %v2785
    %v2787 = vrcp.pop %v2429
    %v2788 = vmul.f32 %v125, %v2787
    %v2789 = vrcp.pop %v2430
    %v2790 = vmul.f32 %v126, %v2789
    %v2791 = vrcp.pop %v2431
    %v2792 = vmul.f32 %v127, %v2791
    %v2793 = vrcp.pop %v2432
    %v2794 = vmul.f32 %v128, %v2793
    %v2795 = vrcp.pop %v2433
    %v2796 = vmul.f32 %v129, %v2795
    %v2797 = vrcp.pop %v2434
    %v2798 = vmul.f32 %v130, %v2797
    %v2799 = vrcp.pop %v2435
    %v2800 = vmul.f32 %v131, %v2799
    %v2801 = vrcp.pop %v2436
    %v2802 = vmul.f32 %v132, %v2801
    %v2803 = vrcp.pop %v2437
    %v2804 = vmul.f32 %v133, %v2803
    %v2805 = vrcp.pop %v2438
    %v2806 = vmul.f32 %v134, %v2805
    %v2807 = vrcp.pop %v2439
    %v2808 = vmul.f32 %v135, %v2807
    %v2809 = vrcp.pop %v2440
    %v2810 = vmul.f32 %v136, %v2809
    %v2811 = vrcp.pop %v2441
    %v2812 = vmul.f32 %v137, %v2811
    %v2813 = vrcp.pop %v2442
    %v2814 = vmul.f32 %v138, %v2813
    %v2815 = vrcp.pop %v2443
    %v2816 = vmul.f32 %v139, %v2815
    %v2817 = vrcp.pop %v2444
    %v2818 = vmul.f32 %v140, %v2817
    %v2819 = vrcp.pop %v2445
    %v2820 = vmul.f32 %v141, %v2819
    %v2821 = vrcp.pop %v2446
    %v2822 = vmul.f32 %v142, %v2821
    %v2823 = vrcp.pop %v2447
    %v2824 = vmul.f32 %v143, %v2823
    %v2825 = vrcp.pop %v2448
    %v2826 = vmul.f32 %v144, %v2825
    %v2827 = vrcp.pop %v2449
    %v2828 = vmul.f32 %v145, %v2827
    %v2829 = vrcp.pop %v2450
    %v2830 = vmul.f32 %v146, %v2829
    %v2831 = vrcp.pop %v2451
    %v2832 = vmul.f32 %v147, %v2831
    %v2833 = vrcp.pop %v2452
    %v2834 = vmul.f32 %v148, %v2833
    %v2835 = vrcp.pop %v2453
    %v2836 = vmul.f32 %v149, %v2835
    %v2837 = vrcp.pop %v2454
    %v2838 = vmul.f32 %v150, %v2837
    %v2839 = vrcp.pop %v2455
    %v2840 = vmul.f32 %v151, %v2839
    %v2841 = vrcp.pop %v2456
    %v2842 = vmul.f32 %v152, %v2841
    %v2843 = vrcp.pop %v2457
    %v2844 = vmul.f32 %v153, %v2843
    %v2845 = vrcp.pop %v2458
    %v2846 = vmul.f32 %v154, %v2845
    %v2847 = vrcp.pop %v2459
    %v2848 = vmul.f32 %v155, %v2847
    %v2849 = vrcp.pop %v2460
    %v2850 = vmul.f32 %v156, %v2849
    %v2851 = vrcp.pop %v2461
    %v2852 = vmul.f32 %v157, %v2851
    %v2853 = vrcp.pop %v2462
    %v2854 = vmul.f32 %v158, %v2853
    %v2855 = vrcp.pop %v2463
    %v2856 = vmul.f32 %v159, %v2855
    %v2857 = vrcp.pop %v2464
    %v2858 = vmul.f32 %v160, %v2857
    %v2859 = vrcp.pop %v2465
    %v2860 = vmul.f32 %v161, %v2859
    %v2861 = vrcp.pop %v2466
    %v2862 = vmul.f32 %v162, %v2861
    %v2863 = vrcp.pop %v2467
    %v2864 = vmul.f32 %v163, %v2863
    %v2865 = vrcp.pop %v2468
    %v2866 = vmul.f32 %v164, %v2865
    %v2867 = vrcp.pop %v2469
    %v2868 = vmul.f32 %v165, %v2867
    %v2869 = vrcp.pop %v2470
    %v2870 = vmul.f32 %v166, %v2869
    %v2871 = vrcp.pop %v2471
    %v2872 = vmul.f32 %v167, %v2871
    %v2873 = vrcp.pop %v2472
    %v2874 = vmul.f32 %v168, %v2873
    %v2875 = vrcp.pop %v2473
    %v2876 = vmul.f32 %v169, %v2875
    %v2877 = vrcp.pop %v2474
    %v2878 = vmul.f32 %v170, %v2877
    %v2879 = vrcp.pop %v2475
    %v2880 = vmul.f32 %v171, %v2879
    %v2881 = vrcp.pop %v2476
    %v2882 = vmul.f32 %v172, %v2881
    %v2883 = vrcp.pop %v2477
    %v2884 = vmul.f32 %v173, %v2883
    %v2885 = vrcp.pop %v2478
    %v2886 = vmul.f32 %v174, %v2885
    %v2887 = vrcp.pop %v2479
    %v2888 = vmul.f32 %v175, %v2887
    %v2889 = vrcp.pop %v2480
    %v2890 = vmul.f32 %v176, %v2889
    %v2891 = vrcp.pop %v2481
    %v2892 = vmul.f32 %v177, %v2891
    %v2893 = vrcp.pop %v2482
    %v2894 = vmul.f32 %v178, %v2893
    %v2895 = vrcp.pop %v2483
    %v2896 = vmul.f32 %v179, %v2895
    %v2897 = vrcp.pop %v2484
    %v2898 = vmul.f32 %v180, %v2897
    %v2899 = vrcp.pop %v2485
    %v2900 = vmul.f32 %v181, %v2899
    %v2901 = vrcp.pop %v2486
    %v2902 = vmul.f32 %v182, %v2901
    %v2903 = vrcp.pop %v2487
    %v2904 = vmul.f32 %v183, %v2903
    %v2905 = vrcp.pop %v2488
    %v2906 = vmul.f32 %v184, %v2905
    %v2907 = vrcp.pop %v2489
    %v2908 = vmul.f32 %v185, %v2907
    %v2909 = vrcp.pop %v2490
    %v2910 = vmul.f32 %v186, %v2909
    %v2911 = vrcp.pop %v2491
    %v2912 = vmul.f32 %v187, %v2911
    %v2913 = vrcp.pop %v2492
    %v2914 = vmul.f32 %v188, %v2913
    %v2915 = vrcp.pop %v2493
    %v2916 = vmul.f32 %v189, %v2915
    %v2917 = vrcp.pop %v2494
    %v2918 = vmul.f32 %v190, %v2917
    %v2919 = vrcp.pop %v2495
    %v2920 = vmul.f32 %v191, %v2919
    %v2921 = vrcp.pop %v2496
    %v2922 = vmul.f32 %v192, %v2921
    %v2923 = vrcp.pop %v2497
    %v2924 = vmul.f32 %v193, %v2923
    %v2925 = vrcp.pop %v2498
    %v2926 = vmul.f32 %v194, %v2925
    %v2927 = vrcp.pop %v2499
    %v2928 = vmul.f32 %v195, %v2927
    %v2929 = vrcp.pop %v2500
    %v2930 = vmul.f32 %v196, %v2929
    %v2931 = vrcp.pop %v2501
    %v2932 = vmul.f32 %v197, %v2931
    %v2933 = vrcp.pop %v2502
    %v2934 = vmul.f32 %v198, %v2933
    %v2935 = vrcp.pop %v2503
    %v2936 = vmul.f32 %v199, %v2935
    %v2937 = vrcp.pop %v2504
    %v2938 = vmul.f32 %v200, %v2937
    %v2939 = vrcp.pop %v2505
    %v2940 = vmul.f32 %v201, %v2939
    %v2941 = vrcp.pop %v2506
    %v2942 = vmul.f32 %v202, %v2941
    %v2943 = vrcp.pop %v2507
    %v2944 = vmul.f32 %v203, %v2943
    %v2945 = vrcp.pop %v2508
    %v2946 = vmul.f32 %v204, %v2945
    %v2947 = vrcp.pop %v2509
    %v2948 = vmul.f32 %v205, %v2947
    %v2949 = vrcp.pop %v2510
    %v2950 = vmul.f32 %v206, %v2949
    %v2951 = vrcp.pop %v2511
    %v2952 = vmul.f32 %v207, %v2951
    %v2953 = vrcp.pop %v2512
    %v2954 = vmul.f32 %v208, %v2953
    %v2955 = vrcp.pop %v2513
    %v2956 = vmul.f32 %v209, %v2955
    %v2957 = vrcp.pop %v2514
    %v2958 = vmul.f32 %v210, %v2957
    %v2959 = vrcp.pop %v2515
    %v2960 = vmul.f32 %v211, %v2959
    %v2961 = vrcp.pop %v2516
    %v2962 = vmul.f32 %v212, %v2961
    %v2963 = vrcp.pop %v2517
    %v2964 = vmul.f32 %v213, %v2963
    %v2965 = vrcp.pop %v2518
    %v2966 = vmul.f32 %v214, %v2965
    %v2967 = vrcp.pop %v2519
    %v2968 = vmul.f32 %v215, %v2967
    %v2969 = vrcp.pop %v2520
    %v2970 = vmul.f32 %v216, %v2969
    %v2971 = vrcp.pop %v2521
    %v2972 = vmul.f32 %v217, %v2971
    %v2973 = vrcp.pop %v2522
    %v2974 = vmul.f32 %v218, %v2973
    %v2975 = vrcp.pop %v2523
    %v2976 = vmul.f32 %v219, %v2975
    %v2977 = vrcp.pop %v2524
    %v2978 = vmul.f32 %v220, %v2977
    %v2979 = vrcp.pop %v2525
    %v2980 = vmul.f32 %v221, %v2979
    %v2981 = vrcp.pop %v2526
    %v2982 = vmul.f32 %v222, %v2981
    %v2983 = vrcp.pop %v2527
    %v2984 = vmul.f32 %v223, %v2983
    %v2985 = vrcp.pop %v2528
    %v2986 = vmul.f32 %v224, %v2985
    %v2987 = vrcp.pop %v2529
    %v2988 = vmul.f32 %v225, %v2987
    %v2989 = vrcp.pop %v2530
    %v2990 = vmul.f32 %v226, %v2989
    %v2991 = vrcp.pop %v2531
    %v2992 = vmul.f32 %v227, %v2991
    %v2993 = vrcp.pop %v2532
    %v2994 = vmul.f32 %v228, %v2993
    %v2995 = vrcp.pop %v2533
    %v2996 = vmul.f32 %v229, %v2995
    %v2997 = vrcp.pop %v2534
    %v2998 = vmul.f32 %v230, %v2997
    %v2999 = vrcp.pop %v2535
    %v3000 = vmul.f32 %v231, %v2999
    %v3001 = vrcp.pop %v2536
    %v3002 = vmul.f32 %v232, %v3001
    %v3003 = vrcp.pop %v2537
    %v3004 = vmul.f32 %v233, %v3003
    %v3005 = vrcp.pop %v2538
    %v3006 = vmul.f32 %v234, %v3005
    %v3007 = vrcp.pop %v2539
    %v3008 = vmul.f32 %v235, %v3007
    %v3009 = vrcp.pop %v2540
    %v3010 = vmul.f32 %v236, %v3009
    %v3011 = vrcp.pop %v2541
    %v3012 = vmul.f32 %v237, %v3011
    %v3013 = vrcp.pop %v2542
    %v3014 = vmul.f32 %v238, %v3013
    %v3015 = vrcp.pop %v2543
    %v3016 = vmul.f32 %v239, %v3015
    %v3017 = vrcp.pop %v2544
    %v3018 = vmul.f32 %v240, %v3017
    %v3019 = vrcp.pop %v2545
    %v3020 = vmul.f32 %v241, %v3019
    %v3021 = vrcp.pop %v2546
    %v3022 = vmul.f32 %v242, %v3021
    %v3023 = vrcp.pop %v2547
    %v3024 = vmul.f32 %v243, %v3023
    %v3025 = vrcp.pop %v2548
    %v3026 = vmul.f32 %v244, %v3025
    %v3027 = vrcp.pop %v2549
    %v3028 = vmul.f32 %v245, %v3027
    %v3029 = vrcp.pop %v2550
    %v3030 = vmul.f32 %v246, %v3029
    %v3031 = vrcp.pop %v2551
    %v3032 = vmul.f32 %v247, %v3031
    %v3033 = vrcp.pop %v2552
    %v3034 = vmul.f32 %v248, %v3033
    %v3035 = vrcp.pop %v2553
    %v3036 = vmul.f32 %v249, %v3035
    %v3037 = vrcp.pop %v2554
    %v3038 = vmul.f32 %v250, %v3037
    %v3039 = vrcp.pop %v2555
    %v3040 = vmul.f32 %v251, %v3039
    %v3041 = vrcp.pop %v2556
    %v3042 = vmul.f32 %v252, %v3041
    %v3043 = vrcp.pop %v2557
    %v3044 = vmul.f32 %v253, %v3043
    %v3045 = vrcp.pop %v2558
    %v3046 = vmul.f32 %v254, %v3045
    %v3047 = vrcp.pop %v2559
    %v3048 = vmul.f32 %v255, %v3047
    %v3049 = vrcp.pop %v2560
    %v3050 = vmul.f32 %v256, %v3049
    %v3051 = vrcp.pop %v2561
    %v3052 = vmul.f32 %v257, %v3051
    %v3053 = vrcp.pop %v2562
    %v3054 = vmul.f32 %v258, %v3053
    %v3055 = vrcp.pop %v2563
    %v3056 = vmul.f32 %v259, %v3055
    %v3057 = vrcp.pop %v2564
    %v3058 = vmul.f32 %v260, %v3057
    %v3059 = vrcp.pop %v2565
    %v3060 = vmul.f32 %v261, %v3059
    %v3061 = vrcp.pop %v2566
    %v3062 = vmul.f32 %v262, %v3061
    %v3063 = vrcp.pop %v2567
    %v3064 = vmul.f32 %v263, %v3063
    %v3065 = vrcp.pop %v2568
    %v3066 = vmul.f32 %v264, %v3065
    %v3067 = vrcp.pop %v2569
    %v3068 = vmul.f32 %v265, %v3067
    %v3069 = vrcp.pop %v2570
    %v3070 = vmul.f32 %v266, %v3069
    %v3071 = vrcp.pop %v2571
    %v3072 = vmul.f32 %v267, %v3071
    %v3073 = vrcp.pop %v2572
    %v3074 = vmul.f32 %v268, %v3073
    %v3075 = vrcp.pop %v2573
    %v3076 = vmul.f32 %v269, %v3075
    %v3077 = vrcp.pop %v2574
    %v3078 = vmul.f32 %v270, %v3077
    %v3079 = vrcp.pop %v2575
    %v3080 = vmul.f32 %v271, %v3079
    %v3081 = vrcp.pop %v2576
    %v3082 = vmul.f32 %v272, %v3081
    %v3083 = vrcp.pop %v2577
    %v3084 = vmul.f32 %v273, %v3083
    %v3085 = vrcp.pop %v2578
    %v3086 = vmul.f32 %v274, %v3085
    %v3087 = vrcp.pop %v2579
    %v3088 = vmul.f32 %v275, %v3087
    %v3089 = vrcp.pop %v2580
    %v3090 = vmul.f32 %v276, %v3089
    %v3091 = vrcp.pop %v2581
    %v3092 = vmul.f32 %v277, %v3091
    %v3093 = vrcp.pop %v2582
    %v3094 = vmul.f32 %v278, %v3093
    %3095 = vst [vmem:[#allocation5] sm:$0xff] %v2584
    %3096 = vst [vmem:[#allocation5 + $0x8] sm:$0xff] %v2586
    %3097 = vst [vmem:[#allocation5 + $0x10] sm:$0xff] %v2588
    %3098 = vst [vmem:[#allocation5 + $0x18] sm:$0xff] %v2590
    %3099 = vst [vmem:[#allocation5 + $0x20] sm:$0xff] %v2592
    %3100 = vst [vmem:[#allocation5 + $0x28] sm:$0xff] %v2594
    %3101 = vst [vmem:[#allocation5 + $0x30] sm:$0xff] %v2596
    %3102 = vst [vmem:[#allocation5 + $0x38] sm:$0xff] %v2598
    %3103 = vst [vmem:[#allocation5 + $0x40] sm:$0xff] %v2600
    %3104 = vst [vmem:[#allocation5 + $0x48] sm:$0xff] %v2602
    %3105 = vst [vmem:[#allocation5 + $0x50] sm:$0xff] %v2604
    %3106 = vst [vmem:[#allocation5 + $0x58] sm:$0xff] %v2606
    %3107 = vst [vmem:[#allocation5 + $0x60] sm:$0xff] %v2608
    %3108 = vst [vmem:[#allocation5 + $0x68] sm:$0xff] %v2610
    %3109 = vst [vmem:[#allocation5 + $0x70] sm:$0xff] %v2612
    %3110 = vst [vmem:[#allocation5 + $0x78] sm:$0xff] %v2614
    %3111 = vst [vmem:[#allocation5 + $0x80] sm:$0xff] %v2616
    %3112 = vst [vmem:[#allocation5 + $0x88] sm:$0xff] %v2618
    %3113 = vst [vmem:[#allocation5 + $0x90] sm:$0xff] %v2620
    %3114 = vst [vmem:[#allocation5 + $0x98] sm:$0xff] %v2622
    %3115 = vst [vmem:[#allocation5 + $0xa0] sm:$0xff] %v2624
    %3116 = vst [vmem:[#allocation5 + $0xa8] sm:$0xff] %v2626
    %3117 = vst [vmem:[#allocation5 + $0xb0] sm:$0xff] %v2628
    %3118 = vst [vmem:[#allocation5 + $0xb8] sm:$0xff] %v2630
    %3119 = vst [vmem:[#allocation5 + $0xc0] sm:$0xff] %v2632
    %3120 = vst [vmem:[#allocation5 + $0xc8] sm:$0xff] %v2634
    %3121 = vst [vmem:[#allocation5 + $0xd0] sm:$0xff] %v2636
    %3122 = vst [vmem:[#allocation5 + $0xd8] sm:$0xff] %v2638
    %3123 = vst [vmem:[#allocation5 + $0xe0] sm:$0xff] %v2640
    %3124 = vst [vmem:[#allocation5 + $0xe8] sm:$0xff] %v2642
    %3125 = vst [vmem:[#allocation5 + $0xf0] sm:$0xff] %v2644
    %3126 = vst [vmem:[#allocation5 + $0xf8] sm:$0xff] %v2646
    %3127 = vst [vmem:[#allocation5 + $0x100] sm:$0xff] %v2648
    %3128 = vst [vmem:[#allocation5 + $0x108] sm:$0xff] %v2650
    %3129 = vst [vmem:[#allocation5 + $0x110] sm:$0xff] %v2652
    %3130 = vst [vmem:[#allocation5 + $0x118] sm:$0xff] %v2654
    %3131 = vst [vmem:[#allocation5 + $0x120] sm:$0xff] %v2656
    %3132 = vst [vmem:[#allocation5 + $0x128] sm:$0xff] %v2658
    %3133 = vst [vmem:[#allocation5 + $0x130] sm:$0xff] %v2660
    %3134 = vst [vmem:[#allocation5 + $0x138] sm:$0xff] %v2662
    %3135 = vst [vmem:[#allocation5 + $0x140] sm:$0xff] %v2664
    %3136 = vst [vmem:[#allocation5 + $0x148] sm:$0xff] %v2666
    %3137 = vst [vmem:[#allocation5 + $0x150] sm:$0xff] %v2668
    %3138 = vst [vmem:[#allocation5 + $0x158] sm:$0xff] %v2670
    %3139 = vst [vmem:[#allocation5 + $0x160] sm:$0xff] %v2672
    %3140 = vst [vmem:[#allocation5 + $0x168] sm:$0xff] %v2674
    %3141 = vst [vmem:[#allocation5 + $0x170] sm:$0xff] %v2676
    %3142 = vst [vmem:[#allocation5 + $0x178] sm:$0xff] %v2678
    %3143 = vst [vmem:[#allocation5 + $0x180] sm:$0xff] %v2680
    %3144 = vst [vmem:[#allocation5 + $0x188] sm:$0xff] %v2682
    %3145 = vst [vmem:[#allocation5 + $0x190] sm:$0xff] %v2684
    %3146 = vst [vmem:[#allocation5 + $0x198] sm:$0xff] %v2686
    %3147 = vst [vmem:[#allocation5 + $0x1a0] sm:$0xff] %v2688
    %3148 = vst [vmem:[#allocation5 + $0x1a8] sm:$0xff] %v2690
    %3149 = vst [vmem:[#allocation5 + $0x1b0] sm:$0xff] %v2692
    %3150 = vst [vmem:[#allocation5 + $0x1b8] sm:$0xff] %v2694
    %3151 = vst [vmem:[#allocation5 + $0x1c0] sm:$0xff] %v2696
    %3152 = vst [vmem:[#allocation5 + $0x1c8] sm:$0xff] %v2698
    %3153 = vst [vmem:[#allocation5 + $0x1d0] sm:$0xff] %v2700
    %3154 = vst [vmem:[#allocation5 + $0x1d8] sm:$0xff] %v2702
    %3155 = vst [vmem:[#allocation5 + $0x1e0] sm:$0xff] %v2704
    %3156 = vst [vmem:[#allocation5 + $0x1e8] sm:$0xff] %v2706
    %3157 = vst [vmem:[#allocation5 + $0x1f0] sm:$0xff] %v2708
    %3158 = vst [vmem:[#allocation5 + $0x1f8] sm:$0xff] %v2710
    %3159 = vst [vmem:[#allocation5 + $0x200] sm:$0xff] %v2712
    %3160 = vst [vmem:[#allocation5 + $0x208] sm:$0xff] %v2714
    %3161 = vst [vmem:[#allocation5 + $0x210] sm:$0xff] %v2716
    %3162 = vst [vmem:[#allocation5 + $0x218] sm:$0xff] %v2718
    %3163 = vst [vmem:[#allocation5 + $0x220] sm:$0xff] %v2720
    %3164 = vst [vmem:[#allocation5 + $0x228] sm:$0xff] %v2722
    %3165 = vst [vmem:[#allocation5 + $0x230] sm:$0xff] %v2724
    %3166 = vst [vmem:[#allocation5 + $0x238] sm:$0xff] %v2726
    %3167 = vst [vmem:[#allocation5 + $0x240] sm:$0xff] %v2728
    %3168 = vst [vmem:[#allocation5 + $0x248] sm:$0xff] %v2730
    %3169 = vst [vmem:[#allocation5 + $0x250] sm:$0xff] %v2732
    %3170 = vst [vmem:[#allocation5 + $0x258] sm:$0xff] %v2734
    %3171 = vst [vmem:[#allocation5 + $0x260] sm:$0xff] %v2736
    %3172 = vst [vmem:[#allocation5 + $0x268] sm:$0xff] %v2738
    %3173 = vst [vmem:[#allocation5 + $0x270] sm:$0xff] %v2740
    %3174 = vst [vmem:[#allocation5 + $0x278] sm:$0xff] %v2742
    %3175 = vst [vmem:[#allocation5 + $0x280] sm:$0xff] %v2744
    %3176 = vst [vmem:[#allocation5 + $0x288] sm:$0xff] %v2746
    %3177 = vst [vmem:[#allocation5 + $0x290] sm:$0xff] %v2748
    %3178 = vst [vmem:[#allocation5 + $0x298] sm:$0xff] %v2750
    %3179 = vst [vmem:[#allocation5 + $0x2a0] sm:$0xff] %v2752
    %3180 = vst [vmem:[#allocation5 + $0x2a8] sm:$0xff] %v2754
    %3181 = vst [vmem:[#allocation5 + $0x2b0] sm:$0xff] %v2756
    %3182 = vst [vmem:[#allocation5 + $0x2b8] sm:$0xff] %v2758
    %3183 = vst [vmem:[#allocation5 + $0x2c0] sm:$0xff] %v2760
    %3184 = vst [vmem:[#allocation5 + $0x2c8] sm:$0xff] %v2762
    %3185 = vst [vmem:[#allocation5 + $0x2d0] sm:$0xff] %v2764
    %3186 = vst [vmem:[#allocation5 + $0x2d8] sm:$0xff] %v2766
    %3187 = vst [vmem:[#allocation5 + $0x2e0] sm:$0xff] %v2768
    %3188 = vst [vmem:[#allocation5 + $0x2e8] sm:$0xff] %v2770
    %3189 = vst [vmem:[#allocation5 + $0x2f0] sm:$0xff] %v2772
    %3190 = vst [vmem:[#allocation5 + $0x2f8] sm:$0xff] %v2774
    %3191 = vst [vmem:[#allocation5 + $0x300] sm:$0xff] %v2776
    %3192 = vst [vmem:[#allocation5 + $0x308] sm:$0xff] %v2778
    %3193 = vst [vmem:[#allocation5 + $0x310] sm:$0xff] %v2780
    %3194 = vst [vmem:[#allocation5 + $0x318] sm:$0xff] %v2782
    %3195 = vst [vmem:[#allocation5 + $0x320] sm:$0xff] %v2784
    %3196 = vst [vmem:[#allocation5 + $0x328] sm:$0xff] %v2786
    %3197 = vst [vmem:[#allocation5 + $0x330] sm:$0xff] %v2788
    %3198 = vst [vmem:[#allocation5 + $0x338] sm:$0xff] %v2790
    %3199 = vst [vmem:[#allocation5 + $0x340] sm:$0xff] %v2792
    %3200 = vst [vmem:[#allocation5 + $0x348] sm:$0xff] %v2794
    %3201 = vst [vmem:[#allocation5 + $0x350] sm:$0xff] %v2796
    %3202 = vst [vmem:[#allocation5 + $0x358] sm:$0xff] %v2798
    %3203 = vst [vmem:[#allocation5 + $0x360] sm:$0xff] %v2800
    %3204 = vst [vmem:[#allocation5 + $0x368] sm:$0xff] %v2802
    %3205 = vst [vmem:[#allocation5 + $0x370] sm:$0xff] %v2804
    %3206 = vst [vmem:[#allocation5 + $0x378] sm:$0xff] %v2806
    %3207 = vst [vmem:[#allocation5 + $0x380] sm:$0xff] %v2808
    %3208 = vst [vmem:[#allocation5 + $0x388] sm:$0xff] %v2810
    %3209 = vst [vmem:[#allocation5 + $0x390] sm:$0xff] %v2812
    %3210 = vst [vmem:[#allocation5 + $0x398] sm:$0xff] %v2814
    %3211 = vst [vmem:[#allocation5 + $0x3a0] sm:$0xff] %v2816
    %3212 = vst [vmem:[#allocation5 + $0x3a8] sm:$0xff] %v2818
    %3213 = vst [vmem:[#allocation5 + $0x3b0] sm:$0xff] %v2820
    %3214 = vst [vmem:[#allocation5 + $0x3b8] sm:$0xff] %v2822
    %3215 = vst [vmem:[#allocation5 + $0x3c0] sm:$0xff] %v2824
    %3216 = vst [vmem:[#allocation5 + $0x3c8] sm:$0xff] %v2826
    %3217 = vst [vmem:[#allocation5 + $0x3d0] sm:$0xff] %v2828
    %3218 = vst [vmem:[#allocation5 + $0x3d8] sm:$0xff] %v2830
    %3219 = vst [vmem:[#allocation5 + $0x3e0] sm:$0xff] %v2832
    %3220 = vst [vmem:[#allocation5 + $0x3e8] sm:$0xff] %v2834
    %3221 = vst [vmem:[#allocation5 + $0x3f0] sm:$0xff] %v2836
    %3222 = vst [vmem:[#allocation5 + $0x3f8] sm:$0xff] %v2838
    %3223 = vst [vmem:[#allocation5 + $0x400] sm:$0xff] %v2840
    %3224 = vst [vmem:[#allocation5 + $0x408] sm:$0xff] %v2842
    %3225 = vst [vmem:[#allocation5 + $0x410] sm:$0xff] %v2844
    %3226 = vst [vmem:[#allocation5 + $0x418] sm:$0xff] %v2846
    %3227 = vst [vmem:[#allocation5 + $0x420] sm:$0xff] %v2848
    %3228 = vst [vmem:[#allocation5 + $0x428] sm:$0xff] %v2850
    %3229 = vst [vmem:[#allocation5 + $0x430] sm:$0xff] %v2852
    %3230 = vst [vmem:[#allocation5 + $0x438] sm:$0xff] %v2854
    %3231 = vst [vmem:[#allocation5 + $0x440] sm:$0xff] %v2856
    %3232 = vst [vmem:[#allocation5 + $0x448] sm:$0xff] %v2858
    %3233 = vst [vmem:[#allocation5 + $0x450] sm:$0xff] %v2860
    %3234 = vst [vmem:[#allocation5 + $0x458] sm:$0xff] %v2862
    %3235 = vst [vmem:[#allocation5 + $0x460] sm:$0xff] %v2864
    %3236 = vst [vmem:[#allocation5 + $0x468] sm:$0xff] %v2866
    %3237 = vst [vmem:[#allocation5 + $0x470] sm:$0xff] %v2868
    %3238 = vst [vmem:[#allocation5 + $0x478] sm:$0xff] %v2870
    %3239 = vst [vmem:[#allocation5 + $0x480] sm:$0xff] %v2872
    %3240 = vst [vmem:[#allocation5 + $0x488] sm:$0xff] %v2874
    %3241 = vst [vmem:[#allocation5 + $0x490] sm:$0xff] %v2876
    %3242 = vst [vmem:[#allocation5 + $0x498] sm:$0xff] %v2878
    %3243 = vst [vmem:[#allocation5 + $0x4a0] sm:$0xff] %v2880
    %3244 = vst [vmem:[#allocation5 + $0x4a8] sm:$0xff] %v2882
    %3245 = vst [vmem:[#allocation5 + $0x4b0] sm:$0xff] %v2884
    %3246 = vst [vmem:[#allocation5 + $0x4b8] sm:$0xff] %v2886
    %3247 = vst [vmem:[#allocation5 + $0x4c0] sm:$0xff] %v2888
    %3248 = vst [vmem:[#allocation5 + $0x4c8] sm:$0xff] %v2890
    %3249 = vst [vmem:[#allocation5 + $0x4d0] sm:$0xff] %v2892
    %3250 = vst [vmem:[#allocation5 + $0x4d8] sm:$0xff] %v2894
    %3251 = vst [vmem:[#allocation5 + $0x4e0] sm:$0xff] %v2896
    %3252 = vst [vmem:[#allocation5 + $0x4e8] sm:$0xff] %v2898
    %3253 = vst [vmem:[#allocation5 + $0x4f0] sm:$0xff] %v2900
    %3254 = vst [vmem:[#allocation5 + $0x4f8] sm:$0xff] %v2902
    %3255 = vst [vmem:[#allocation5 + $0x500] sm:$0xff] %v2904
    %3256 = vst [vmem:[#allocation5 + $0x508] sm:$0xff] %v2906
    %3257 = vst [vmem:[#allocation5 + $0x510] sm:$0xff] %v2908
    %3258 = vst [vmem:[#allocation5 + $0x518] sm:$0xff] %v2910
    %3259 = vst [vmem:[#allocation5 + $0x520] sm:$0xff] %v2912
    %3260 = vst [vmem:[#allocation5 + $0x528] sm:$0xff] %v2914
    %3261 = vst [vmem:[#allocation5 + $0x530] sm:$0xff] %v2916
    %3262 = vst [vmem:[#allocation5 + $0x538] sm:$0xff] %v2918
    %3263 = vst [vmem:[#allocation5 + $0x540] sm:$0xff] %v2920
    %3264 = vst [vmem:[#allocation5 + $0x548] sm:$0xff] %v2922
    %3265 = vst [vmem:[#allocation5 + $0x550] sm:$0xff] %v2924
    %3266 = vst [vmem:[#allocation5 + $0x558] sm:$0xff] %v2926
    %3267 = vst [vmem:[#allocation5 + $0x560] sm:$0xff] %v2928
    %3268 = vst [vmem:[#allocation5 + $0x568] sm:$0xff] %v2930
    %3269 = vst [vmem:[#allocation5 + $0x570] sm:$0xff] %v2932
    %3270 = vst [vmem:[#allocation5 + $0x578] sm:$0xff] %v2934
    %3271 = vst [vmem:[#allocation5 + $0x580] sm:$0xff] %v2936
    %3272 = vst [vmem:[#allocation5 + $0x588] sm:$0xff] %v2938
    %3273 = vst [vmem:[#allocation5 + $0x590] sm:$0xff] %v2940
    %3274 = vst [vmem:[#allocation5 + $0x598] sm:$0xff] %v2942
    %3275 = vst [vmem:[#allocation5 + $0x5a0] sm:$0xff] %v2944
    %3276 = vst [vmem:[#allocation5 + $0x5a8] sm:$0xff] %v2946
    %3277 = vst [vmem:[#allocation5 + $0x5b0] sm:$0xff] %v2948
    %3278 = vst [vmem:[#allocation5 + $0x5b8] sm:$0xff] %v2950
    %3279 = vst [vmem:[#allocation5 + $0x5c0] sm:$0xff] %v2952
    %3280 = vst [vmem:[#allocation5 + $0x5c8] sm:$0xff] %v2954
    %3281 = vst [vmem:[#allocation5 + $0x5d0] sm:$0xff] %v2956
    %3282 = vst [vmem:[#allocation5 + $0x5d8] sm:$0xff] %v2958
    %3283 = vst [vmem:[#allocation5 + $0x5e0] sm:$0xff] %v2960
    %3284 = vst [vmem:[#allocation5 + $0x5e8] sm:$0xff] %v2962
    %3285 = vst [vmem:[#allocation5 + $0x5f0] sm:$0xff] %v2964
    %3286 = vst [vmem:[#allocation5 + $0x5f8] sm:$0xff] %v2966
    %3287 = vst [vmem:[#allocation5 + $0x600] sm:$0xff] %v2968
    %3288 = vst [vmem:[#allocation5 + $0x608] sm:$0xff] %v2970
    %3289 = vst [vmem:[#allocation5 + $0x610] sm:$0xff] %v2972
    %3290 = vst [vmem:[#allocation5 + $0x618] sm:$0xff] %v2974
    %3291 = vst [vmem:[#allocation5 + $0x620] sm:$0xff] %v2976
    %3292 = vst [vmem:[#allocation5 + $0x628] sm:$0xff] %v2978
    %3293 = vst [vmem:[#allocation5 + $0x630] sm:$0xff] %v2980
    %3294 = vst [vmem:[#allocation5 + $0x638] sm:$0xff] %v2982
    %3295 = vst [vmem:[#allocation5 + $0x640] sm:$0xff] %v2984
    %3296 = vst [vmem:[#allocation5 + $0x648] sm:$0xff] %v2986
    %3297 = vst [vmem:[#allocation5 + $0x650] sm:$0xff] %v2988
    %3298 = vst [vmem:[#allocation5 + $0x658] sm:$0xff] %v2990
    %3299 = vst [vmem:[#allocation5 + $0x660] sm:$0xff] %v2992
    %3300 = vst [vmem:[#allocation5 + $0x668] sm:$0xff] %v2994
    %3301 = vst [vmem:[#allocation5 + $0x670] sm:$0xff] %v2996
    %3302 = vst [vmem:[#allocation5 + $0x678] sm:$0xff] %v2998
    %3303 = vst [vmem:[#allocation5 + $0x680] sm:$0xff] %v3000
    %3304 = vst [vmem:[#allocation5 + $0x688] sm:$0xff] %v3002
    %3305 = vst [vmem:[#allocation5 + $0x690] sm:$0xff] %v3004
    %3306 = vst [vmem:[#allocation5 + $0x698] sm:$0xff] %v3006
    %3307 = vst [vmem:[#allocation5 + $0x6a0] sm:$0xff] %v3008
    %3308 = vst [vmem:[#allocation5 + $0x6a8] sm:$0xff] %v3010
    %3309 = vst [vmem:[#allocation5 + $0x6b0] sm:$0xff] %v3012
    %3310 = vst [vmem:[#allocation5 + $0x6b8] sm:$0xff] %v3014
    %3311 = vst [vmem:[#allocation5 + $0x6c0] sm:$0xff] %v3016
    %3312 = vst [vmem:[#allocation5 + $0x6c8] sm:$0xff] %v3018
    %3313 = vst [vmem:[#allocation5 + $0x6d0] sm:$0xff] %v3020
    %3314 = vst [vmem:[#allocation5 + $0x6d8] sm:$0xff] %v3022
    %3315 = vst [vmem:[#allocation5 + $0x6e0] sm:$0xff] %v3024
    %3316 = vst [vmem:[#allocation5 + $0x6e8] sm:$0xff] %v3026
    %3317 = vst [vmem:[#allocation5 + $0x6f0] sm:$0xff] %v3028
    %3318 = vst [vmem:[#allocation5 + $0x6f8] sm:$0xff] %v3030
    %3319 = vst [vmem:[#allocation5 + $0x700] sm:$0xff] %v3032
    %3320 = vst [vmem:[#allocation5 + $0x708] sm:$0xff] %v3034
    %3321 = vst [vmem:[#allocation5 + $0x710] sm:$0xff] %v3036
    %3322 = vst [vmem:[#allocation5 + $0x718] sm:$0xff] %v3038
    %3323 = vst [vmem:[#allocation5 + $0x720] sm:$0xff] %v3040
    %3324 = vst [vmem:[#allocation5 + $0x728] sm:$0xff] %v3042
    %3325 = vst [vmem:[#allocation5 + $0x730] sm:$0xff] %v3044
    %3326 = vst [vmem:[#allocation5 + $0x738] sm:$0xff] %v3046
    %3327 = vst [vmem:[#allocation5 + $0x740] sm:$0xff] %v3048
    %3328 = vst [vmem:[#allocation5 + $0x748] sm:$0xff] %v3050
    %3329 = vst [vmem:[#allocation5 + $0x750] sm:$0xff] %v3052
    %3330 = vst [vmem:[#allocation5 + $0x758] sm:$0xff] %v3054
    %3331 = vst [vmem:[#allocation5 + $0x760] sm:$0xff] %v3056
    %3332 = vst [vmem:[#allocation5 + $0x768] sm:$0xff] %v3058
    %3333 = vst [vmem:[#allocation5 + $0x770] sm:$0xff] %v3060
    %3334 = vst [vmem:[#allocation5 + $0x778] sm:$0xff] %v3062
    %3335 = vst [vmem:[#allocation5 + $0x780] sm:$0xff] %v3064
    %3336 = vst [vmem:[#allocation5 + $0x788] sm:$0xff] %v3066
    %3337 = vst [vmem:[#allocation5 + $0x790] sm:$0xff] %v3068
    %3338 = vst [vmem:[#allocation5 + $0x798] sm:$0xff] %v3070
    %3339 = vst [vmem:[#allocation5 + $0x7a0] sm:$0xff] %v3072
    %3340 = vst [vmem:[#allocation5 + $0x7a8] sm:$0xff] %v3074
    %3341 = vst [vmem:[#allocation5 + $0x7b0] sm:$0xff] %v3076
    %3342 = vst [vmem:[#allocation5 + $0x7b8] sm:$0xff] %v3078
    %3343 = vst [vmem:[#allocation5 + $0x7c0] sm:$0xff] %v3080
    %3344 = vst [vmem:[#allocation5 + $0x7c8] sm:$0xff] %v3082
    %3345 = vst [vmem:[#allocation5 + $0x7d0] sm:$0xff] %v3084
    %3346 = vst [vmem:[#allocation5 + $0x7d8] sm:$0xff] %v3086
    %3347 = vst [vmem:[#allocation5 + $0x7e0] sm:$0xff] %v3088
    %3348 = vst [vmem:[#allocation5 + $0x7e8] sm:$0xff] %v3090
    %3349 = vst [vmem:[#allocation5 + $0x7f0] sm:$0xff] %v3092
    %3350 = vst [vmem:[#allocation5 + $0x7f8] sm:$0xff] %v3094
    // Predicated region
    $region10: #{tpu_custom_call.1} parent=1 // pred_check
      _
    $region11: #{tpu_custom_call.1} parent=1 // pred_check_branch
      %3352 = sbr.rel (0) target = $region13
    $region12: #{tpu_custom_call.1} parent=1 // pred_region
      %s3354 = ssub.s32 32768, 32768
      %3355 = vsyncadd [#allocation4], %s3354
      %s3356 = sshll.u32 [#allocation5], 4
      %s3357 = int_to_ptr.vmem [resolvable:$true] %s3356
      %3362 = dma.vmem_to_hbm [thread:$0]  %s3357, 32768, %s1, [#allocation4], 8192, 8192, 512
    $region13: #{tpu_custom_call.1} parent=1 // pred_fallthru
      _
    // Predicated region
    $region14: #{tpu_custom_call.1} parent=1 // pred_check
      _
    $region15: #{tpu_custom_call.1} parent=1 // pred_check_branch
      %3364 = sbr.rel (0) target = $region17
    $region16: #{tpu_custom_call.1} parent=1 // pred_region
      %3365 = dma.done [#allocation4], 32768
    $region17: #{tpu_custom_call.1} parent=1 // pred_fallthru
      _
    %3366 = vsyncpa [#allocation3], 1
    %3367 = vsyncpa [#allocation4], 1

</llo_original>
